<compile_context>
chip_gen: v7x
topology: tpu7x:2x2x1
jax: 0.10.0
libtpu: 0.0.40
codegen_flags: <defaults>
</compile_context>

<pallas_src>
import functools

import numpy as np
import jax
import jax.numpy as jnp
from jax.experimental import pallas as pl
from jax.experimental.pallas import tpu as pltpu

BN_EPS = 0.001            # BatchNorm3d(eps=0.001)
DF_TO_KS = {2: 3, 3: 5}   # kernel size per downsample factor
DF_TO_PAD = {2: 1, 3: 2}  # padding per downsample factor

# MXU fast path is bf16, but at the tiny test channel count (C=4) the op is HBM-bound,
# so f32 operands are kept to preserve the 2e-3 verification tolerance; for realistic
# channel counts set this to jnp.bfloat16 (accumulation stays f32 via
# preferred_element_type).
MATMUL_DTYPE = jnp.float32

VMEM_LIMIT_BYTES = 48 * 1024 * 1024   # headroom under v7x's 64 MiB physical VMEM


# --------------------------------------------------------------------------------------
# Kernel 1: per-channel sum / sum-of-squares (single pass), grid-accumulated.
# Layout (C, dchunk, H*W): spatial on lanes -> lane-dense loads for the reduction.
# --------------------------------------------------------------------------------------
def _bn_stats_kernel(x_ref, sum_ref, sq_ref):
    @pl.when((pl.program_id(0) == 0) & (pl.program_id(1) == 0))
    def _init():
        sum_ref[...] = jnp.zeros_like(sum_ref)
        sq_ref[...] = jnp.zeros_like(sq_ref)

    x = x_ref[...]                                               # (C, dchunk, H*W) f32
    s1 = jnp.sum(jnp.sum(x, axis=1), axis=1, keepdims=True)      # (C, 1)
    s2 = jnp.sum(jnp.sum(x * x, axis=1), axis=1, keepdims=True)  # (C, 1)
    sum_ref[...] = sum_ref[...] + s1
    sq_ref[...] = sq_ref[...] + s2


# --------------------------------------------------------------------------------------
# Kernel 2: fused BatchNorm(batch stats) + PReLU + strided Conv3d + MaxPool3d.
# One (batch, output-depth) tile per grid step; output channel-concatenated [conv|pool],
# written lane-dense as (2C, OH*OW).
# --------------------------------------------------------------------------------------
def _fused_down_kernel(x_ref, scale_ref, shift_ref, alpha_ref, w_ref, b_ref,
                       o_ref, win_ref, *, strides, pads, ks, C, OH, OW):
    sD, sH, sW = strides
    pD, pH, pW = pads
    kD, kH, kW = ks
    PH = sH * sW
    od = pl.program_id(1)

    x = x_ref[...]                                      # (C, sD, PH, OH, OW) raw slab

    # ---------------- max-pool path (raw input, same slab -> no extra DMA) -----------
    pool = x[:, 0, 0]
    for dl in range(sD):
        for p in range(PH):
            if dl == 0 and p == 0:
                continue
            pool = jnp.maximum(pool, x[:, dl, p])       # (C, OH, OW)
    pool = pool.reshape(C, OH * OW)                     # spatial on lanes

    # ---------------- fused BatchNorm (batch stats) + PReLU --------------------------
    scale = scale_ref[...].reshape(C, 1, 1, 1, 1)
    shift = shift_ref[...].reshape(C, 1, 1, 1, 1)
    alpha = alpha_ref[...].reshape(C, 1, 1, 1, 1)
    y = x * scale + shift
    y = jnp.where(y > 0, y, alpha * y)                  # (C, sD, PH, OH, OW)

    # ---------------- sliding conv window with depth carry ---------------------------
    # win_ref holds kD = sD + pD padded depth rows in phase space:
    #   rows [0, pD)  : carry = last pD rows of the previous step (zeros at od == 0,
    #                   which IS the depth zero-padding of the convolution),
    #   rows [pD, kD) : current slab.
    # Each (1+OH, 1+OW) phase plane is left-padded by one zero row/col, realizing the
    # H/W zero-padding (position index 0 <-> spatial position -1).
    @pl.when(od == 0)
    def _reset():
        win_ref[...] = jnp.zeros_like(win_ref)

    @pl.when(od > 0)
    def _carry():
        win_ref[:, 0:pD] = win_ref[:, sD:sD + pD]

    win_ref[:, pD:pD + sD, :, 1:, 1:] = y

    # ---------------- strided conv as grouped im2col matmuls -------------------------
    w_all = w_ref[...]                                  # (C, kD*kH*kW*C), loaded once
    col_per_kd = kH * kW * C
    kgrp = max(1, 128 // col_per_kd)                    # target ~128-wide contraction
    acc = None
    for kd0 in range(0, kD, kgrp):
        kd1 = min(kd0 + kgrp, kD)
        pieces = []
        for kd in range(kd0, kd1):
            for kh in range(kH):
                qh, mh = (kh - pH) % sH, (kh - pH) // sH    # H phase, offset (-1 or 0)
                for kw in range(kW):
                    qw, mw = (kw - pW) % sW, (kw - pW) // sW
                    slab = win_ref[:, kd, qh * sW + qw,
                                   mh + 1:mh + 1 + OH,
                                   mw + 1:mw + 1 + OW]      # (C, OH, OW) contiguous
                    pieces.append(slab.reshape(C, OH * OW))
        cols = jnp.concatenate(pieces, axis=0)              # (ntaps*C, OH*OW)
        wblk = w_all[:, kd0 * col_per_kd:kd1 * col_per_kd]  # (C, ntaps*C)
        part = jnp.dot(wblk.astype(MATMUL_DTYPE), cols.astype(MATMUL_DTYPE),
                       preferred_element_type=jnp.float32)
        acc = part if acc is None else acc + part
    conv = acc + b_ref[...]                                 # (C, OH*OW) + (C, 1)

    # ---------------- channel-concatenated, lane-dense output ------------------------
    o_ref[0, 0, 0:C, :] = conv.astype(o_ref.dtype)
    o_ref[0, 0, C:2 * C, :] = pool.astype(o_ref.dtype)


# --------------------------------------------------------------------------------------
# Wrapper: stats kernel -> per-channel scale/shift, one phase-major layout pass,
# fused conv/pool kernel, output layout restore.
# --------------------------------------------------------------------------------------
def _pick_depth_chunk(D):
    # chunk must divide D and be a multiple of 8 (or equal D) -> valid BlockSpec tiling.
    if D % 8 != 0:
        return D
    for c in (32, 24, 16, 8):
        if D % c == 0:
            return c
    return D


def variable_down_step_3d(x_ncdhw, params, downsample_factors):
    gamma, beta, alpha, w, b = params
    dfs = tuple(int(d) for d in downsample_factors)
    ks = tuple(DF_TO_KS[d] for d in dfs)
    pads = tuple(DF_TO_PAD[d] for d in dfs)
    strides = dfs

    N, C, D, H, W = x_ncdhw.shape
    assert all(s % st == 0 for s, st in zip((D, H, W), strides)), \
        "spatial dims must be divisible by the downsample factors"
    sD, sH, sW = strides
    pD, pH, pW = pads
    kD, kH, kW = ks
    OD, OH, OW = D // sD, H // sH, W // sW
    PH = sH * sW

    x = x_ncdhw.astype(jnp.float32)

    # ---- kernel 1: per-channel sum / sum^2 in one pass over x ----
    dchunk = _pick_depth_chunk(D)
    x_flat = x.reshape(N * C, D, H * W)                      # free reshape
    sums, sqs = pl.pallas_call(
        _bn_stats_kernel,
        out_shape=(jax.ShapeDtypeStruct((C, 1), jnp.float32),
                   jax.ShapeDtypeStruct((C, 1), jnp.float32)),
        grid=(N, D // dchunk),
        in_specs=[pl.BlockSpec((C, dchunk, H * W), lambda n, d: (n, d, 0))],
        out_specs=(pl.BlockSpec((C, 1), lambda n, d: (0, 0)),
                   pl.BlockSpec((C, 1), lambda n, d: (0, 0))),
        compiler_params=pltpu.CompilerParams(
            dimension_semantics=("arbitrary", "arbitrary"),
            vmem_limit_bytes=VMEM_LIMIT_BYTES),
    )(x_flat)

    cnt = float(N * D * H * W)
    mean = sums[:, 0] / cnt
    var = jnp.maximum(sqs[:, 0] / cnt - mean * mean, 0.0)    # biased var (training BN)
    rstd = jax.lax.rsqrt(var + BN_EPS)
    scale = gamma.astype(jnp.float32) * rstd
    shift = beta.astype(jnp.float32) - mean * scale

    # ---- single layout pass: stride-phase-major (N*C, D, sH*sW, OH, OW) ----
    # In-kernel accesses become contiguous static slices (no strided VMEM loads).
    xps = x.reshape(N, C, D, OH, sH, OW, sW)
    xps = jnp.transpose(xps, (0, 1, 2, 4, 6, 3, 5))
    xps = xps.reshape(N * C, D, PH, OH, OW)

    # torch Conv3d weight (Cout, Cin, kD, kH, kW) -> (Cout, kD*kH*kW*Cin), tap-major.
    wfold = jnp.transpose(w, (0, 2, 3, 4, 1)).reshape(C, kD * kH * kW * C)
    wfold = wfold.astype(jnp.float32)

    scale2 = scale.reshape(C, 1)
    shift2 = shift.reshape(C, 1)
    alpha2 = alpha.reshape(C, 1).astype(jnp.float32)
    bias2 = b.reshape(C, 1).astype(jnp.float32)

    kernel = functools.partial(
        _fused_down_kernel, strides=strides, pads=pads, ks=ks, C=C, OH=OH, OW=OW)

    out_flat = pl.pallas_call(
        kernel,
        out_shape=jax.ShapeDtypeStruct((N, OD, 2 * C, OH * OW), jnp.float32),
        grid=(N, OD),
        in_specs=[
            pl.BlockSpec((C, sD, PH, OH, OW), lambda n, od: (n, od, 0, 0, 0)),
            pl.BlockSpec((C, 1), lambda n, od: (0, 0)),
            pl.BlockSpec((C, 1), lambda n, od: (0, 0)),
            pl.BlockSpec((C, 1), lambda n, od: (0, 0)),
            pl.BlockSpec((C, kD * kH * kW * C), lambda n, od: (0, 0)),
            pl.BlockSpec((C, 1), lambda n, od: (0, 0)),
        ],
        out_specs=pl.BlockSpec((1, 1, 2 * C, OH * OW), lambda n, od: (n, od, 0, 0)),
        scratch_shapes=[pltpu.VMEM((C, kD, PH, 1 + OH, 1 + OW), jnp.float32)],
        compiler_params=pltpu.CompilerParams(
            dimension_semantics=("parallel", "arbitrary"),
            vmem_limit_bytes=VMEM_LIMIT_BYTES),
    )(xps, scale2, shift2, alpha2, wfold, bias2)

    out = out_flat.reshape(N, OD, 2 * C, OH, OW)
    return jnp.transpose(out, (0, 2, 1, 3, 4))               # back to NCDHW


# --------------------------------------------------------------------------------------
# Pure-JAX reference for verification.
# --------------------------------------------------------------------------------------
def _reference(x, gamma, beta, alpha, w, b, dfs):
    mu = jnp.mean(x, axis=(0, 2, 3, 4), keepdims=True)
    var = jnp.mean((x - mu) ** 2, axis=(0, 2, 3, 4), keepdims=True)
    y = (x - mu) / jnp.sqrt(var + BN_EPS)
    y = y * gamma.reshape(1, -1, 1, 1, 1) + beta.reshape(1, -1, 1, 1, 1)
    y = jnp.where(y > 0, y, alpha.reshape(1, -1, 1, 1, 1) * y)
    pads = [(DF_TO_PAD[d], DF_TO_PAD[d]) for d in dfs]
    conv = jax.lax.conv_general_dilated(
        y, w, window_strides=tuple(dfs), padding=pads,
        dimension_numbers=("NCDHW", "OIDHW", "NCDHW"),
        precision=jax.lax.Precision.HIGHEST)
    conv = conv + b.reshape(1, -1, 1, 1, 1)
    pool = jax.lax.reduce_window(
        x, -jnp.inf, jax.lax.max,
        window_dimensions=(1, 1) + tuple(dfs),
        window_strides=(1, 1) + tuple(dfs),
        padding="VALID")
    return jnp.concatenate([conv, pool], axis=1)


def _run_case(key, N, C, shape, dfs, alpha_vec):
    D, H, W = shape
    ks = tuple(DF_TO_KS[d] for d in dfs)
    kx, kw_, kb = jax.random.split(key, 3)
    x = jax.random.normal(kx, (N, C, D, H, W), jnp.float32)
    gamma = 1.0 + 0.1 * jnp.arange(C, dtype=jnp.float32)       # BatchNorm3d weight
    beta = 0.05 * jnp.arange(C, dtype=jnp.float32)             # BatchNorm3d bias
    alpha = alpha_vec                                          # PReLU slopes
    w = 0.1 * jax.random.normal(kw_, (C, C) + ks, jnp.float32)
    b = 0.1 * jax.random.normal(kb, (C,), jnp.float32)
    params = (gamma, beta, alpha, w, b)

    fn = jax.jit(variable_down_step_3d, static_argnums=(2,))
    out = jax.block_until_ready(fn(x, params, dfs))
    ref = _reference(x, gamma, beta, alpha, w, b, dfs)
    exp_shape = (N, 2 * C, D // dfs[0], H // dfs[1], W // dfs[2])
    assert out.shape == ref.shape == exp_shape, (out.shape, ref.shape, exp_shape)
    np.testing.assert_allclose(np.asarray(out), np.asarray(ref), atol=2e-3, rtol=2e-3)


if __name__ == "__main__":
    key = jax.random.PRNGKey(0)
    k1, k2 = jax.random.split(key)
    C = 4
    # module default state: PReLU init = 0.0, stride-2 / k=3 path
    _run_case(k1, N=2, C=C, shape=(8, 8, 8), dfs=(2, 2, 2),
              alpha_vec=jnp.zeros((C,), jnp.float32))
    # stride-3 / k=5 path (mixed factors) with non-zero PReLU slopes
    _run_case(k2, N=2, C=C, shape=(9, 8, 9), dfs=(3, 2, 3),
              alpha_vec=0.1 + 0.05 * jnp.arange(C, dtype=jnp.float32))
    # TODO(synk): BatchNorm running_mean/running_var (momentum=0.01) buffer updates are a
    # training-time side effect that does not change the forward output; not materialized.
    print("KERNEL_OK")
</pallas_src>

<mosaic_0001>
module attributes {stable_mosaic.version = 11 : i64} {
  func.func @_bn_stats_kernel(%arg0: i32, %arg1: i32, %arg2: memref<4x8x64xf32, #tpu.memory_space<vmem>>, %arg3: memref<4x1xf32, #tpu.memory_space<vmem>>, %arg4: memref<4x1xf32, #tpu.memory_space<vmem>>) attributes {dimension_semantics = [#tpu.dimension_semantics<arbitrary>, #tpu.dimension_semantics<arbitrary>], iteration_bounds = array<i64: 2, 1>, scalar_prefetch = 0 : i64, scratch_operands = 0 : i64, tpu.core_type = #tpu.core_type<tc>, window_params = [{transform_indices = @transform_0, window_bounds = array<i64: 4, 8, 64>}, {pipeline_mode = #tpu.pipeline_mode<synchronous>, transform_indices = @transform_1, window_bounds = array<i64: 4, 1>}, {pipeline_mode = #tpu.pipeline_mode<synchronous>, transform_indices = @transform_2, window_bounds = array<i64: 4, 1>}]} {
    %c0_i32 = arith.constant 0 : i32
    %0 = arith.cmpi eq, %arg0, %c0_i32 : i32
    %c0_i32_0 = arith.constant 0 : i32
    %1 = arith.cmpi eq, %arg1, %c0_i32_0 : i32
    %2 = arith.andi %0, %1 : i1
    %3 = arith.extui %2 : i1 to i32
    %c0_i32_1 = arith.constant 0 : i32
    %4 = arith.cmpi ne, %3, %c0_i32_1 : i32
    scf.if %4 {
      %cst_15 = arith.constant 0.000000e+00 : f32
      %19 = vector.broadcast %cst_15 : f32 to vector<4x1xf32>
      %c0_16 = arith.constant 0 : index
      %c0_17 = arith.constant 0 : index
      %20 = vector.load %arg3[%c0_16, %c0_17] : memref<4x1xf32, #tpu.memory_space<vmem>>, vector<4x1xf32>
      tpu.vector_store %arg3[%c0_16, %c0_17], %19 {strides = array<i32>} : memref<4x1xf32, #tpu.memory_space<vmem>>, vector<4x1xf32>,
      %cst_18 = arith.constant 0.000000e+00 : f32
      %21 = vector.broadcast %cst_18 : f32 to vector<4x1xf32>
      %c0_19 = arith.constant 0 : index
      %c0_20 = arith.constant 0 : index
      %22 = vector.load %arg4[%c0_19, %c0_20] : memref<4x1xf32, #tpu.memory_space<vmem>>, vector<4x1xf32>
      tpu.vector_store %arg4[%c0_19, %c0_20], %21 {strides = array<i32>} : memref<4x1xf32, #tpu.memory_space<vmem>>, vector<4x1xf32>,
    } else {
    }
    %c0 = arith.constant 0 : index
    %c0_2 = arith.constant 0 : index
    %c0_3 = arith.constant 0 : index
    %5 = vector.load %arg2[%c0, %c0_2, %c0_3] : memref<4x8x64xf32, #tpu.memory_space<vmem>>, vector<4x8x64xf32>
    %cst = arith.constant dense<0.000000e+00> : vector<4x64xf32>
    %6 = vector.multi_reduction <add>, %5, %cst [1] : vector<4x8x64xf32> to vector<4x64xf32>
    %cst_4 = arith.constant dense<0.000000e+00> : vector<4xf32>
    %7 = vector.multi_reduction <add>, %6, %cst_4 [1] : vector<4x64xf32> to vector<4xf32>
    %8 = vector.shape_cast %7 : vector<4xf32> to vector<4x1xf32>
    %9 = arith.mulf %5, %5 : vector<4x8x64xf32>
    %cst_5 = arith.constant dense<0.000000e+00> : vector<4x64xf32>
    %10 = vector.multi_reduction <add>, %9, %cst_5 [1] : vector<4x8x64xf32> to vector<4x64xf32>
    %cst_6 = arith.constant dense<0.000000e+00> : vector<4xf32>
    %11 = vector.multi_reduction <add>, %10, %cst_6 [1] : vector<4x64xf32> to vector<4xf32>
    %12 = vector.shape_cast %11 : vector<4xf32> to vector<4x1xf32>
    %c0_7 = arith.constant 0 : index
    %c0_8 = arith.constant 0 : index
    %13 = vector.load %arg3[%c0_7, %c0_8] : memref<4x1xf32, #tpu.memory_space<vmem>>, vector<4x1xf32>
    %14 = arith.addf %13, %8 : vector<4x1xf32>
    %c0_9 = arith.constant 0 : index
    %c0_10 = arith.constant 0 : index
    %15 = vector.load %arg3[%c0_9, %c0_10] : memref<4x1xf32, #tpu.memory_space<vmem>>, vector<4x1xf32>
    tpu.vector_store %arg3[%c0_9, %c0_10], %14 {strides = array<i32>} : memref<4x1xf32, #tpu.memory_space<vmem>>, vector<4x1xf32>,
    %c0_11 = arith.constant 0 : index
    %c0_12 = arith.constant 0 : index
    %16 = vector.load %arg4[%c0_11, %c0_12] : memref<4x1xf32, #tpu.memory_space<vmem>>, vector<4x1xf32>
    %17 = arith.addf %16, %12 : vector<4x1xf32>
    %c0_13 = arith.constant 0 : index
    %c0_14 = arith.constant 0 : index
    %18 = vector.load %arg4[%c0_13, %c0_14] : memref<4x1xf32, #tpu.memory_space<vmem>>, vector<4x1xf32>
    tpu.vector_store %arg4[%c0_13, %c0_14], %17 {strides = array<i32>} : memref<4x1xf32, #tpu.memory_space<vmem>>, vector<4x1xf32>,
    return
  }
  func.func @transform_0(%arg0: i32, %arg1: i32) -> (i32, i32, i32) {
    %c0_i32 = arith.constant 0 : i32
    %c0_i32_0 = arith.constant 0 : i32
    return %arg0, %arg1, %c0_i32 : i32, i32, i32
  }
  func.func @transform_1(%arg0: i32, %arg1: i32) -> (i32, i32) {
    %c0_i32 = arith.constant 0 : i32
    %c0_i32_0 = arith.constant 0 : i32
    %c0_i32_1 = arith.constant 0 : i32
    return %c0_i32, %c0_i32_0 : i32, i32
  }
  func.func @transform_2(%arg0: i32, %arg1: i32) -> (i32, i32) {
    %c0_i32 = arith.constant 0 : i32
    %c0_i32_0 = arith.constant 0 : i32
    %c0_i32_1 = arith.constant 0 : i32
    return %c0_i32, %c0_i32_0 : i32, i32
  }
}

module attributes {stable_mosaic.version = 11 : i64} {
  func.func @_fused_down_kernel(%arg0: i32, %arg1: i32, %arg2: memref<4x2x4x4x4xf32, #tpu.memory_space<vmem>>, %arg3: memref<4x1xf32, #tpu.memory_space<vmem>>, %arg4: memref<4x1xf32, #tpu.memory_space<vmem>>, %arg5: memref<4x1xf32, #tpu.memory_space<vmem>>, %arg6: memref<4x108xf32, #tpu.memory_space<vmem>>, %arg7: memref<4x1xf32, #tpu.memory_space<vmem>>, %arg8: memref<1x1x8x16xf32, #tpu.memory_space<vmem>>, %arg9: memref<4x3x4x5x5xf32, #tpu.memory_space<vmem>>) attributes {dimension_semantics = [#tpu.dimension_semantics<parallel>, #tpu.dimension_semantics<arbitrary>], iteration_bounds = array<i64: 2, 4>, scalar_prefetch = 0 : i64, scratch_operands = 1 : i64, tpu.core_type = #tpu.core_type<tc>, window_params = [{transform_indices = @transform_0, window_bounds = array<i64: 4, 2, 4, 4, 4>}, {pipeline_mode = #tpu.pipeline_mode<synchronous>, transform_indices = @transform_1, window_bounds = array<i64: 4, 1>}, {pipeline_mode = #tpu.pipeline_mode<synchronous>, transform_indices = @transform_2, window_bounds = array<i64: 4, 1>}, {pipeline_mode = #tpu.pipeline_mode<synchronous>, transform_indices = @transform_3, window_bounds = array<i64: 4, 1>}, {pipeline_mode = #tpu.pipeline_mode<synchronous>, transform_indices = @transform_4, window_bounds = array<i64: 4, 108>}, {pipeline_mode = #tpu.pipeline_mode<synchronous>, transform_indices = @transform_5, window_bounds = array<i64: 4, 1>}, {transform_indices = @transform_6, window_bounds = array<i64: 1, 1, 8, 16>}]} {
    %c0 = arith.constant 0 : index
    %c0_0 = arith.constant 0 : index
    %c0_1 = arith.constant 0 : index
    %c0_2 = arith.constant 0 : index
    %c0_3 = arith.constant 0 : index
    %0 = vector.load %arg2[%c0, %c0_0, %c0_1, %c0_2, %c0_3] : memref<4x2x4x4x4xf32, #tpu.memory_space<vmem>>, vector<4x2x4x4x4xf32>
    %1 = vector.extract_strided_slice %0 {offsets = [0, 0, 0, 0, 0], sizes = [4, 1, 1, 4, 4], strides = [1, 1, 1, 1, 1]} : vector<4x2x4x4x4xf32> to vector<4x1x1x4x4xf32>
    %2 = vector.shape_cast %1 : vector<4x1x1x4x4xf32> to vector<4x4x4xf32>
    %3 = vector.extract_strided_slice %0 {offsets = [0, 0, 1, 0, 0], sizes = [4, 1, 1, 4, 4], strides = [1, 1, 1, 1, 1]} : vector<4x2x4x4x4xf32> to vector<4x1x1x4x4xf32>
    %4 = vector.shape_cast %3 : vector<4x1x1x4x4xf32> to vector<4x4x4xf32>
    %5 = arith.maximumf %2, %4 : vector<4x4x4xf32>
    %6 = vector.extract_strided_slice %0 {offsets = [0, 0, 2, 0, 0], sizes = [4, 1, 1, 4, 4], strides = [1, 1, 1, 1, 1]} : vector<4x2x4x4x4xf32> to vector<4x1x1x4x4xf32>
    %7 = vector.shape_cast %6 : vector<4x1x1x4x4xf32> to vector<4x4x4xf32>
    %8 = arith.maximumf %5, %7 : vector<4x4x4xf32>
    %9 = vector.extract_strided_slice %0 {offsets = [0, 0, 3, 0, 0], sizes = [4, 1, 1, 4, 4], strides = [1, 1, 1, 1, 1]} : vector<4x2x4x4x4xf32> to vector<4x1x1x4x4xf32>
    %10 = vector.shape_cast %9 : vector<4x1x1x4x4xf32> to vector<4x4x4xf32>
    %11 = arith.maximumf %8, %10 : vector<4x4x4xf32>
    %12 = vector.extract_strided_slice %0 {offsets = [0, 1, 0, 0, 0], sizes = [4, 1, 1, 4, 4], strides = [1, 1, 1, 1, 1]} : vector<4x2x4x4x4xf32> to vector<4x1x1x4x4xf32>
    %13 = vector.shape_cast %12 : vector<4x1x1x4x4xf32> to vector<4x4x4xf32>
    %14 = arith.maximumf %11, %13 : vector<4x4x4xf32>
    %15 = vector.extract_strided_slice %0 {offsets = [0, 1, 1, 0, 0], sizes = [4, 1, 1, 4, 4], strides = [1, 1, 1, 1, 1]} : vector<4x2x4x4x4xf32> to vector<4x1x1x4x4xf32>
    %16 = vector.shape_cast %15 : vector<4x1x1x4x4xf32> to vector<4x4x4xf32>
    %17 = arith.maximumf %14, %16 : vector<4x4x4xf32>
    %18 = vector.extract_strided_slice %0 {offsets = [0, 1, 2, 0, 0], sizes = [4, 1, 1, 4, 4], strides = [1, 1, 1, 1, 1]} : vector<4x2x4x4x4xf32> to vector<4x1x1x4x4xf32>
    %19 = vector.shape_cast %18 : vector<4x1x1x4x4xf32> to vector<4x4x4xf32>
    %20 = arith.maximumf %17, %19 : vector<4x4x4xf32>
    %21 = vector.extract_strided_slice %0 {offsets = [0, 1, 3, 0, 0], sizes = [4, 1, 1, 4, 4], strides = [1, 1, 1, 1, 1]} : vector<4x2x4x4x4xf32> to vector<4x1x1x4x4xf32>
    %22 = vector.shape_cast %21 : vector<4x1x1x4x4xf32> to vector<4x4x4xf32>
    %23 = arith.maximumf %20, %22 : vector<4x4x4xf32>
    %24 = vector.shape_cast %23 : vector<4x4x4xf32> to vector<4x16xf32>
    %c0_4 = arith.constant 0 : index
    %c0_5 = arith.constant 0 : index
    %25 = vector.load %arg3[%c0_4, %c0_5] : memref<4x1xf32, #tpu.memory_space<vmem>>, vector<4x1xf32>
    %26 = vector.shape_cast %25 : vector<4x1xf32> to vector<4x1x1x1x1xf32>
    %c0_6 = arith.constant 0 : index
    %c0_7 = arith.constant 0 : index
    %27 = vector.load %arg4[%c0_6, %c0_7] : memref<4x1xf32, #tpu.memory_space<vmem>>, vector<4x1xf32>
    %28 = vector.shape_cast %27 : vector<4x1xf32> to vector<4x1x1x1x1xf32>
    %c0_8 = arith.constant 0 : index
    %c0_9 = arith.constant 0 : index
    %29 = vector.load %arg5[%c0_8, %c0_9] : memref<4x1xf32, #tpu.memory_space<vmem>>, vector<4x1xf32>
    %30 = vector.shape_cast %29 : vector<4x1xf32> to vector<4x1x1x1x1xf32>
    %31 = vector.broadcast %26 : vector<4x1x1x1x1xf32> to vector<4x2x4x4x4xf32>
    %32 = arith.mulf %0, %31 : vector<4x2x4x4x4xf32>
    %33 = vector.broadcast %28 : vector<4x1x1x1x1xf32> to vector<4x2x4x4x4xf32>
    %34 = arith.addf %32, %33 : vector<4x2x4x4x4xf32>
    %cst = arith.constant 0.000000e+00 : f32
    %35 = vector.broadcast %cst : f32 to vector<4x2x4x4x4xf32>
    %36 = arith.cmpf ogt, %34, %35 : vector<4x2x4x4x4xf32>
    %37 = vector.broadcast %30 : vector<4x1x1x1x1xf32> to vector<4x2x4x4x4xf32>
    %38 = arith.mulf %37, %34 : vector<4x2x4x4x4xf32>
    %39 = arith.select %36, %34, %38 : vector<4x2x4x4x4xi1>, vector<4x2x4x4x4xf32>
    %c0_i32 = arith.constant 0 : i32
    %40 = arith.cmpi eq, %arg1, %c0_i32 : i32
    %41 = arith.extui %40 : i1 to i32
    %c0_i32_10 = arith.constant 0 : i32
    %42 = arith.cmpi ne, %41, %c0_i32_10 : i32
    scf.if %42 {
      %cst_162 = arith.constant 0.000000e+00 : f32
      %142 = vector.broadcast %cst_162 : f32 to vector<4x3x4x5x5xf32>
      %c0_163 = arith.constant 0 : index
      %c0_164 = arith.constant 0 : index
      %c0_165 = arith.constant 0 : index
      %c0_166 = arith.constant 0 : index
      %c0_167 = arith.constant 0 : index
      %143 = vector.load %arg9[%c0_163, %c0_164, %c0_165, %c0_166, %c0_167] : memref<4x3x4x5x5xf32, #tpu.memory_space<vmem>>, vector<4x3x4x5x5xf32>
      tpu.vector_store %arg9[%c0_163, %c0_164, %c0_165, %c0_166, %c0_167], %142 {strides = array<i32>} : memref<4x3x4x5x5xf32, #tpu.memory_space<vmem>>, vector<4x3x4x5x5xf32>,
    } else {
    }
    %c0_i32_11 = arith.constant 0 : i32
    %43 = arith.cmpi sgt, %arg1, %c0_i32_11 : i32
    %44 = arith.extui %43 : i1 to i32
    %c0_i32_12 = arith.constant 0 : i32
    %45 = arith.cmpi ne, %44, %c0_i32_12 : i32
    scf.if %45 {
      %c0_162 = arith.constant 0 : index
      %c2_163 = arith.constant 2 : index
      %c0_164 = arith.constant 0 : index
      %c0_165 = arith.constant 0 : index
      %c0_166 = arith.constant 0 : index
      %142 = vector.load %arg9[%c0_162, %c2_163, %c0_164, %c0_165, %c0_166] : memref<4x3x4x5x5xf32, #tpu.memory_space<vmem>>, vector<4x1x4x5x5xf32>
      %c0_167 = arith.constant 0 : index
      %c0_168 = arith.constant 0 : index
      %c0_169 = arith.constant 0 : index
      %c0_170 = arith.constant 0 : index
      %c0_171 = arith.constant 0 : index
      %143 = vector.load %arg9[%c0_167, %c0_168, %c0_169, %c0_170, %c0_171] : memref<4x3x4x5x5xf32, #tpu.memory_space<vmem>>, vector<4x1x4x5x5xf32>
      tpu.vector_store %arg9[%c0_167, %c0_168, %c0_169, %c0_170, %c0_171], %142 {strides = array<i32>} : memref<4x3x4x5x5xf32, #tpu.memory_space<vmem>>, vector<4x1x4x5x5xf32>,
    } else {
    }
    %c0_13 = arith.constant 0 : index
    %c1 = arith.constant 1 : index
    %c0_14 = arith.constant 0 : index
    %c1_15 = arith.constant 1 : index
    %c1_16 = arith.constant 1 : index
    %46 = vector.load %arg9[%c0_13, %c1, %c0_14, %c1_15, %c1_16] : memref<4x3x4x5x5xf32, #tpu.memory_space<vmem>>, vector<4x2x4x4x4xf32>
    tpu.vector_store %arg9[%c0_13, %c1, %c0_14, %c1_15, %c1_16], %39 {strides = array<i32>} : memref<4x3x4x5x5xf32, #tpu.memory_space<vmem>>, vector<4x2x4x4x4xf32>,
    %c0_17 = arith.constant 0 : index
    %c0_18 = arith.constant 0 : index
    %47 = vector.load %arg6[%c0_17, %c0_18] : memref<4x108xf32, #tpu.memory_space<vmem>>, vector<4x108xf32>
    %c0_19 = arith.constant 0 : index
    %c0_20 = arith.constant 0 : index
    %c3 = arith.constant 3 : index
    %c0_21 = arith.constant 0 : index
    %c0_22 = arith.constant 0 : index
    %48 = vector.load %arg9[%c0_19, %c0_20, %c3, %c0_21, %c0_22] : memref<4x3x4x5x5xf32, #tpu.memory_space<vmem>>, vector<4x1x1x4x4xf32>
    %49 = vector.shape_cast %48 : vector<4x1x1x4x4xf32> to vector<4x4x4xf32>
    %50 = vector.shape_cast %49 : vector<4x4x4xf32> to vector<4x16xf32>
    %c0_23 = arith.constant 0 : index
    %c0_24 = arith.constant 0 : index
    %c2 = arith.constant 2 : index
    %c0_25 = arith.constant 0 : index
    %c1_26 = arith.constant 1 : index
    %51 = vector.load %arg9[%c0_23, %c0_24, %c2, %c0_25, %c1_26] : memref<4x3x4x5x5xf32, #tpu.memory_space<vmem>>, vector<4x1x1x4x4xf32>
    %52 = vector.shape_cast %51 : vector<4x1x1x4x4xf32> to vector<4x4x4xf32>
    %53 = vector.shape_cast %52 : vector<4x4x4xf32> to vector<4x16xf32>
    %c0_27 = arith.constant 0 : index
    %c0_28 = arith.constant 0 : index
    %c3_29 = arith.constant 3 : index
    %c0_30 = arith.constant 0 : index
    %c1_31 = arith.constant 1 : index
    %54 = vector.load %arg9[%c0_27, %c0_28, %c3_29, %c0_30, %c1_31] : memref<4x3x4x5x5xf32, #tpu.memory_space<vmem>>, vector<4x1x1x4x4xf32>
    %55 = vector.shape_cast %54 : vector<4x1x1x4x4xf32> to vector<4x4x4xf32>
    %56 = vector.shape_cast %55 : vector<4x4x4xf32> to vector<4x16xf32>
    %c0_32 = arith.constant 0 : index
    %c0_33 = arith.constant 0 : index
    %c1_34 = arith.constant 1 : index
    %c1_35 = arith.constant 1 : index
    %c0_36 = arith.constant 0 : index
    %57 = vector.load %arg9[%c0_32, %c0_33, %c1_34, %c1_35, %c0_36] : memref<4x3x4x5x5xf32, #tpu.memory_space<vmem>>, vector<4x1x1x4x4xf32>
    %58 = vector.shape_cast %57 : vector<4x1x1x4x4xf32> to vector<4x4x4xf32>
    %59 = vector.shape_cast %58 : vector<4x4x4xf32> to vector<4x16xf32>
    %c0_37 = arith.constant 0 : index
    %c0_38 = arith.constant 0 : index
    %c0_39 = arith.constant 0 : index
    %c1_40 = arith.constant 1 : index
    %c1_41 = arith.constant 1 : index
    %60 = vector.load %arg9[%c0_37, %c0_38, %c0_39, %c1_40, %c1_41] : memref<4x3x4x5x5xf32, #tpu.memory_space<vmem>>, vector<4x1x1x4x4xf32>
    %61 = vector.shape_cast %60 : vector<4x1x1x4x4xf32> to vector<4x4x4xf32>
    %62 = vector.shape_cast %61 : vector<4x4x4xf32> to vector<4x16xf32>
    %c0_42 = arith.constant 0 : index
    %c0_43 = arith.constant 0 : index
    %c1_44 = arith.constant 1 : index
    %c1_45 = arith.constant 1 : index
    %c1_46 = arith.constant 1 : index
    %63 = vector.load %arg9[%c0_42, %c0_43, %c1_44, %c1_45, %c1_46] : memref<4x3x4x5x5xf32, #tpu.memory_space<vmem>>, vector<4x1x1x4x4xf32>
    %64 = vector.shape_cast %63 : vector<4x1x1x4x4xf32> to vector<4x4x4xf32>
    %65 = vector.shape_cast %64 : vector<4x4x4xf32> to vector<4x16xf32>
    %c0_47 = arith.constant 0 : index
    %c0_48 = arith.constant 0 : index
    %c3_49 = arith.constant 3 : index
    %c1_50 = arith.constant 1 : index
    %c0_51 = arith.constant 0 : index
    %66 = vector.load %arg9[%c0_47, %c0_48, %c3_49, %c1_50, %c0_51] : memref<4x3x4x5x5xf32, #tpu.memory_space<vmem>>, vector<4x1x1x4x4xf32>
    %67 = vector.shape_cast %66 : vector<4x1x1x4x4xf32> to vector<4x4x4xf32>
    %68 = vector.shape_cast %67 : vector<4x4x4xf32> to vector<4x16xf32>
    %c0_52 = arith.constant 0 : index
    %c0_53 = arith.constant 0 : index
    %c2_54 = arith.constant 2 : index
    %c1_55 = arith.constant 1 : index
    %c1_56 = arith.constant 1 : index
    %69 = vector.load %arg9[%c0_52, %c0_53, %c2_54, %c1_55, %c1_56] : memref<4x3x4x5x5xf32, #tpu.memory_space<vmem>>, vector<4x1x1x4x4xf32>
    %70 = vector.shape_cast %69 : vector<4x1x1x4x4xf32> to vector<4x4x4xf32>
    %71 = vector.shape_cast %70 : vector<4x4x4xf32> to vector<4x16xf32>
    %c0_57 = arith.constant 0 : index
    %c0_58 = arith.constant 0 : index
    %c3_59 = arith.constant 3 : index
    %c1_60 = arith.constant 1 : index
    %c1_61 = arith.constant 1 : index
    %72 = vector.load %arg9[%c0_57, %c0_58, %c3_59, %c1_60, %c1_61] : memref<4x3x4x5x5xf32, #tpu.memory_space<vmem>>, vector<4x1x1x4x4xf32>
    %73 = vector.shape_cast %72 : vector<4x1x1x4x4xf32> to vector<4x4x4xf32>
    %74 = vector.shape_cast %73 : vector<4x4x4xf32> to vector<4x16xf32>
    %c0_62 = arith.constant 0 : index
    %c1_63 = arith.constant 1 : index
    %c3_64 = arith.constant 3 : index
    %c0_65 = arith.constant 0 : index
    %c0_66 = arith.constant 0 : index
    %75 = vector.load %arg9[%c0_62, %c1_63, %c3_64, %c0_65, %c0_66] : memref<4x3x4x5x5xf32, #tpu.memory_space<vmem>>, vector<4x1x1x4x4xf32>
    %76 = vector.shape_cast %75 : vector<4x1x1x4x4xf32> to vector<4x4x4xf32>
    %77 = vector.shape_cast %76 : vector<4x4x4xf32> to vector<4x16xf32>
    %c0_67 = arith.constant 0 : index
    %c1_68 = arith.constant 1 : index
    %c2_69 = arith.constant 2 : index
    %c0_70 = arith.constant 0 : index
    %c1_71 = arith.constant 1 : index
    %78 = vector.load %arg9[%c0_67, %c1_68, %c2_69, %c0_70, %c1_71] : memref<4x3x4x5x5xf32, #tpu.memory_space<vmem>>, vector<4x1x1x4x4xf32>
    %79 = vector.shape_cast %78 : vector<4x1x1x4x4xf32> to vector<4x4x4xf32>
    %80 = vector.shape_cast %79 : vector<4x4x4xf32> to vector<4x16xf32>
    %c0_72 = arith.constant 0 : index
    %c1_73 = arith.constant 1 : index
    %c3_74 = arith.constant 3 : index
    %c0_75 = arith.constant 0 : index
    %c1_76 = arith.constant 1 : index
    %81 = vector.load %arg9[%c0_72, %c1_73, %c3_74, %c0_75, %c1_76] : memref<4x3x4x5x5xf32, #tpu.memory_space<vmem>>, vector<4x1x1x4x4xf32>
    %82 = vector.shape_cast %81 : vector<4x1x1x4x4xf32> to vector<4x4x4xf32>
    %83 = vector.shape_cast %82 : vector<4x4x4xf32> to vector<4x16xf32>
    %c0_77 = arith.constant 0 : index
    %c1_78 = arith.constant 1 : index
    %c1_79 = arith.constant 1 : index
    %c1_80 = arith.constant 1 : index
    %c0_81 = arith.constant 0 : index
    %84 = vector.load %arg9[%c0_77, %c1_78, %c1_79, %c1_80, %c0_81] : memref<4x3x4x5x5xf32, #tpu.memory_space<vmem>>, vector<4x1x1x4x4xf32>
    %85 = vector.shape_cast %84 : vector<4x1x1x4x4xf32> to vector<4x4x4xf32>
    %86 = vector.shape_cast %85 : vector<4x4x4xf32> to vector<4x16xf32>
    %c0_82 = arith.constant 0 : index
    %c1_83 = arith.constant 1 : index
    %c0_84 = arith.constant 0 : index
    %c1_85 = arith.constant 1 : index
    %c1_86 = arith.constant 1 : index
    %87 = vector.load %arg9[%c0_82, %c1_83, %c0_84, %c1_85, %c1_86] : memref<4x3x4x5x5xf32, #tpu.memory_space<vmem>>, vector<4x1x1x4x4xf32>
    %88 = vector.shape_cast %87 : vector<4x1x1x4x4xf32> to vector<4x4x4xf32>
    %89 = vector.shape_cast %88 : vector<4x4x4xf32> to vector<4x16xf32>
    %c0_87 = arith.constant 0 : index
    %c1_88 = arith.constant 1 : index
    %c1_89 = arith.constant 1 : index
    %c1_90 = arith.constant 1 : index
    %c1_91 = arith.constant 1 : index
    %90 = vector.load %arg9[%c0_87, %c1_88, %c1_89, %c1_90, %c1_91] : memref<4x3x4x5x5xf32, #tpu.memory_space<vmem>>, vector<4x1x1x4x4xf32>
    %91 = vector.shape_cast %90 : vector<4x1x1x4x4xf32> to vector<4x4x4xf32>
    %92 = vector.shape_cast %91 : vector<4x4x4xf32> to vector<4x16xf32>
    %c0_92 = arith.constant 0 : index
    %c1_93 = arith.constant 1 : index
    %c3_94 = arith.constant 3 : index
    %c1_95 = arith.constant 1 : index
    %c0_96 = arith.constant 0 : index
    %93 = vector.load %arg9[%c0_92, %c1_93, %c3_94, %c1_95, %c0_96] : memref<4x3x4x5x5xf32, #tpu.memory_space<vmem>>, vector<4x1x1x4x4xf32>
    %94 = vector.shape_cast %93 : vector<4x1x1x4x4xf32> to vector<4x4x4xf32>
    %95 = vector.shape_cast %94 : vector<4x4x4xf32> to vector<4x16xf32>
    %c0_97 = arith.constant 0 : index
    %c1_98 = arith.constant 1 : index
    %c2_99 = arith.constant 2 : index
    %c1_100 = arith.constant 1 : index
    %c1_101 = arith.constant 1 : index
    %96 = vector.load %arg9[%c0_97, %c1_98, %c2_99, %c1_100, %c1_101] : memref<4x3x4x5x5xf32, #tpu.memory_space<vmem>>, vector<4x1x1x4x4xf32>
    %97 = vector.shape_cast %96 : vector<4x1x1x4x4xf32> to vector<4x4x4xf32>
    %98 = vector.shape_cast %97 : vector<4x4x4xf32> to vector<4x16xf32>
    %c0_102 = arith.constant 0 : index
    %c1_103 = arith.constant 1 : index
    %c3_104 = arith.constant 3 : index
    %c1_105 = arith.constant 1 : index
    %c1_106 = arith.constant 1 : index
    %99 = vector.load %arg9[%c0_102, %c1_103, %c3_104, %c1_105, %c1_106] : memref<4x3x4x5x5xf32, #tpu.memory_space<vmem>>, vector<4x1x1x4x4xf32>
    %100 = vector.shape_cast %99 : vector<4x1x1x4x4xf32> to vector<4x4x4xf32>
    %101 = vector.shape_cast %100 : vector<4x4x4xf32> to vector<4x16xf32>
    %c0_107 = arith.constant 0 : index
    %c2_108 = arith.constant 2 : index
    %c3_109 = arith.constant 3 : index
    %c0_110 = arith.constant 0 : index
    %c0_111 = arith.constant 0 : index
    %102 = vector.load %arg9[%c0_107, %c2_108, %c3_109, %c0_110, %c0_111] : memref<4x3x4x5x5xf32, #tpu.memory_space<vmem>>, vector<4x1x1x4x4xf32>
    %103 = vector.shape_cast %102 : vector<4x1x1x4x4xf32> to vector<4x4x4xf32>
    %104 = vector.shape_cast %103 : vector<4x4x4xf32> to vector<4x16xf32>
    %c0_112 = arith.constant 0 : index
    %c2_113 = arith.constant 2 : index
    %c2_114 = arith.constant 2 : index
    %c0_115 = arith.constant 0 : index
    %c1_116 = arith.constant 1 : index
    %105 = vector.load %arg9[%c0_112, %c2_113, %c2_114, %c0_115, %c1_116] : memref<4x3x4x5x5xf32, #tpu.memory_space<vmem>>, vector<4x1x1x4x4xf32>
    %106 = vector.shape_cast %105 : vector<4x1x1x4x4xf32> to vector<4x4x4xf32>
    %107 = vector.shape_cast %106 : vector<4x4x4xf32> to vector<4x16xf32>
    %c0_117 = arith.constant 0 : index
    %c2_118 = arith.constant 2 : index
    %c3_119 = arith.constant 3 : index
    %c0_120 = arith.constant 0 : index
    %c1_121 = arith.constant 1 : index
    %108 = vector.load %arg9[%c0_117, %c2_118, %c3_119, %c0_120, %c1_121] : memref<4x3x4x5x5xf32, #tpu.memory_space<vmem>>, vector<4x1x1x4x4xf32>
    %109 = vector.shape_cast %108 : vector<4x1x1x4x4xf32> to vector<4x4x4xf32>
    %110 = vector.shape_cast %109 : vector<4x4x4xf32> to vector<4x16xf32>
    %c0_122 = arith.constant 0 : index
    %c2_123 = arith.constant 2 : index
    %c1_124 = arith.constant 1 : index
    %c1_125 = arith.constant 1 : index
    %c0_126 = arith.constant 0 : index
    %111 = vector.load %arg9[%c0_122, %c2_123, %c1_124, %c1_125, %c0_126] : memref<4x3x4x5x5xf32, #tpu.memory_space<vmem>>, vector<4x1x1x4x4xf32>
    %112 = vector.shape_cast %111 : vector<4x1x1x4x4xf32> to vector<4x4x4xf32>
    %113 = vector.shape_cast %112 : vector<4x4x4xf32> to vector<4x16xf32>
    %c0_127 = arith.constant 0 : index
    %c2_128 = arith.constant 2 : index
    %c0_129 = arith.constant 0 : index
    %c1_130 = arith.constant 1 : index
    %c1_131 = arith.constant 1 : index
    %114 = vector.load %arg9[%c0_127, %c2_128, %c0_129, %c1_130, %c1_131] : memref<4x3x4x5x5xf32, #tpu.memory_space<vmem>>, vector<4x1x1x4x4xf32>
    %115 = vector.shape_cast %114 : vector<4x1x1x4x4xf32> to vector<4x4x4xf32>
    %116 = vector.shape_cast %115 : vector<4x4x4xf32> to vector<4x16xf32>
    %c0_132 = arith.constant 0 : index
    %c2_133 = arith.constant 2 : index
    %c1_134 = arith.constant 1 : index
    %c1_135 = arith.constant 1 : index
    %c1_136 = arith.constant 1 : index
    %117 = vector.load %arg9[%c0_132, %c2_133, %c1_134, %c1_135, %c1_136] : memref<4x3x4x5x5xf32, #tpu.memory_space<vmem>>, vector<4x1x1x4x4xf32>
    %118 = vector.shape_cast %117 : vector<4x1x1x4x4xf32> to vector<4x4x4xf32>
    %119 = vector.shape_cast %118 : vector<4x4x4xf32> to vector<4x16xf32>
    %c0_137 = arith.constant 0 : index
    %c2_138 = arith.constant 2 : index
    %c3_139 = arith.constant 3 : index
    %c1_140 = arith.constant 1 : index
    %c0_141 = arith.constant 0 : index
    %120 = vector.load %arg9[%c0_137, %c2_138, %c3_139, %c1_140, %c0_141] : memref<4x3x4x5x5xf32, #tpu.memory_space<vmem>>, vector<4x1x1x4x4xf32>
    %121 = vector.shape_cast %120 : vector<4x1x1x4x4xf32> to vector<4x4x4xf32>
    %122 = vector.shape_cast %121 : vector<4x4x4xf32> to vector<4x16xf32>
    %c0_142 = arith.constant 0 : index
    %c2_143 = arith.constant 2 : index
    %c2_144 = arith.constant 2 : index
    %c1_145 = arith.constant 1 : index
    %c1_146 = arith.constant 1 : index
    %123 = vector.load %arg9[%c0_142, %c2_143, %c2_144, %c1_145, %c1_146] : memref<4x3x4x5x5xf32, #tpu.memory_space<vmem>>, vector<4x1x1x4x4xf32>
    %124 = vector.shape_cast %123 : vector<4x1x1x4x4xf32> to vector<4x4x4xf32>
    %125 = vector.shape_cast %124 : vector<4x4x4xf32> to vector<4x16xf32>
    %c0_147 = arith.constant 0 : index
    %c2_148 = arith.constant 2 : index
    %c3_149 = arith.constant 3 : index
    %c1_150 = arith.constant 1 : index
    %c1_151 = arith.constant 1 : index
    %126 = vector.load %arg9[%c0_147, %c2_148, %c3_149, %c1_150, %c1_151] : memref<4x3x4x5x5xf32, #tpu.memory_space<vmem>>, vector<4x1x1x4x4xf32>
    %127 = vector.shape_cast %126 : vector<4x1x1x4x4xf32> to vector<4x4x4xf32>
    %128 = vector.shape_cast %127 : vector<4x4x4xf32> to vector<4x16xf32>
    %129 = tpu.concatenate %50, %53, %56, %59, %62, %65, %68, %71, %74, %77, %80, %83, %86, %89, %92, %95 in 0 : vector<4x16xf32>, vector<4x16xf32>, vector<4x16xf32>, vector<4x16xf32>, vector<4x16xf32>, vector<4x16xf32>, vector<4x16xf32>, vector<4x16xf32>, vector<4x16xf32>, vector<4x16xf32>, vector<4x16xf32>, vector<4x16xf32>, vector<4x16xf32>, vector<4x16xf32>, vector<4x16xf32>, vector<4x16xf32> -> vector<64x16xf32>
    %130 = tpu.concatenate %98, %101, %104, %107, %110, %113, %116, %119, %122, %125, %128 in 0 : vector<4x16xf32>, vector<4x16xf32>, vector<4x16xf32>, vector<4x16xf32>, vector<4x16xf32>, vector<4x16xf32>, vector<4x16xf32>, vector<4x16xf32>, vector<4x16xf32>, vector<4x16xf32>, vector<4x16xf32> -> vector<44x16xf32>
    %131 = tpu.concatenate %129, %130 in 0 : vector<64x16xf32>, vector<44x16xf32> -> vector<108x16xf32>
    %cst_152 = arith.constant dense<0.000000e+00> : vector<4x16xf32>
    %132 = tpu.matmul %47, %131, %cst_152 {dimension_numbers = #tpu.dot_dimension_numbers<[1], [0], [0], [1], [0, 0, 1, 1], [], []>} : vector<4x108xf32>, vector<108x16xf32>, vector<4x16xf32> -> vector<4x16xf32>
    %c0_153 = arith.constant 0 : index
    %c0_154 = arith.constant 0 : index
    %133 = vector.load %arg7[%c0_153, %c0_154] : memref<4x1xf32, #tpu.memory_space<vmem>>, vector<4x1xf32>
    %134 = vector.broadcast %133 : vector<4x1xf32> to vector<4x16xf32>
    %135 = arith.addf %132, %134 : vector<4x16xf32>
    %c0_155 = arith.constant 0 : index
    %c0_156 = arith.constant 0 : index
    %c0_157 = arith.constant 0 : index
    %c0_158 = arith.constant 0 : index
    %136 = vector.load %arg8[%c0_155, %c0_156, %c0_157, %c0_158] : memref<1x1x8x16xf32, #tpu.memory_space<vmem>>, vector<1x1x4x16xf32>
    %137 = vector.shape_cast %136 : vector<1x1x4x16xf32> to vector<4x16xf32>
    %138 = vector.shape_cast %135 : vector<4x16xf32> to vector<1x1x4x16xf32>
    tpu.vector_store %arg8[%c0_155, %c0_156, %c0_157, %c0_158], %138 {strides = array<i32>} : memref<1x1x8x16xf32, #tpu.memory_space<vmem>>, vector<1x1x4x16xf32>,
    %c0_159 = arith.constant 0 : index
    %c0_160 = arith.constant 0 : index
    %c4 = arith.constant 4 : index
    %c0_161 = arith.constant 0 : index
    %139 = vector.load %arg8[%c0_159, %c0_160, %c4, %c0_161] : memref<1x1x8x16xf32, #tpu.memory_space<vmem>>, vector<1x1x4x16xf32>
    %140 = vector.shape_cast %139 : vector<1x1x4x16xf32> to vector<4x16xf32>
    %141 = vector.shape_cast %24 : vector<4x16xf32> to vector<1x1x4x16xf32>
    tpu.vector_store %arg8[%c0_159, %c0_160, %c4, %c0_161], %141 {strides = array<i32>} : memref<1x1x8x16xf32, #tpu.memory_space<vmem>>, vector<1x1x4x16xf32>,
    return
  }
  func.func @transform_0(%arg0: i32, %arg1: i32) -> (i32, i32, i32, i32, i32) {
    %c0_i32 = arith.constant 0 : i32
    %c0_i32_0 = arith.constant 0 : i32
    %c0_i32_1 = arith.constant 0 : i32
    %c0_i32_2 = arith.constant 0 : i32
    return %arg0, %arg1, %c0_i32, %c0_i32_0, %c0_i32_1 : i32, i32, i32, i32, i32
  }
  func.func @transform_1(%arg0: i32, %arg1: i32) -> (i32, i32) {
    %c0_i32 = arith.constant 0 : i32
    %c0_i32_0 = arith.constant 0 : i32
    %c0_i32_1 = arith.constant 0 : i32
    return %c0_i32, %c0_i32_0 : i32, i32
  }
  func.func @transform_2(%arg0: i32, %arg1: i32) -> (i32, i32) {
    %c0_i32 = arith.constant 0 : i32
    %c0_i32_0 = arith.constant 0 : i32
    %c0_i32_1 = arith.constant 0 : i32
    return %c0_i32, %c0_i32_0 : i32, i32
  }
  func.func @transform_3(%arg0: i32, %arg1: i32) -> (i32, i32) {
    %c0_i32 = arith.constant 0 : i32
    %c0_i32_0 = arith.constant 0 : i32
    %c0_i32_1 = arith.constant 0 : i32
    return %c0_i32, %c0_i32_0 : i32, i32
  }
  func.func @transform_4(%arg0: i32, %arg1: i32) -> (i32, i32) {
    %c0_i32 = arith.constant 0 : i32
    %c0_i32_0 = arith.constant 0 : i32
    %c0_i32_1 = arith.constant 0 : i32
    return %c0_i32, %c0_i32_0 : i32, i32
  }
  func.func @transform_5(%arg0: i32, %arg1: i32) -> (i32, i32) {
    %c0_i32 = arith.constant 0 : i32
    %c0_i32_0 = arith.constant 0 : i32
    %c0_i32_1 = arith.constant 0 : i32
    return %c0_i32, %c0_i32_0 : i32, i32
  }
  func.func @transform_6(%arg0: i32, %arg1: i32) -> (i32, i32, i32, i32) {
    %c0_i32 = arith.constant 0 : i32
    %c0_i32_0 = arith.constant 0 : i32
    %c0_i32_1 = arith.constant 0 : i32
    return %arg0, %arg1, %c0_i32, %c0_i32_0 : i32, i32, i32, i32
  }
}

</mosaic_0001>

<llo_original>
// kernel: variable_down_step_3d.2
$region0: #{variable_down_step_3d.2}
  #allocation0 [shape = 'u32[]', space=smem, size = 0x4, offset = 0x4, fixed_abs, tag = 'smem constant byte address 0x4 - core index']
  #allocation1 [shape = 'u32[144,128]{1,0:T(1,128)}', space=vmem, size = 0x12000, scoped, tag = 'internal scratch']
  %s0 = inlined_call_operand.vmem [shape: f32[8,8,64], index: 0, kind: input, shape index: {}]
  %s1 = inlined_call_operand.vmem [shape: f32[4,1], index: 1, kind: output, shape index: {0}]
  %s2 = inlined_call_operand.vmem [shape: f32[4,1], index: 2, kind: output, shape index: {1}]
  %3 = xla_tuple %s1, %s2
  %s4 = sld [smem:[#allocation0]]
  $region49: #{variable_down_step_3d.2} parent=0
    _
  %s6 = ssub.s32 1, %s4
  %s7 = scalar_select 0, %s6, %s4
  loop: start=0, step=1, limit=4
  $region2: #{variable_down_step_3d.2} parent=0 // loop_pre_header
    _
  $region3: #{variable_down_step_3d.2} parent=0 // loop_header
    %s9 = sphi 0, %s13
    %p10 = scmp.ge.s32.totalorder %s9, 4
    %s16 = sphi 0, %s28
    %s17 = sphi 0, %s24
    %s18 = sphi 0, %s16
    %s19 = sphi 0, %s17
    %s20 = sphi 0, %s18
    %s21 = sphi 0, %s19
    %s33 = sphi 0, %s35
    %s36 = sphi 0, %s33
    %s37 = sphi 0, %s36
    %s53 = sphi 0, %s37
    %s57 = sphi 0, %s57
    %s59 = sphi 0, %s57
    %s60 = sphi 0, %s59
    %s74 = sphi 0, %s60
    %s78 = sphi 0, %s78
    %s80 = sphi 0, %s78
    %s81 = sphi 0, %s80
    %s95 = sphi 0, %s81
  $region4: #{variable_down_step_3d.2} parent=0 // loop_header_branch
    %12 = sbr.rel (%p10) target = $region8
  $region5: #{variable_down_step_3d.2} parent=0 // loop_body
    %s14 = ssub.s32 %s9, 1
    %s15 = ssub.s32 %s9, 2
    %s22 = sadd.s32 1, %s17
    %p23 = scmp.ge.s32.totalorder %s22, 1
    %s24 = scalar_select %p23, 0, %s22
    %s25 = sadd.s32 1, %s16
    %s26 = scalar_select %p23, %s25, %s16
    %p27 = scmp.ge.s32.totalorder %s26, 2
    %s28 = scalar_select %p27, 0, %s26
    %s29 = ssub.s32 %s16, %s28
    %s30 = ssub.s32 %s17, %s24
    %s31 = sor.u32 %s29, %s30
    %p32 = scmp.eq.s32.totalorder %s31, 0
    %s34 = sadd.s32 %s33, 1
    %s35 = scalar_select %p32, %s33, %s34
    %p38 = pneg %p32
    %p39 = scmp.eq.s32.totalorder %s9, 1
    %p40 = por %p38, %p39
    %p41 = scmp.ne.s32.totalorder %s33, %s36
    %p42 = scmp.eq.s32.totalorder %s9, 0
    %p43 = por %p41, %p42
    %p44 = scmp.ne.s32.totalorder %s33, %s36
    %p45 = scmp.eq.s32.totalorder %s14, 1
    %p46 = por %p44, %p45
    %p47 = scmp.ne.s32.totalorder %s36, %s37
    %p48 = scmp.eq.s32.totalorder %s14, 0
    %p49 = por %p47, %p48
    %p50 = scmp.ne.s32.totalorder %s36, %s37
    %p51 = scmp.eq.s32.totalorder %s15, 1
    %p52 = por %p50, %p51
    %p54 = scmp.ne.s32.totalorder %s37, %s53
    %p55 = scmp.eq.s32.totalorder %s15, 0
    %p56 = por %p54, %p55
    %s58 = sadd.s32 %s57, 1
    %p61 = scmp.eq.s32.totalorder %s9, 1
    %p62 = scmp.ne.s32.totalorder %s57, %s59
    %p63 = scmp.eq.s32.totalorder %s9, 0
    %p64 = por %p62, %p63
    %p65 = scmp.ne.s32.totalorder %s57, %s59
    %p66 = scmp.eq.s32.totalorder %s14, 1
    %p67 = por %p65, %p66
    %p68 = scmp.ne.s32.totalorder %s59, %s60
    %p69 = scmp.eq.s32.totalorder %s14, 0
    %p70 = por %p68, %p69
    %p71 = scmp.ne.s32.totalorder %s59, %s60
    %p72 = scmp.eq.s32.totalorder %s15, 1
    %p73 = por %p71, %p72
    %p75 = scmp.ne.s32.totalorder %s60, %s74
    %p76 = scmp.eq.s32.totalorder %s15, 0
    %p77 = por %p75, %p76
    %s79 = sadd.s32 %s78, 1
    %p82 = scmp.eq.s32.totalorder %s9, 1
    %p83 = scmp.ne.s32.totalorder %s78, %s80
    %p84 = scmp.eq.s32.totalorder %s9, 0
    %p85 = por %p83, %p84
    %p86 = scmp.ne.s32.totalorder %s78, %s80
    %p87 = scmp.eq.s32.totalorder %s14, 1
    %p88 = por %p86, %p87
    %p89 = scmp.ne.s32.totalorder %s80, %s81
    %p90 = scmp.eq.s32.totalorder %s14, 0
    %p91 = por %p89, %p90
    %p92 = scmp.ne.s32.totalorder %s80, %s81
    %p93 = scmp.eq.s32.totalorder %s15, 1
    %p94 = por %p92, %p93
    %p96 = scmp.ne.s32.totalorder %s81, %s95
    %p97 = scmp.eq.s32.totalorder %s15, 0
    %p98 = por %p96, %p97
    %p99 = scmp.le.s32.totalorder 1, %s9
    %p100 = scmp.lt.s32.totalorder %s9, 3
    %p101 = pnand %p99, %p100
    %p102 = pneg %p101
    // Predicated region
    $region9: #{variable_down_step_3d.2} parent=5 // pred_check
      _
    $region10: #{variable_down_step_3d.2} parent=5 // pred_check_branch
      %104 = sbr.rel (%p101) target = $region12
    $region11: #{variable_down_step_3d.2} parent=5 // pred_region
      %s105 = ssub.s32 %s9, 1
    $region12: #{variable_down_step_3d.2} parent=5 // pred_fallthru
      _
    %p106 = scmp.lt.s32.totalorder %s9, 2
    // Predicated region
    $region13: #{variable_down_step_3d.2} parent=5 // pred_check
      %p107 = pneg %p106
    $region14: #{variable_down_step_3d.2} parent=5 // pred_check_branch
      %109 = sbr.rel (%p107) target = $region16
    $region15: #{variable_down_step_3d.2} parent=5 // pred_region
      // Predicated region
      $region17: #{variable_down_step_3d.2} parent=15 // pred_check
        %p110 = pneg %p43
      $region18: #{variable_down_step_3d.2} parent=15 // pred_check_branch
        %112 = sbr.rel (%p110) target = $region20
      $region19: #{variable_down_step_3d.2} parent=15 // pred_region
        %s113 = smul.u32 4, %s16
        %p114 = scmp.lt.s32.totalorder %s113, 7
        %s115 = scalar_select %p114, %s113, 7
        %p116 = scmp.lt.s32.totalorder %s17, 0
        %s117 = scalar_select %p116, %s17, 0
        %s118 = sadd.s32 %s117, %s115
        %s119 = smul.addr %s118, 8
        %s120 = scalar_lea.vmem %s0, %s119
        %s121 = smul.u32 4, %s16
      $region20: #{variable_down_step_3d.2} parent=15 // pred_fallthru
        _
    $region16: #{variable_down_step_3d.2} parent=5 // pred_fallthru
      _
    %p122 = scmp.le.s32.totalorder 1, %s9
    %p123 = scmp.lt.s32.totalorder %s9, 3
    %p124 = pnand %p122, %p123
    %p125 = pneg %p124
    // Predicated region
    $region21: #{variable_down_step_3d.2} parent=5 // pred_check
      _
    $region22: #{variable_down_step_3d.2} parent=5 // pred_check_branch
      %127 = sbr.rel (%p124) target = $region24
    $region23: #{variable_down_step_3d.2} parent=5 // pred_region
      %s128 = ssub.s32 %s9, 1
      %s129 = smul.u32 4, %s18
      %p130 = scmp.lt.s32.totalorder %s129, 7
      %s131 = scalar_select %p130, %s129, 7
      %p132 = scmp.lt.s32.totalorder %s19, 0
      %s133 = scalar_select %p132, %s19, 0
      %s134 = sadd.s32 %s133, %s131
      %s135 = smul.addr %s134, 8
      %s136 = scalar_lea.vmem %s0, %s135
      %p137 = pneg %p49
      %p138 = pneg %p46
      %p139 = pneg %p70
      %p140 = pneg %p67
      %p141 = pneg %p91
      %p142 = pneg %p88
      %s143 = smul.u32 4, %s18
      %p144 = scmp.lt.s32.totalorder %s143, 7
      %s145 = scalar_select %p144, %s143, 7
      %p146 = scmp.lt.s32.totalorder %s19, 0
      %s147 = scalar_select %p146, %s19, 0
      %s148 = sadd.s32 %s147, %s145
      %s149 = smul.addr %s148, 8
      %s150 = scalar_lea.vmem %s0, %s149
      %s151 = smul.u32 4, %s18
      %p152 = scmp.eq.s32.totalorder %s18, 0
      %p153 = scmp.eq.s32.totalorder %s19, 0
      %p154 = pnand %p152, %p153
      %p155 = pneg %p154
      // Predicated region
      $region25: #{variable_down_step_3d.2} parent=23 // pred_check
        _
      $region26: #{variable_down_step_3d.2} parent=23 // pred_check_branch
        %157 = sbr.rel (%p154) target = $region28
      $region27: #{variable_down_step_3d.2} parent=23 // pred_region
        %vm158 = vcmask 3072
        %159 = vst.msk [vmem:[%s1] sm:$0xf] %vm158, 0.0
        %160 = vst.msk [vmem:[%s2] sm:$0xf] %vm158, 0.0
      $region28: #{variable_down_step_3d.2} parent=23 // pred_fallthru
        _
      %v161 = vld [vmem:[%s150] sm:$0xff]
      %v162 = vld [vmem:[%s150 + $0x8] sm:$0xff]
      %v163 = vld [vmem:[%s150 + $0x10] sm:$0xff]
      %v164 = vld [vmem:[%s150 + $0x18] sm:$0xff]
      %vm165 = vcmask 523264
      %v166 = vsel %vm165, %v161, 0.0
      %v167 = vrot.slane %v166, 4
      %v168 = vadd.f32 %v166, %v167
      %v169 = vrot.slane %v168, 2
      %v170 = vadd.f32 %v168, %v169
      %v171 = vrot.slane %v170, 1
      %v172 = vadd.f32 %v170, %v171
      %v173 = vsel %vm165, %v162, 0.0
      %v174 = vrot.slane %v173, 4
      %v175 = vadd.f32 %v173, %v174
      %v176 = vrot.slane %v175, 2
      %v177 = vadd.f32 %v175, %v176
      %v178 = vrot.slane %v177, 1
      %v179 = vadd.f32 %v177, %v178
      %v180 = vsel %vm165, %v163, 0.0
      %v181 = vrot.slane %v180, 4
      %v182 = vadd.f32 %v180, %v181
      %v183 = vrot.slane %v182, 2
      %v184 = vadd.f32 %v182, %v183
      %v185 = vrot.slane %v184, 1
      %v186 = vadd.f32 %v184, %v185
      %v187 = vsel %vm165, %v164, 0.0
      %v188 = vrot.slane %v187, 4
      %v189 = vadd.f32 %v187, %v188
      %v190 = vrot.slane %v189, 2
      %v191 = vadd.f32 %v189, %v190
      %v192 = vrot.slane %v191, 1
      %v193 = vadd.f32 %v191, %v192
      %vm198 = vcmask 1041409
      %v199 = vsel %vm198, %v179, %v172
      %vm200 = vcmask 1042434
      %v201 = vsel %vm200, %v186, %v199
      %vm202 = vcmask 1043459
      %v203 = vsel %vm202, %v193, %v201
      %vm205 = vcmask 519168
      %v206 = vsel %vm205, %v203, 0.0
      %207 = vadd.xlane.f32.xlu0 %v206
      %v208 = vpop.xlane.xlu0 %207
      %v209 = vmul.f32 %v161, %v161
      %v210 = vmul.f32 %v162, %v162
      %v211 = vmul.f32 %v163, %v163
      %v212 = vmul.f32 %v164, %v164
      %v213 = vsel %vm165, %v209, 0.0
      %v214 = vrot.slane %v213, 4
      %v215 = vadd.f32 %v213, %v214
      %v216 = vrot.slane %v215, 2
      %v217 = vadd.f32 %v215, %v216
      %v218 = vrot.slane %v217, 1
      %v219 = vadd.f32 %v217, %v218
      %v220 = vsel %vm165, %v210, 0.0
      %v221 = vrot.slane %v220, 4
      %v222 = vadd.f32 %v220, %v221
      %v223 = vrot.slane %v222, 2
      %v224 = vadd.f32 %v222, %v223
      %v225 = vrot.slane %v224, 1
      %v226 = vadd.f32 %v224, %v225
      %v227 = vsel %vm165, %v211, 0.0
      %v228 = vrot.slane %v227, 4
      %v229 = vadd.f32 %v227, %v228
      %v230 = vrot.slane %v229, 2
      %v231 = vadd.f32 %v229, %v230
      %v232 = vrot.slane %v231, 1
      %v233 = vadd.f32 %v231, %v232
      %v234 = vsel %vm165, %v212, 0.0
      %v235 = vrot.slane %v234, 4
      %v236 = vadd.f32 %v234, %v235
      %v237 = vrot.slane %v236, 2
      %v238 = vadd.f32 %v236, %v237
      %v239 = vrot.slane %v238, 1
      %v240 = vadd.f32 %v238, %v239
      %v245 = vsel %vm198, %v226, %v219
      %v246 = vsel %vm200, %v233, %v245
      %v247 = vsel %vm202, %v240, %v246
      %v249 = vsel %vm205, %v247, 0.0
      %250 = vadd.xlane.f32.xlu0 %v249
      %v251 = vpop.xlane.xlu0 %250
      %v252 = vld [vmem:[%s1] sm:$0xf]
      %v253 = vadd.f32 %v252, %v208
      %vm254 = vcmask 3072
      %255 = vst.msk [vmem:[%s1] sm:$0xf] %vm254, %v253
      %v256 = vld [vmem:[%s2] sm:$0xf]
      %v257 = vadd.f32 %v256, %v251
      %258 = vst.msk [vmem:[%s2] sm:$0xf] %vm254, %v257
      // Predicated region
      $region29: #{variable_down_step_3d.2} parent=23 // pred_check
        %p259 = pneg %p67
      $region30: #{variable_down_step_3d.2} parent=23 // pred_check_branch
        %261 = sbr.rel (%p259) target = $region32
      $region31: #{variable_down_step_3d.2} parent=23 // pred_region
        _
      $region32: #{variable_down_step_3d.2} parent=23 // pred_fallthru
        _
      // Predicated region
      $region33: #{variable_down_step_3d.2} parent=23 // pred_check
        %p262 = pneg %p88
      $region34: #{variable_down_step_3d.2} parent=23 // pred_check_branch
        %264 = sbr.rel (%p262) target = $region36
      $region35: #{variable_down_step_3d.2} parent=23 // pred_region
        _
      $region36: #{variable_down_step_3d.2} parent=23 // pred_fallthru
        _
      // Predicated region
      $region37: #{variable_down_step_3d.2} parent=23 // pred_check
        %p265 = pneg %p67
      $region38: #{variable_down_step_3d.2} parent=23 // pred_check_branch
        %267 = sbr.rel (%p265) target = $region40
      $region39: #{variable_down_step_3d.2} parent=23 // pred_region
        _
      $region40: #{variable_down_step_3d.2} parent=23 // pred_fallthru
        _
      // Predicated region
      $region41: #{variable_down_step_3d.2} parent=23 // pred_check
        %p268 = pneg %p88
      $region42: #{variable_down_step_3d.2} parent=23 // pred_check_branch
        %270 = sbr.rel (%p268) target = $region44
      $region43: #{variable_down_step_3d.2} parent=23 // pred_region
        _
      $region44: #{variable_down_step_3d.2} parent=23 // pred_fallthru
        _
    $region24: #{variable_down_step_3d.2} parent=5 // pred_fallthru
      _
    %p271 = scmp.le.s32.totalorder 2, %s9
    // Predicated region
    $region45: #{variable_down_step_3d.2} parent=5 // pred_check
      %p272 = pneg %p271
    $region46: #{variable_down_step_3d.2} parent=5 // pred_check_branch
      %274 = sbr.rel (%p272) target = $region48
    $region47: #{variable_down_step_3d.2} parent=5 // pred_region
      %s275 = ssub.s32 %s9, 2
    $region48: #{variable_down_step_3d.2} parent=5 // pred_fallthru
      _
  $region6: #{variable_down_step_3d.2} parent=0 // loop_footer
    %s13 = sadd.s32 1, %s9
  $region7: #{variable_down_step_3d.2} parent=0 // loop_footer_branch
    %8 = sbr.rel target = $region3
  $region8: #{variable_down_step_3d.2} parent=0 // loop_exit
    _

// kernel: variable_down_step_3d.3
$region0: #{variable_down_step_3d.3}
  #allocation0 [shape = 'u32[]', space=smem, size = 0x4, offset = 0x4, fixed_abs, tag = 'smem constant byte address 0x4 - core index']
  #allocation1 [shape = 'u32[144,128]{1,0:T(1,128)}', space=vmem, size = 0x12000, scoped, tag = 'internal scratch']
  #allocation2 [shape = 'f32[4,3,4,5,5]{4,3,2,1,0:T(8,128)}', space=vmem, size = 0x30000, scoped, tag = 'scratch operand']
  %s0 = inlined_call_operand.vmem [shape: f32[8,8,4,4,4], index: 0, kind: input, shape index: {}]
  %s1 = inlined_call_operand.vmem [shape: f32[4,1], index: 1, kind: input, shape index: {}]
  %s2 = inlined_call_operand.vmem [shape: f32[4,1], index: 2, kind: input, shape index: {}]
  %s3 = inlined_call_operand.vmem [shape: f32[4,1], index: 3, kind: input, shape index: {}]
  %s4 = inlined_call_operand.vmem [shape: f32[4,108], index: 4, kind: input, shape index: {}]
  %s5 = inlined_call_operand.vmem [shape: f32[4,1], index: 5, kind: input, shape index: {}]
  %s6 = inlined_call_operand.vmem [shape: f32[2,4,8,16], index: 6, kind: output, shape index: {}]
  %s7 = sld [smem:[#allocation0]]
  $region106: #{variable_down_step_3d.3} parent=0
    _
  %s9 = ssub.s32 1, %s7
  %s10 = scalar_select 0, %s9, %s7
  $region1: #{variable_down_step_3d.3} parent=0
    #allocation3 [shape = 'u8[131072]{0}', space=vmem, size = 0x20000, scoped, tag = 'input window, operand 0']
    loop: start=0, step=1, limit=10
    $region2: #{variable_down_step_3d.3} parent=1 // loop_pre_header
      _
    $region3: #{variable_down_step_3d.3} parent=1 // loop_header
      %s12 = sphi 0, %s16
      %p13 = scmp.ge.s32.totalorder %s12, 10
      %s19 = sphi 0, %s31
      %s20 = sphi 0, %s27
      %s21 = sphi 0, %s19
      %s22 = sphi 0, %s20
      %s23 = sphi 0, %s21
      %s24 = sphi 0, %s22
      %s36 = sphi 0, %s38
      %s39 = sphi 0, %s36
      %s40 = sphi 0, %s39
      %s56 = sphi 0, %s40
      %s60 = sphi 0, %s60
      %s62 = sphi 0, %s60
      %s63 = sphi 0, %s62
      %s77 = sphi 0, %s63
      %s81 = sphi 0, %s81
      %s83 = sphi 0, %s81
      %s84 = sphi 0, %s83
      %s98 = sphi 0, %s84
      %s102 = sphi 0, %s102
      %s104 = sphi 0, %s102
      %s105 = sphi 0, %s104
      %s119 = sphi 0, %s105
      %s123 = sphi 0, %s123
      %s125 = sphi 0, %s123
      %s126 = sphi 0, %s125
      %s140 = sphi 0, %s126
      %s144 = sphi 0, %s144
      %s146 = sphi 0, %s144
      %s147 = sphi 0, %s146
      %s161 = sphi 0, %s147
      %s169 = sphi 0, %s171
      %s172 = sphi 0, %s169
      %s173 = sphi 0, %s172
      %s189 = sphi 0, %s173
    $region4: #{variable_down_step_3d.3} parent=1 // loop_header_branch
      %15 = sbr.rel (%p13) target = $region8
    $region5: #{variable_down_step_3d.3} parent=1 // loop_body
      %s17 = ssub.s32 %s12, 1
      %s18 = ssub.s32 %s12, 2
      %s25 = sadd.s32 1, %s20
      %p26 = scmp.ge.s32.totalorder %s25, 4
      %s27 = scalar_select %p26, 0, %s25
      %s28 = sadd.s32 1, %s19
      %s29 = scalar_select %p26, %s28, %s19
      %p30 = scmp.ge.s32.totalorder %s29, 2
      %s31 = scalar_select %p30, 0, %s29
      %s32 = ssub.s32 %s19, %s31
      %s33 = ssub.s32 %s20, %s27
      %s34 = sor.u32 %s32, %s33
      %p35 = scmp.eq.s32.totalorder %s34, 0
      %s37 = sadd.s32 %s36, 1
      %s38 = scalar_select %p35, %s36, %s37
      %p41 = pneg %p35
      %p42 = scmp.eq.s32.totalorder %s12, 7
      %p43 = por %p41, %p42
      %p44 = scmp.ne.s32.totalorder %s36, %s39
      %p45 = scmp.eq.s32.totalorder %s12, 0
      %p46 = por %p44, %p45
      %p47 = scmp.ne.s32.totalorder %s36, %s39
      %p48 = scmp.eq.s32.totalorder %s17, 7
      %p49 = por %p47, %p48
      %p50 = scmp.ne.s32.totalorder %s39, %s40
      %p51 = scmp.eq.s32.totalorder %s17, 0
      %p52 = por %p50, %p51
      %p53 = scmp.ne.s32.totalorder %s39, %s40
      %p54 = scmp.eq.s32.totalorder %s18, 7
      %p55 = por %p53, %p54
      %p57 = scmp.ne.s32.totalorder %s40, %s56
      %p58 = scmp.eq.s32.totalorder %s18, 0
      %p59 = por %p57, %p58
      %s61 = sadd.s32 %s60, 1
      %p64 = scmp.eq.s32.totalorder %s12, 7
      %p65 = scmp.ne.s32.totalorder %s60, %s62
      %p66 = scmp.eq.s32.totalorder %s12, 0
      %p67 = por %p65, %p66
      %p68 = scmp.ne.s32.totalorder %s60, %s62
      %p69 = scmp.eq.s32.totalorder %s17, 7
      %p70 = por %p68, %p69
      %p71 = scmp.ne.s32.totalorder %s62, %s63
      %p72 = scmp.eq.s32.totalorder %s17, 0
      %p73 = por %p71, %p72
      %p74 = scmp.ne.s32.totalorder %s62, %s63
      %p75 = scmp.eq.s32.totalorder %s18, 7
      %p76 = por %p74, %p75
      %p78 = scmp.ne.s32.totalorder %s63, %s77
      %p79 = scmp.eq.s32.totalorder %s18, 0
      %p80 = por %p78, %p79
      %s82 = sadd.s32 %s81, 1
      %p85 = scmp.eq.s32.totalorder %s12, 7
      %p86 = scmp.ne.s32.totalorder %s81, %s83
      %p87 = scmp.eq.s32.totalorder %s12, 0
      %p88 = por %p86, %p87
      %p89 = scmp.ne.s32.totalorder %s81, %s83
      %p90 = scmp.eq.s32.totalorder %s17, 7
      %p91 = por %p89, %p90
      %p92 = scmp.ne.s32.totalorder %s83, %s84
      %p93 = scmp.eq.s32.totalorder %s17, 0
      %p94 = por %p92, %p93
      %p95 = scmp.ne.s32.totalorder %s83, %s84
      %p96 = scmp.eq.s32.totalorder %s18, 7
      %p97 = por %p95, %p96
      %p99 = scmp.ne.s32.totalorder %s84, %s98
      %p100 = scmp.eq.s32.totalorder %s18, 0
      %p101 = por %p99, %p100
      %s103 = sadd.s32 %s102, 1
      %p106 = scmp.eq.s32.totalorder %s12, 7
      %p107 = scmp.ne.s32.totalorder %s102, %s104
      %p108 = scmp.eq.s32.totalorder %s12, 0
      %p109 = por %p107, %p108
      %p110 = scmp.ne.s32.totalorder %s102, %s104
      %p111 = scmp.eq.s32.totalorder %s17, 7
      %p112 = por %p110, %p111
      %p113 = scmp.ne.s32.totalorder %s104, %s105
      %p114 = scmp.eq.s32.totalorder %s17, 0
      %p115 = por %p113, %p114
      %p116 = scmp.ne.s32.totalorder %s104, %s105
      %p117 = scmp.eq.s32.totalorder %s18, 7
      %p118 = por %p116, %p117
      %p120 = scmp.ne.s32.totalorder %s105, %s119
      %p121 = scmp.eq.s32.totalorder %s18, 0
      %p122 = por %p120, %p121
      %s124 = sadd.s32 %s123, 1
      %p127 = scmp.eq.s32.totalorder %s12, 7
      %p128 = scmp.ne.s32.totalorder %s123, %s125
      %p129 = scmp.eq.s32.totalorder %s12, 0
      %p130 = por %p128, %p129
      %p131 = scmp.ne.s32.totalorder %s123, %s125
      %p132 = scmp.eq.s32.totalorder %s17, 7
      %p133 = por %p131, %p132
      %p134 = scmp.ne.s32.totalorder %s125, %s126
      %p135 = scmp.eq.s32.totalorder %s17, 0
      %p136 = por %p134, %p135
      %p137 = scmp.ne.s32.totalorder %s125, %s126
      %p138 = scmp.eq.s32.totalorder %s18, 7
      %p139 = por %p137, %p138
      %p141 = scmp.ne.s32.totalorder %s126, %s140
      %p142 = scmp.eq.s32.totalorder %s18, 0
      %p143 = por %p141, %p142
      %s145 = sadd.s32 %s144, 1
      %p148 = scmp.eq.s32.totalorder %s12, 7
      %p149 = scmp.ne.s32.totalorder %s144, %s146
      %p150 = scmp.eq.s32.totalorder %s12, 0
      %p151 = por %p149, %p150
      %p152 = scmp.ne.s32.totalorder %s144, %s146
      %p153 = scmp.eq.s32.totalorder %s17, 7
      %p154 = por %p152, %p153
      %p155 = scmp.ne.s32.totalorder %s146, %s147
      %p156 = scmp.eq.s32.totalorder %s17, 0
      %p157 = por %p155, %p156
      %p158 = scmp.ne.s32.totalorder %s146, %s147
      %p159 = scmp.eq.s32.totalorder %s18, 7
      %p160 = por %p158, %p159
      %p162 = scmp.ne.s32.totalorder %s147, %s161
      %p163 = scmp.eq.s32.totalorder %s18, 0
      %p164 = por %p162, %p163
      %s165 = ssub.s32 %s19, %s31
      %s166 = ssub.s32 %s20, %s27
      %s167 = sor.u32 %s165, %s166
      %p168 = scmp.eq.s32.totalorder %s167, 0
      %s170 = sadd.s32 %s169, 1
      %s171 = scalar_select %p168, %s169, %s170
      %p174 = pneg %p168
      %p175 = scmp.eq.s32.totalorder %s12, 7
      %p176 = por %p174, %p175
      %p177 = scmp.ne.s32.totalorder %s169, %s172
      %p178 = scmp.eq.s32.totalorder %s12, 0
      %p179 = por %p177, %p178
      %p180 = scmp.ne.s32.totalorder %s169, %s172
      %p181 = scmp.eq.s32.totalorder %s17, 7
      %p182 = por %p180, %p181
      %p183 = scmp.ne.s32.totalorder %s172, %s173
      %p184 = scmp.eq.s32.totalorder %s17, 0
      %p185 = por %p183, %p184
      %p186 = scmp.ne.s32.totalorder %s172, %s173
      %p187 = scmp.eq.s32.totalorder %s18, 7
      %p188 = por %p186, %p187
      %p190 = scmp.ne.s32.totalorder %s173, %s189
      %p191 = scmp.eq.s32.totalorder %s18, 0
      %p192 = por %p190, %p191
      %p193 = scmp.le.s32.totalorder 1, %s12
      %p194 = scmp.lt.s32.totalorder %s12, 9
      %p195 = pnand %p193, %p194
      %p196 = pneg %p195
      // Predicated region
      $region9: #{variable_down_step_3d.3} parent=5 // pred_check
        _
      $region10: #{variable_down_step_3d.3} parent=5 // pred_check_branch
        %198 = sbr.rel (%p195) target = $region12
      $region11: #{variable_down_step_3d.3} parent=5 // pred_region
        %s199 = ssub.s32 %s12, 1
        // Predicated region
        $region13: #{variable_down_step_3d.3} parent=11 // pred_check
          %p200 = pneg %p73
        $region14: #{variable_down_step_3d.3} parent=11 // pred_check_branch
          %202 = sbr.rel (%p200) target = $region16
        $region15: #{variable_down_step_3d.3} parent=11 // pred_region
          _
        $region16: #{variable_down_step_3d.3} parent=11 // pred_fallthru
          _
        // Predicated region
        $region17: #{variable_down_step_3d.3} parent=11 // pred_check
          %p203 = pneg %p94
        $region18: #{variable_down_step_3d.3} parent=11 // pred_check_branch
          %205 = sbr.rel (%p203) target = $region20
        $region19: #{variable_down_step_3d.3} parent=11 // pred_region
          _
        $region20: #{variable_down_step_3d.3} parent=11 // pred_fallthru
          _
        // Predicated region
        $region21: #{variable_down_step_3d.3} parent=11 // pred_check
          %p206 = pneg %p115
        $region22: #{variable_down_step_3d.3} parent=11 // pred_check_branch
          %208 = sbr.rel (%p206) target = $region24
        $region23: #{variable_down_step_3d.3} parent=11 // pred_region
          _
        $region24: #{variable_down_step_3d.3} parent=11 // pred_fallthru
          _
        // Predicated region
        $region25: #{variable_down_step_3d.3} parent=11 // pred_check
          %p209 = pneg %p136
        $region26: #{variable_down_step_3d.3} parent=11 // pred_check_branch
          %211 = sbr.rel (%p209) target = $region28
        $region27: #{variable_down_step_3d.3} parent=11 // pred_region
          _
        $region28: #{variable_down_step_3d.3} parent=11 // pred_fallthru
          _
        // Predicated region
        $region29: #{variable_down_step_3d.3} parent=11 // pred_check
          %p212 = pneg %p157
        $region30: #{variable_down_step_3d.3} parent=11 // pred_check_branch
          %214 = sbr.rel (%p212) target = $region32
        $region31: #{variable_down_step_3d.3} parent=11 // pred_region
          _
        $region32: #{variable_down_step_3d.3} parent=11 // pred_fallthru
          _
      $region12: #{variable_down_step_3d.3} parent=5 // pred_fallthru
        _
      %p215 = scmp.lt.s32.totalorder %s12, 8
      // Predicated region
      $region33: #{variable_down_step_3d.3} parent=5 // pred_check
        %p216 = pneg %p215
      $region34: #{variable_down_step_3d.3} parent=5 // pred_check_branch
        %218 = sbr.rel (%p216) target = $region36
      $region35: #{variable_down_step_3d.3} parent=5 // pred_region
        // Predicated region
        $region37: #{variable_down_step_3d.3} parent=35 // pred_check
          %p219 = pneg %p46
        $region38: #{variable_down_step_3d.3} parent=35 // pred_check_branch
          %221 = sbr.rel (%p219) target = $region40
        $region39: #{variable_down_step_3d.3} parent=35 // pred_region
          %s222 = sand.u32 %s36, 1
          %s223 = sand.u32 %s36, 1
          %s224 = smul.addr %s223, 128
          %s225 = scalar_lea.vmem [#allocation3], %s224
          %s226 = smul.u32 4, %s19
          %s227 = smul.u32 2, %s20
          %s228 = smul.addr %s227, 4
          %s229 = smul.addr %s226, 32
          %s230 = sadd.s32 %s228, %s229
          %s231 = smul.addr %s230, 4
          %s232 = scalar_lea.vmem %s0, %s231
          // Predicated region
          $region41: #{variable_down_step_3d.3} parent=39 // pred_check
            _
          $region42: #{variable_down_step_3d.3} parent=39 // pred_check_branch
            %234 = sbr.rel (0) target = $region44
          $region43: #{variable_down_step_3d.3} parent=39 // pred_region
            // Predicated region
            $region45: #{variable_down_step_3d.3} parent=43 // pred_check
              _
            $region46: #{variable_down_step_3d.3} parent=43 // pred_check_branch
              %236 = sbr.rel target = $region48
            $region47: #{variable_down_step_3d.3} parent=43 // pred_region
              // Predicated region
              $region60: #{variable_down_step_3d.3} parent=47 // pred_check
                _
              $region61: #{variable_down_step_3d.3} parent=47 // pred_check_branch
                %313 = sbr.rel (0) target = $region63
              $region62: #{variable_down_step_3d.3} parent=47 // pred_region
                loop: start=0, step=1, limit=1
                $region64: #{variable_down_step_3d.3} parent=62 // loop_pre_header
                  _
                $region65: #{variable_down_step_3d.3} parent=62 // loop_header
                  %s315 = sphi 0, %s319
                  %p316 = scmp.ge.s32.totalorder %s315, 1
                  %s320 = sphi %s232, %s232
                  %s321 = sphi %s225, %s225
                $region66: #{variable_down_step_3d.3} parent=62 // loop_header_branch
                  %318 = sbr.rel (%p316) target = $region70
                $region67: #{variable_down_step_3d.3} parent=62 // loop_body
                  _
                $region68: #{variable_down_step_3d.3} parent=62 // loop_footer
                  %s319 = sadd.s32 1, %s315
                $region69: #{variable_down_step_3d.3} parent=62 // loop_footer_branch
                  %314 = sbr.rel target = $region65
                $region70: #{variable_down_step_3d.3} parent=62 // loop_exit
                  _
                loop: start=0, step=1, limit=1
                $region71: #{variable_down_step_3d.3} parent=62 // loop_pre_header
                  _
                $region72: #{variable_down_step_3d.3} parent=62 // loop_header
                  %s324 = sphi 0, %s328
                  %p325 = scmp.ge.s32.totalorder %s324, 1
                  %s329 = sphi %s232, %s232
                  %s330 = sphi %s225, %s225
                $region73: #{variable_down_step_3d.3} parent=62 // loop_header_branch
                  %327 = sbr.rel (%p325) target = $region77
                $region74: #{variable_down_step_3d.3} parent=62 // loop_body
                  %v331 = vld [vmem:[%s329] sm:$0xf]
                  %332 = vst [vmem:[%s330] sm:$0xf] %v331
                  %v333 = vld [vmem:[%s329 + $0x4] sm:$0xf]
                  %334 = vst [vmem:[%s330 + $0x4] sm:$0xf] %v333
                  %v335 = vld [vmem:[%s329 + $0x8] sm:$0xf]
                  %336 = vst [vmem:[%s330 + $0x8] sm:$0xf] %v335
                  %v337 = vld [vmem:[%s329 + $0xc] sm:$0xf]
                  %338 = vst [vmem:[%s330 + $0xc] sm:$0xf] %v337
                  %v339 = vld [vmem:[%s329 + $0x10] sm:$0xf]
                  %340 = vst [vmem:[%s330 + $0x10] sm:$0xf] %v339
                  %v341 = vld [vmem:[%s329 + $0x14] sm:$0xf]
                  %342 = vst [vmem:[%s330 + $0x14] sm:$0xf] %v341
                  %v343 = vld [vmem:[%s329 + $0x18] sm:$0xf]
                  %344 = vst [vmem:[%s330 + $0x18] sm:$0xf] %v343
                  %v345 = vld [vmem:[%s329 + $0x1c] sm:$0xf]
                  %346 = vst [vmem:[%s330 + $0x1c] sm:$0xf] %v345
                  %v347 = vld [vmem:[%s329 + $0x80] sm:$0xf]
                  %348 = vst [vmem:[%s330 + $0x20] sm:$0xf] %v347
                  %v349 = vld [vmem:[%s329 + $0x84] sm:$0xf]
                  %350 = vst [vmem:[%s330 + $0x24] sm:$0xf] %v349
                  %v351 = vld [vmem:[%s329 + $0x88] sm:$0xf]
                  %352 = vst [vmem:[%s330 + $0x28] sm:$0xf] %v351
                  %v353 = vld [vmem:[%s329 + $0x8c] sm:$0xf]
                  %354 = vst [vmem:[%s330 + $0x2c] sm:$0xf] %v353
                  %v355 = vld [vmem:[%s329 + $0x90] sm:$0xf]
                  %356 = vst [vmem:[%s330 + $0x30] sm:$0xf] %v355
                  %v357 = vld [vmem:[%s329 + $0x94] sm:$0xf]
                  %358 = vst [vmem:[%s330 + $0x34] sm:$0xf] %v357
                  %v359 = vld [vmem:[%s329 + $0x98] sm:$0xf]
                  %360 = vst [vmem:[%s330 + $0x38] sm:$0xf] %v359
                  %v361 = vld [vmem:[%s329 + $0x9c] sm:$0xf]
                  %362 = vst [vmem:[%s330 + $0x3c] sm:$0xf] %v361
                  %v363 = vld [vmem:[%s329 + $0x100] sm:$0xf]
                  %364 = vst [vmem:[%s330 + $0x40] sm:$0xf] %v363
                  %v365 = vld [vmem:[%s329 + $0x104] sm:$0xf]
                  %366 = vst [vmem:[%s330 + $0x44] sm:$0xf] %v365
                  %v367 = vld [vmem:[%s329 + $0x108] sm:$0xf]
                  %368 = vst [vmem:[%s330 + $0x48] sm:$0xf] %v367
                  %v369 = vld [vmem:[%s329 + $0x10c] sm:$0xf]
                  %370 = vst [vmem:[%s330 + $0x4c] sm:$0xf] %v369
                  %v371 = vld [vmem:[%s329 + $0x110] sm:$0xf]
                  %372 = vst [vmem:[%s330 + $0x50] sm:$0xf] %v371
                  %v373 = vld [vmem:[%s329 + $0x114] sm:$0xf]
                  %374 = vst [vmem:[%s330 + $0x54] sm:$0xf] %v373
                  %v375 = vld [vmem:[%s329 + $0x118] sm:$0xf]
                  %376 = vst [vmem:[%s330 + $0x58] sm:$0xf] %v375
                  %v377 = vld [vmem:[%s329 + $0x11c] sm:$0xf]
                  %378 = vst [vmem:[%s330 + $0x5c] sm:$0xf] %v377
                  %v379 = vld [vmem:[%s329 + $0x180] sm:$0xf]
                  %380 = vst [vmem:[%s330 + $0x60] sm:$0xf] %v379
                  %v381 = vld [vmem:[%s329 + $0x184] sm:$0xf]
                  %382 = vst [vmem:[%s330 + $0x64] sm:$0xf] %v381
                  %v383 = vld [vmem:[%s329 + $0x188] sm:$0xf]
                  %384 = vst [vmem:[%s330 + $0x68] sm:$0xf] %v383
                  %v385 = vld [vmem:[%s329 + $0x18c] sm:$0xf]
                  %386 = vst [vmem:[%s330 + $0x6c] sm:$0xf] %v385
                  %v387 = vld [vmem:[%s329 + $0x190] sm:$0xf]
                  %388 = vst [vmem:[%s330 + $0x70] sm:$0xf] %v387
                  %v389 = vld [vmem:[%s329 + $0x194] sm:$0xf]
                  %390 = vst [vmem:[%s330 + $0x74] sm:$0xf] %v389
                  %v391 = vld [vmem:[%s329 + $0x198] sm:$0xf]
                  %392 = vst [vmem:[%s330 + $0x78] sm:$0xf] %v391
                  %v393 = vld [vmem:[%s329 + $0x19c] sm:$0xf]
                  %394 = vst [vmem:[%s330 + $0x7c] sm:$0xf] %v393
                $region75: #{variable_down_step_3d.3} parent=62 // loop_footer
                  %s328 = sadd.s32 1, %s324
                $region76: #{variable_down_step_3d.3} parent=62 // loop_footer_branch
                  %323 = sbr.rel target = $region72
                $region77: #{variable_down_step_3d.3} parent=62 // loop_exit
                  _
              $region63: #{variable_down_step_3d.3} parent=47 // pred_fallthru
                _
            $region48: #{variable_down_step_3d.3} parent=43 // pred_fallthru
              _
            // Predicated region
            $region49: #{variable_down_step_3d.3} parent=43 // pred_check
              _
            $region50: #{variable_down_step_3d.3} parent=43 // pred_check_branch
              %238 = sbr.rel (0) target = $region52
            $region51: #{variable_down_step_3d.3} parent=43 // pred_region
              loop: start=0, step=1, limit=1
              $region53: #{variable_down_step_3d.3} parent=51 // loop_pre_header
                _
              $region54: #{variable_down_step_3d.3} parent=51 // loop_header
                %s241 = sphi 0, %s245
                %p242 = scmp.ge.s32.totalorder %s241, 1
                %s246 = sphi %s232, %s232
                %s247 = sphi %s225, %s225
              $region55: #{variable_down_step_3d.3} parent=51 // loop_header_branch
                %244 = sbr.rel (%p242) target = $region59
              $region56: #{variable_down_step_3d.3} parent=51 // loop_body
                %v248 = vld [vmem:[%s246] sm:$0xf]
                %249 = vst [vmem:[%s247] sm:$0xf] %v248
                %v250 = vld [vmem:[%s246 + $0x4] sm:$0xf]
                %251 = vst [vmem:[%s247 + $0x4] sm:$0xf] %v250
                %v252 = vld [vmem:[%s246 + $0x8] sm:$0xf]
                %253 = vst [vmem:[%s247 + $0x8] sm:$0xf] %v252
                %v254 = vld [vmem:[%s246 + $0xc] sm:$0xf]
                %255 = vst [vmem:[%s247 + $0xc] sm:$0xf] %v254
                %v256 = vld [vmem:[%s246 + $0x10] sm:$0xf]
                %257 = vst [vmem:[%s247 + $0x10] sm:$0xf] %v256
                %v258 = vld [vmem:[%s246 + $0x14] sm:$0xf]
                %259 = vst [vmem:[%s247 + $0x14] sm:$0xf] %v258
                %v260 = vld [vmem:[%s246 + $0x18] sm:$0xf]
                %261 = vst [vmem:[%s247 + $0x18] sm:$0xf] %v260
                %v262 = vld [vmem:[%s246 + $0x1c] sm:$0xf]
                %263 = vst [vmem:[%s247 + $0x1c] sm:$0xf] %v262
                %v264 = vld [vmem:[%s246 + $0x80] sm:$0xf]
                %265 = vst [vmem:[%s247 + $0x20] sm:$0xf] %v264
                %v266 = vld [vmem:[%s246 + $0x84] sm:$0xf]
                %267 = vst [vmem:[%s247 + $0x24] sm:$0xf] %v266
                %v268 = vld [vmem:[%s246 + $0x88] sm:$0xf]
                %269 = vst [vmem:[%s247 + $0x28] sm:$0xf] %v268
                %v270 = vld [vmem:[%s246 + $0x8c] sm:$0xf]
                %271 = vst [vmem:[%s247 + $0x2c] sm:$0xf] %v270
                %v272 = vld [vmem:[%s246 + $0x90] sm:$0xf]
                %273 = vst [vmem:[%s247 + $0x30] sm:$0xf] %v272
                %v274 = vld [vmem:[%s246 + $0x94] sm:$0xf]
                %275 = vst [vmem:[%s247 + $0x34] sm:$0xf] %v274
                %v276 = vld [vmem:[%s246 + $0x98] sm:$0xf]
                %277 = vst [vmem:[%s247 + $0x38] sm:$0xf] %v276
                %v278 = vld [vmem:[%s246 + $0x9c] sm:$0xf]
                %279 = vst [vmem:[%s247 + $0x3c] sm:$0xf] %v278
                %v280 = vld [vmem:[%s246 + $0x100] sm:$0xf]
                %281 = vst [vmem:[%s247 + $0x40] sm:$0xf] %v280
                %v282 = vld [vmem:[%s246 + $0x104] sm:$0xf]
                %283 = vst [vmem:[%s247 + $0x44] sm:$0xf] %v282
                %v284 = vld [vmem:[%s246 + $0x108] sm:$0xf]
                %285 = vst [vmem:[%s247 + $0x48] sm:$0xf] %v284
                %v286 = vld [vmem:[%s246 + $0x10c] sm:$0xf]
                %287 = vst [vmem:[%s247 + $0x4c] sm:$0xf] %v286
                %v288 = vld [vmem:[%s246 + $0x110] sm:$0xf]
                %289 = vst [vmem:[%s247 + $0x50] sm:$0xf] %v288
                %v290 = vld [vmem:[%s246 + $0x114] sm:$0xf]
                %291 = vst [vmem:[%s247 + $0x54] sm:$0xf] %v290
                %v292 = vld [vmem:[%s246 + $0x118] sm:$0xf]
                %293 = vst [vmem:[%s247 + $0x58] sm:$0xf] %v292
                %v294 = vld [vmem:[%s246 + $0x11c] sm:$0xf]
                %295 = vst [vmem:[%s247 + $0x5c] sm:$0xf] %v294
                %v296 = vld [vmem:[%s246 + $0x180] sm:$0xf]
                %297 = vst [vmem:[%s247 + $0x60] sm:$0xf] %v296
                %v298 = vld [vmem:[%s246 + $0x184] sm:$0xf]
                %299 = vst [vmem:[%s247 + $0x64] sm:$0xf] %v298
                %v300 = vld [vmem:[%s246 + $0x188] sm:$0xf]
                %301 = vst [vmem:[%s247 + $0x68] sm:$0xf] %v300
                %v302 = vld [vmem:[%s246 + $0x18c] sm:$0xf]
                %303 = vst [vmem:[%s247 + $0x6c] sm:$0xf] %v302
                %v304 = vld [vmem:[%s246 + $0x190] sm:$0xf]
                %305 = vst [vmem:[%s247 + $0x70] sm:$0xf] %v304
                %v306 = vld [vmem:[%s246 + $0x194] sm:$0xf]
                %307 = vst [vmem:[%s247 + $0x74] sm:$0xf] %v306
                %v308 = vld [vmem:[%s246 + $0x198] sm:$0xf]
                %309 = vst [vmem:[%s247 + $0x78] sm:$0xf] %v308
                %v310 = vld [vmem:[%s246 + $0x19c] sm:$0xf]
                %311 = vst [vmem:[%s247 + $0x7c] sm:$0xf] %v310
              $region57: #{variable_down_step_3d.3} parent=51 // loop_footer
                %s245 = sadd.s32 1, %s241
              $region58: #{variable_down_step_3d.3} parent=51 // loop_footer_branch
                %240 = sbr.rel target = $region54
              $region59: #{variable_down_step_3d.3} parent=51 // loop_exit
                _
            $region52: #{variable_down_step_3d.3} parent=43 // pred_fallthru
              _
          $region44: #{variable_down_step_3d.3} parent=39 // pred_fallthru
            _
          %395 = vnop
        $region40: #{variable_down_step_3d.3} parent=35 // pred_fallthru
          _
      $region36: #{variable_down_step_3d.3} parent=5 // pred_fallthru
        _
      %p396 = scmp.le.s32.totalorder 1, %s12
      %p397 = scmp.lt.s32.totalorder %s12, 9
      %p398 = pnand %p396, %p397
      %p399 = pneg %p398
      // Predicated region
      $region78: #{variable_down_step_3d.3} parent=5 // pred_check
        _
      $region79: #{variable_down_step_3d.3} parent=5 // pred_check_branch
        %401 = sbr.rel (%p398) target = $region81
      $region80: #{variable_down_step_3d.3} parent=5 // pred_region
        %s402 = ssub.s32 %s12, 1
        %s403 = sand.u32 %s39, 1
        %s404 = sand.u32 %s39, 1
        %s405 = smul.addr %s404, 128
        %s406 = scalar_lea.vmem [#allocation3], %s405
        // Predicated region
        $region82: #{variable_down_step_3d.3} parent=80 // pred_check
          %p407 = pneg %p52
        $region83: #{variable_down_step_3d.3} parent=80 // pred_check_branch
          %409 = sbr.rel (%p407) target = $region85
        $region84: #{variable_down_step_3d.3} parent=80 // pred_region
          _
        $region85: #{variable_down_step_3d.3} parent=80 // pred_fallthru
          _
        %s410 = sand.u32 %s39, 1
        %s411 = sand.u32 %s39, 1
        %s412 = smul.addr %s411, 128
        %s413 = scalar_lea.vmem [#allocation3], %s412
        %p414 = pneg %p52
        %p415 = pneg %p49
        %p416 = pneg %p73
        %p417 = pneg %p70
        %p418 = pneg %p94
        %p419 = pneg %p91
        %p420 = pneg %p115
        %p421 = pneg %p112
        %p422 = pneg %p136
        %p423 = pneg %p133
        %p424 = pneg %p157
        %p425 = pneg %p154
        %p426 = pneg %p185
        %p427 = pneg %p182
        %p428 = scmp.lt.s32.totalorder %s21, 1
        %s429 = scalar_select %p428, %s21, 1
        %p430 = scmp.lt.s32.totalorder %s22, 3
        %s431 = scalar_select %p430, %s22, 3
        %s432 = smul.addr %s429, 4
        %s433 = sadd.s32 %s431, %s432
        %s434 = smul.addr %s433, 8
        %s435 = scalar_lea.vmem %s6, %s434
        %s436 = smul.u32 4, %s21
        %s437 = smul.u32 2, %s22
        %p438 = scmp.lt.s32.totalorder %s21, 1
        %s439 = scalar_select %p438, %s21, 1
        %p440 = scmp.lt.s32.totalorder %s22, 3
        %s441 = scalar_select %p440, %s22, 3
        %s442 = smul.addr %s439, 4
        %s443 = sadd.s32 %s441, %s442
        %s444 = smul.addr %s443, 8
        %s445 = scalar_lea.vmem %s6, %s444
        %v446 = vld [vmem:[%s406] sm:$0xf]
        %v447 = vld [vmem:[%s406 + $0x4] sm:$0xf]
        %v448 = vld [vmem:[%s406 + $0x8] sm:$0xf]
        %v449 = vld [vmem:[%s406 + $0xc] sm:$0xf]
        %v450 = vld [vmem:[%s406 + $0x10] sm:$0xf]
        %v451 = vld [vmem:[%s406 + $0x14] sm:$0xf]
        %v452 = vld [vmem:[%s406 + $0x18] sm:$0xf]
        %v453 = vld [vmem:[%s406 + $0x1c] sm:$0xf]
        %v454 = vld [vmem:[%s406 + $0x20] sm:$0xf]
        %v455 = vld [vmem:[%s406 + $0x24] sm:$0xf]
        %v456 = vld [vmem:[%s406 + $0x28] sm:$0xf]
        %v457 = vld [vmem:[%s406 + $0x2c] sm:$0xf]
        %v458 = vld [vmem:[%s406 + $0x30] sm:$0xf]
        %v459 = vld [vmem:[%s406 + $0x34] sm:$0xf]
        %v460 = vld [vmem:[%s406 + $0x38] sm:$0xf]
        %v461 = vld [vmem:[%s406 + $0x3c] sm:$0xf]
        %v462 = vld [vmem:[%s406 + $0x40] sm:$0xf]
        %v463 = vld [vmem:[%s406 + $0x44] sm:$0xf]
        %v464 = vld [vmem:[%s406 + $0x48] sm:$0xf]
        %v465 = vld [vmem:[%s406 + $0x4c] sm:$0xf]
        %v466 = vld [vmem:[%s406 + $0x50] sm:$0xf]
        %v467 = vld [vmem:[%s406 + $0x54] sm:$0xf]
        %v468 = vld [vmem:[%s406 + $0x58] sm:$0xf]
        %v469 = vld [vmem:[%s406 + $0x5c] sm:$0xf]
        %v470 = vld [vmem:[%s406 + $0x60] sm:$0xf]
        %v471 = vld [vmem:[%s406 + $0x64] sm:$0xf]
        %v472 = vld [vmem:[%s406 + $0x68] sm:$0xf]
        %v473 = vld [vmem:[%s406 + $0x6c] sm:$0xf]
        %v474 = vld [vmem:[%s406 + $0x70] sm:$0xf]
        %v475 = vld [vmem:[%s406 + $0x74] sm:$0xf]
        %v476 = vld [vmem:[%s406 + $0x78] sm:$0xf]
        %v477 = vld [vmem:[%s406 + $0x7c] sm:$0xf]
        %v478 = vmax.f32 %v446, %v447
        %v479 = vmax.f32 %v454, %v455
        %v480 = vmax.f32 %v462, %v463
        %v481 = vmax.f32 %v470, %v471
        %v482 = vmax.f32 %v478, %v448
        %v483 = vmax.f32 %v479, %v456
        %v484 = vmax.f32 %v480, %v464
        %v485 = vmax.f32 %v481, %v472
        %v486 = vmax.f32 %v482, %v449
        %v487 = vmax.f32 %v483, %v457
        %v488 = vmax.f32 %v484, %v465
        %v489 = vmax.f32 %v485, %v473
        %v490 = vmax.f32 %v486, %v450
        %v491 = vmax.f32 %v487, %v458
        %v492 = vmax.f32 %v488, %v466
        %v493 = vmax.f32 %v489, %v474
        %v494 = vmax.f32 %v490, %v451
        %v495 = vmax.f32 %v491, %v459
        %v496 = vmax.f32 %v492, %v467
        %v497 = vmax.f32 %v493, %v475
        %v498 = vmax.f32 %v494, %v452
        %v499 = vmax.f32 %v495, %v460
        %v500 = vmax.f32 %v496, %v468
        %v501 = vmax.f32 %v497, %v476
        %v502 = vmax.f32 %v498, %v453
        %v503 = vmax.f32 %v499, %v461
        %v504 = vmax.f32 %v500, %v469
        %v505 = vmax.f32 %v501, %v477
        %v506 = vld [vmem:[%s1] sm:$0xf]
        %v509 = vunpack.c.l.s4 1966171168
        %v510 = vunpack.c.0.s8 %v509
        %v511 = vlaneseq
        %v512 = vshrl.u32 %v511, 7
        %v513 = vsub.s32 %v510, %v512
        %v514 = vrot.slane %v506, %v513
        %v515 = vcombine.high %v514, %v514
        %v517 = vunpack.c.l.s4 1966171168
        %v518 = vunpack.c.0.s8 %v517
        %v519 = vlaneseq
        %v520 = vshrl.u32 %v519, 7
        %v521 = vsub.s32 %v518, %v520
        %v522 = vrot.slane %v514, %v521
        %v524 = vunpack.c.l.s4 1966171168
        %v525 = vunpack.c.0.s8 %v524
        %v526 = vlaneseq
        %v527 = vshrl.u32 %v526, 7
        %v528 = vsub.s32 %v525, %v527
        %v529 = vrot.slane %v515, %v528
        %v530 = vcombine.high %v522, %v522
        %v531 = vcombine.high %v529, %v529
        %v532 = vld [vmem:[%s2] sm:$0xf]
        %v535 = vunpack.c.l.s4 1966171168
        %v536 = vunpack.c.0.s8 %v535
        %v537 = vlaneseq
        %v538 = vshrl.u32 %v537, 7
        %v539 = vsub.s32 %v536, %v538
        %v540 = vrot.slane %v532, %v539
        %v541 = vcombine.high %v540, %v540
        %v543 = vunpack.c.l.s4 1966171168
        %v544 = vunpack.c.0.s8 %v543
        %v545 = vlaneseq
        %v546 = vshrl.u32 %v545, 7
        %v547 = vsub.s32 %v544, %v546
        %v548 = vrot.slane %v540, %v547
        %v550 = vunpack.c.l.s4 1966171168
        %v551 = vunpack.c.0.s8 %v550
        %v552 = vlaneseq
        %v553 = vshrl.u32 %v552, 7
        %v554 = vsub.s32 %v551, %v553
        %v555 = vrot.slane %v541, %v554
        %v556 = vcombine.high %v548, %v548
        %v557 = vcombine.high %v555, %v555
        %v558 = vld [vmem:[%s3] sm:$0xf]
        %v561 = vunpack.c.l.s4 1966171168
        %v562 = vunpack.c.0.s8 %v561
        %v563 = vlaneseq
        %v564 = vshrl.u32 %v563, 7
        %v565 = vsub.s32 %v562, %v564
        %v566 = vrot.slane %v558, %v565
        %v567 = vcombine.high %v566, %v566
        %v569 = vunpack.c.l.s4 1966171168
        %v570 = vunpack.c.0.s8 %v569
        %v571 = vlaneseq
        %v572 = vshrl.u32 %v571, 7
        %v573 = vsub.s32 %v570, %v572
        %v574 = vrot.slane %v566, %v573
        %v576 = vunpack.c.l.s4 1966171168
        %v577 = vunpack.c.0.s8 %v576
        %v578 = vlaneseq
        %v579 = vshrl.u32 %v578, 7
        %v580 = vsub.s32 %v577, %v579
        %v581 = vrot.slane %v567, %v580
        %v582 = vcombine.high %v574, %v574
        %v583 = vcombine.high %v581, %v581
        %v584 = vlaneseq
        %v585 = vshrl.u32 %v584, 7
        %v586 = vsub.s32 0, %v585
        %v587 = vrot.slane %v522, %v586
        %v588 = vlaneseq
        %v589 = vshrl.u32 %v588, 7
        %v590 = vsub.s32 0, %v589
        %v591 = vrot.slane %v529, %v590
        %v592 = vlaneseq
        %v593 = vshrl.u32 %v592, 7
        %v594 = vsub.s32 0, %v593
        %v595 = vrot.slane %v530, %v594
        %v596 = vlaneseq
        %v597 = vshrl.u32 %v596, 7
        %v598 = vsub.s32 0, %v597
        %v599 = vrot.slane %v531, %v598
        %600 = vset.pattern.permute.xlu0 0
        %601 = vperm.xlu0 %600, %v587
        %v602 = vpop.permute.xlu0 %601
        %604 = vset.pattern.permute.xlu0 0
        %605 = vperm.xlu0 %604, %v591
        %v606 = vpop.permute.xlu0 %605
        %608 = vset.pattern.permute.xlu0 0
        %609 = vperm.xlu0 %608, %v595
        %v610 = vpop.permute.xlu0 %609
        %612 = vset.pattern.permute.xlu0 0
        %613 = vperm.xlu0 %612, %v599
        %v614 = vpop.permute.xlu0 %613
        %v616 = vmul.f32 %v446, %v602
        %v617 = vmul.f32 %v447, %v602
        %v618 = vmul.f32 %v448, %v602
        %v619 = vmul.f32 %v449, %v602
        %v620 = vmul.f32 %v450, %v602
        %v621 = vmul.f32 %v451, %v602
        %v622 = vmul.f32 %v452, %v602
        %v623 = vmul.f32 %v453, %v602
        %v624 = vmul.f32 %v454, %v606
        %v625 = vmul.f32 %v455, %v606
        %v626 = vmul.f32 %v456, %v606
        %v627 = vmul.f32 %v457, %v606
        %v628 = vmul.f32 %v458, %v606
        %v629 = vmul.f32 %v459, %v606
        %v630 = vmul.f32 %v460, %v606
        %v631 = vmul.f32 %v461, %v606
        %v632 = vmul.f32 %v462, %v610
        %v633 = vmul.f32 %v463, %v610
        %v634 = vmul.f32 %v464, %v610
        %v635 = vmul.f32 %v465, %v610
        %v636 = vmul.f32 %v466, %v610
        %v637 = vmul.f32 %v467, %v610
        %v638 = vmul.f32 %v468, %v610
        %v639 = vmul.f32 %v469, %v610
        %v640 = vmul.f32 %v470, %v614
        %v641 = vmul.f32 %v471, %v614
        %v642 = vmul.f32 %v472, %v614
        %v643 = vmul.f32 %v473, %v614
        %v644 = vmul.f32 %v474, %v614
        %v645 = vmul.f32 %v475, %v614
        %v646 = vmul.f32 %v476, %v614
        %v647 = vmul.f32 %v477, %v614
        %v648 = vlaneseq
        %v649 = vshrl.u32 %v648, 7
        %v650 = vsub.s32 0, %v649
        %v651 = vrot.slane %v548, %v650
        %v652 = vlaneseq
        %v653 = vshrl.u32 %v652, 7
        %v654 = vsub.s32 0, %v653
        %v655 = vrot.slane %v555, %v654
        %v656 = vlaneseq
        %v657 = vshrl.u32 %v656, 7
        %v658 = vsub.s32 0, %v657
        %v659 = vrot.slane %v556, %v658
        %v660 = vlaneseq
        %v661 = vshrl.u32 %v660, 7
        %v662 = vsub.s32 0, %v661
        %v663 = vrot.slane %v557, %v662
        %664 = vset.pattern.permute.xlu0 0
        %665 = vperm.xlu0 %664, %v651
        %v666 = vpop.permute.xlu0 %665
        %668 = vset.pattern.permute.xlu0 0
        %669 = vperm.xlu0 %668, %v655
        %v670 = vpop.permute.xlu0 %669
        %672 = vset.pattern.permute.xlu0 0
        %673 = vperm.xlu0 %672, %v659
        %v674 = vpop.permute.xlu0 %673
        %676 = vset.pattern.permute.xlu0 0
        %677 = vperm.xlu0 %676, %v663
        %v678 = vpop.permute.xlu0 %677
        %v680 = vadd.f32 %v616, %v666
        %v681 = vadd.f32 %v617, %v666
        %v682 = vadd.f32 %v618, %v666
        %v683 = vadd.f32 %v619, %v666
        %v684 = vadd.f32 %v620, %v666
        %v685 = vadd.f32 %v621, %v666
        %v686 = vadd.f32 %v622, %v666
        %v687 = vadd.f32 %v623, %v666
        %v688 = vadd.f32 %v624, %v670
        %v689 = vadd.f32 %v625, %v670
        %v690 = vadd.f32 %v626, %v670
        %v691 = vadd.f32 %v627, %v670
        %v692 = vadd.f32 %v628, %v670
        %v693 = vadd.f32 %v629, %v670
        %v694 = vadd.f32 %v630, %v670
        %v695 = vadd.f32 %v631, %v670
        %v696 = vadd.f32 %v632, %v674
        %v697 = vadd.f32 %v633, %v674
        %v698 = vadd.f32 %v634, %v674
        %v699 = vadd.f32 %v635, %v674
        %v700 = vadd.f32 %v636, %v674
        %v701 = vadd.f32 %v637, %v674
        %v702 = vadd.f32 %v638, %v674
        %v703 = vadd.f32 %v639, %v674
        %v704 = vadd.f32 %v640, %v678
        %v705 = vadd.f32 %v641, %v678
        %v706 = vadd.f32 %v642, %v678
        %v707 = vadd.f32 %v643, %v678
        %v708 = vadd.f32 %v644, %v678
        %v709 = vadd.f32 %v645, %v678
        %v710 = vadd.f32 %v646, %v678
        %v711 = vadd.f32 %v647, %v678
        %vm712 = vcmp.gt.f32.partialorder %v680, 0.0
        %vm713 = vcmp.gt.f32.partialorder %v681, 0.0
        %vm714 = vcmp.gt.f32.partialorder %v682, 0.0
        %vm715 = vcmp.gt.f32.partialorder %v683, 0.0
        %vm716 = vcmp.gt.f32.partialorder %v684, 0.0
        %vm717 = vcmp.gt.f32.partialorder %v685, 0.0
        %vm718 = vcmp.gt.f32.partialorder %v686, 0.0
        %vm719 = vcmp.gt.f32.partialorder %v687, 0.0
        %vm720 = vcmp.gt.f32.partialorder %v688, 0.0
        %vm721 = vcmp.gt.f32.partialorder %v689, 0.0
        %vm722 = vcmp.gt.f32.partialorder %v690, 0.0
        %vm723 = vcmp.gt.f32.partialorder %v691, 0.0
        %vm724 = vcmp.gt.f32.partialorder %v692, 0.0
        %vm725 = vcmp.gt.f32.partialorder %v693, 0.0
        %vm726 = vcmp.gt.f32.partialorder %v694, 0.0
        %vm727 = vcmp.gt.f32.partialorder %v695, 0.0
        %vm728 = vcmp.gt.f32.partialorder %v696, 0.0
        %vm729 = vcmp.gt.f32.partialorder %v697, 0.0
        %vm730 = vcmp.gt.f32.partialorder %v698, 0.0
        %vm731 = vcmp.gt.f32.partialorder %v699, 0.0
        %vm732 = vcmp.gt.f32.partialorder %v700, 0.0
        %vm733 = vcmp.gt.f32.partialorder %v701, 0.0
        %vm734 = vcmp.gt.f32.partialorder %v702, 0.0
        %vm735 = vcmp.gt.f32.partialorder %v703, 0.0
        %vm736 = vcmp.gt.f32.partialorder %v704, 0.0
        %vm737 = vcmp.gt.f32.partialorder %v705, 0.0
        %vm738 = vcmp.gt.f32.partialorder %v706, 0.0
        %vm739 = vcmp.gt.f32.partialorder %v707, 0.0
        %vm740 = vcmp.gt.f32.partialorder %v708, 0.0
        %vm741 = vcmp.gt.f32.partialorder %v709, 0.0
        %vm742 = vcmp.gt.f32.partialorder %v710, 0.0
        %vm743 = vcmp.gt.f32.partialorder %v711, 0.0
        %v744 = vlaneseq
        %v745 = vshrl.u32 %v744, 7
        %v746 = vsub.s32 0, %v745
        %v747 = vrot.slane %v574, %v746
        %v748 = vlaneseq
        %v749 = vshrl.u32 %v748, 7
        %v750 = vsub.s32 0, %v749
        %v751 = vrot.slane %v581, %v750
        %v752 = vlaneseq
        %v753 = vshrl.u32 %v752, 7
        %v754 = vsub.s32 0, %v753
        %v755 = vrot.slane %v582, %v754
        %v756 = vlaneseq
        %v757 = vshrl.u32 %v756, 7
        %v758 = vsub.s32 0, %v757
        %v759 = vrot.slane %v583, %v758
        %760 = vset.pattern.permute.xlu0 0
        %761 = vperm.xlu0 %760, %v747
        %v762 = vpop.permute.xlu0 %761
        %764 = vset.pattern.permute.xlu0 0
        %765 = vperm.xlu0 %764, %v751
        %v766 = vpop.permute.xlu0 %765
        %768 = vset.pattern.permute.xlu0 0
        %769 = vperm.xlu0 %768, %v755
        %v770 = vpop.permute.xlu0 %769
        %772 = vset.pattern.permute.xlu0 0
        %773 = vperm.xlu0 %772, %v759
        %v774 = vpop.permute.xlu0 %773
        %v776 = vmul.f32 %v762, %v680
        %v777 = vmul.f32 %v762, %v681
        %v778 = vmul.f32 %v762, %v682
        %v779 = vmul.f32 %v762, %v683
        %v780 = vmul.f32 %v762, %v684
        %v781 = vmul.f32 %v762, %v685
        %v782 = vmul.f32 %v762, %v686
        %v783 = vmul.f32 %v762, %v687
        %v784 = vmul.f32 %v766, %v688
        %v785 = vmul.f32 %v766, %v689
        %v786 = vmul.f32 %v766, %v690
        %v787 = vmul.f32 %v766, %v691
        %v788 = vmul.f32 %v766, %v692
        %v789 = vmul.f32 %v766, %v693
        %v790 = vmul.f32 %v766, %v694
        %v791 = vmul.f32 %v766, %v695
        %v792 = vmul.f32 %v770, %v696
        %v793 = vmul.f32 %v770, %v697
        %v794 = vmul.f32 %v770, %v698
        %v795 = vmul.f32 %v770, %v699
        %v796 = vmul.f32 %v770, %v700
        %v797 = vmul.f32 %v770, %v701
        %v798 = vmul.f32 %v770, %v702
        %v799 = vmul.f32 %v770, %v703
        %v800 = vmul.f32 %v774, %v704
        %v801 = vmul.f32 %v774, %v705
        %v802 = vmul.f32 %v774, %v706
        %v803 = vmul.f32 %v774, %v707
        %v804 = vmul.f32 %v774, %v708
        %v805 = vmul.f32 %v774, %v709
        %v806 = vmul.f32 %v774, %v710
        %v807 = vmul.f32 %v774, %v711
        %v808 = vsel %vm712, %v680, %v776
        %v809 = vsel %vm713, %v681, %v777
        %v810 = vsel %vm714, %v682, %v778
        %v811 = vsel %vm715, %v683, %v779
        %v812 = vsel %vm716, %v684, %v780
        %v813 = vsel %vm717, %v685, %v781
        %v814 = vsel %vm718, %v686, %v782
        %v815 = vsel %vm719, %v687, %v783
        %v816 = vsel %vm720, %v688, %v784
        %v817 = vsel %vm721, %v689, %v785
        %v818 = vsel %vm722, %v690, %v786
        %v819 = vsel %vm723, %v691, %v787
        %v820 = vsel %vm724, %v692, %v788
        %v821 = vsel %vm725, %v693, %v789
        %v822 = vsel %vm726, %v694, %v790
        %v823 = vsel %vm727, %v695, %v791
        %v824 = vsel %vm728, %v696, %v792
        %v825 = vsel %vm729, %v697, %v793
        %v826 = vsel %vm730, %v698, %v794
        %v827 = vsel %vm731, %v699, %v795
        %v828 = vsel %vm732, %v700, %v796
        %v829 = vsel %vm733, %v701, %v797
        %v830 = vsel %vm734, %v702, %v798
        %v831 = vsel %vm735, %v703, %v799
        %v832 = vsel %vm736, %v704, %v800
        %v833 = vsel %vm737, %v705, %v801
        %v834 = vsel %vm738, %v706, %v802
        %v835 = vsel %vm739, %v707, %v803
        %v836 = vsel %vm740, %v708, %v804
        %v837 = vsel %vm741, %v709, %v805
        %v838 = vsel %vm742, %v710, %v806
        %v839 = vsel %vm743, %v711, %v807
        %p840 = scmp.eq.s32.totalorder %s22, 0
        // Predicated region
        $region86: #{variable_down_step_3d.3} parent=80 // pred_check
          %p841 = pneg %p840
        $region87: #{variable_down_step_3d.3} parent=80 // pred_check_branch
          %843 = sbr.rel (%p841) target = $region89
        $region88: #{variable_down_step_3d.3} parent=80 // pred_region
          %vm844 = vcmask 36864
          %845 = vst.msk [vmem:[#allocation2] sm:$0x1f] %vm844, 0.0
          %846 = vst.msk [vmem:[#allocation2 + $0x8] sm:$0x1f] %vm844, 0.0
          %847 = vst.msk [vmem:[#allocation2 + $0x10] sm:$0x1f] %vm844, 0.0
          %848 = vst.msk [vmem:[#allocation2 + $0x18] sm:$0x1f] %vm844, 0.0
          %849 = vst.msk [vmem:[#allocation2 + $0x20] sm:$0x1f] %vm844, 0.0
          %850 = vst.msk [vmem:[#allocation2 + $0x28] sm:$0x1f] %vm844, 0.0
          %851 = vst.msk [vmem:[#allocation2 + $0x30] sm:$0x1f] %vm844, 0.0
          %852 = vst.msk [vmem:[#allocation2 + $0x38] sm:$0x1f] %vm844, 0.0
          %853 = vst.msk [vmem:[#allocation2 + $0x40] sm:$0x1f] %vm844, 0.0
          %854 = vst.msk [vmem:[#allocation2 + $0x48] sm:$0x1f] %vm844, 0.0
          %855 = vst.msk [vmem:[#allocation2 + $0x50] sm:$0x1f] %vm844, 0.0
          %856 = vst.msk [vmem:[#allocation2 + $0x58] sm:$0x1f] %vm844, 0.0
          %857 = vst.msk [vmem:[#allocation2 + $0x60] sm:$0x1f] %vm844, 0.0
          %858 = vst.msk [vmem:[#allocation2 + $0x68] sm:$0x1f] %vm844, 0.0
          %859 = vst.msk [vmem:[#allocation2 + $0x70] sm:$0x1f] %vm844, 0.0
          %860 = vst.msk [vmem:[#allocation2 + $0x78] sm:$0x1f] %vm844, 0.0
          %861 = vst.msk [vmem:[#allocation2 + $0x80] sm:$0x1f] %vm844, 0.0
          %862 = vst.msk [vmem:[#allocation2 + $0x88] sm:$0x1f] %vm844, 0.0
          %863 = vst.msk [vmem:[#allocation2 + $0x90] sm:$0x1f] %vm844, 0.0
          %864 = vst.msk [vmem:[#allocation2 + $0x98] sm:$0x1f] %vm844, 0.0
          %865 = vst.msk [vmem:[#allocation2 + $0xa0] sm:$0x1f] %vm844, 0.0
          %866 = vst.msk [vmem:[#allocation2 + $0xa8] sm:$0x1f] %vm844, 0.0
          %867 = vst.msk [vmem:[#allocation2 + $0xb0] sm:$0x1f] %vm844, 0.0
          %868 = vst.msk [vmem:[#allocation2 + $0xb8] sm:$0x1f] %vm844, 0.0
          %869 = vst.msk [vmem:[#allocation2 + $0xc0] sm:$0x1f] %vm844, 0.0
          %870 = vst.msk [vmem:[#allocation2 + $0xc8] sm:$0x1f] %vm844, 0.0
          %871 = vst.msk [vmem:[#allocation2 + $0xd0] sm:$0x1f] %vm844, 0.0
          %872 = vst.msk [vmem:[#allocation2 + $0xd8] sm:$0x1f] %vm844, 0.0
          %873 = vst.msk [vmem:[#allocation2 + $0xe0] sm:$0x1f] %vm844, 0.0
          %874 = vst.msk [vmem:[#allocation2 + $0xe8] sm:$0x1f] %vm844, 0.0
          %875 = vst.msk [vmem:[#allocation2 + $0xf0] sm:$0x1f] %vm844, 0.0
          %876 = vst.msk [vmem:[#allocation2 + $0xf8] sm:$0x1f] %vm844, 0.0
          %877 = vst.msk [vmem:[#allocation2 + $0x100] sm:$0x1f] %vm844, 0.0
          %878 = vst.msk [vmem:[#allocation2 + $0x108] sm:$0x1f] %vm844, 0.0
          %879 = vst.msk [vmem:[#allocation2 + $0x110] sm:$0x1f] %vm844, 0.0
          %880 = vst.msk [vmem:[#allocation2 + $0x118] sm:$0x1f] %vm844, 0.0
          %881 = vst.msk [vmem:[#allocation2 + $0x120] sm:$0x1f] %vm844, 0.0
          %882 = vst.msk [vmem:[#allocation2 + $0x128] sm:$0x1f] %vm844, 0.0
          %883 = vst.msk [vmem:[#allocation2 + $0x130] sm:$0x1f] %vm844, 0.0
          %884 = vst.msk [vmem:[#allocation2 + $0x138] sm:$0x1f] %vm844, 0.0
          %885 = vst.msk [vmem:[#allocation2 + $0x140] sm:$0x1f] %vm844, 0.0
          %886 = vst.msk [vmem:[#allocation2 + $0x148] sm:$0x1f] %vm844, 0.0
          %887 = vst.msk [vmem:[#allocation2 + $0x150] sm:$0x1f] %vm844, 0.0
          %888 = vst.msk [vmem:[#allocation2 + $0x158] sm:$0x1f] %vm844, 0.0
          %889 = vst.msk [vmem:[#allocation2 + $0x160] sm:$0x1f] %vm844, 0.0
          %890 = vst.msk [vmem:[#allocation2 + $0x168] sm:$0x1f] %vm844, 0.0
          %891 = vst.msk [vmem:[#allocation2 + $0x170] sm:$0x1f] %vm844, 0.0
          %892 = vst.msk [vmem:[#allocation2 + $0x178] sm:$0x1f] %vm844, 0.0
        $region89: #{variable_down_step_3d.3} parent=80 // pred_fallthru
          _
        %p893 = scmp.gt.s32.totalorder %s22, 0
        // Predicated region
        $region90: #{variable_down_step_3d.3} parent=80 // pred_check
          %p894 = pneg %p893
        $region91: #{variable_down_step_3d.3} parent=80 // pred_check_branch
          %896 = sbr.rel (%p894) target = $region93
        $region92: #{variable_down_step_3d.3} parent=80 // pred_region
          %s897 = scalar_lea.vmem [#allocation2], 64
          %v898 = vld [vmem:[%s897] sm:$0x1f]
          %v899 = vld [vmem:[%s897 + $0x8] sm:$0x1f]
          %v900 = vld [vmem:[%s897 + $0x10] sm:$0x1f]
          %v901 = vld [vmem:[%s897 + $0x18] sm:$0x1f]
          %v902 = vld [vmem:[%s897 + $0x60] sm:$0x1f]
          %v903 = vld [vmem:[%s897 + $0x68] sm:$0x1f]
          %v904 = vld [vmem:[%s897 + $0x70] sm:$0x1f]
          %v905 = vld [vmem:[%s897 + $0x78] sm:$0x1f]
          %v906 = vld [vmem:[%s897 + $0xc0] sm:$0x1f]
          %v907 = vld [vmem:[%s897 + $0xc8] sm:$0x1f]
          %v908 = vld [vmem:[%s897 + $0xd0] sm:$0x1f]
          %v909 = vld [vmem:[%s897 + $0xd8] sm:$0x1f]
          %v910 = vld [vmem:[%s897 + $0x120] sm:$0x1f]
          %v911 = vld [vmem:[%s897 + $0x128] sm:$0x1f]
          %v912 = vld [vmem:[%s897 + $0x130] sm:$0x1f]
          %v913 = vld [vmem:[%s897 + $0x138] sm:$0x1f]
          %vm914 = vcmask 36864
          %915 = vst.msk [vmem:[#allocation2] sm:$0x1f] %vm914, %v898
          %916 = vst.msk [vmem:[#allocation2 + $0x8] sm:$0x1f] %vm914, %v899
          %917 = vst.msk [vmem:[#allocation2 + $0x10] sm:$0x1f] %vm914, %v900
          %918 = vst.msk [vmem:[#allocation2 + $0x18] sm:$0x1f] %vm914, %v901
          %919 = vst.msk [vmem:[#allocation2 + $0x60] sm:$0x1f] %vm914, %v902
          %920 = vst.msk [vmem:[#allocation2 + $0x68] sm:$0x1f] %vm914, %v903
          %921 = vst.msk [vmem:[#allocation2 + $0x70] sm:$0x1f] %vm914, %v904
          %922 = vst.msk [vmem:[#allocation2 + $0x78] sm:$0x1f] %vm914, %v905
          %923 = vst.msk [vmem:[#allocation2 + $0xc0] sm:$0x1f] %vm914, %v906
          %924 = vst.msk [vmem:[#allocation2 + $0xc8] sm:$0x1f] %vm914, %v907
          %925 = vst.msk [vmem:[#allocation2 + $0xd0] sm:$0x1f] %vm914, %v908
          %926 = vst.msk [vmem:[#allocation2 + $0xd8] sm:$0x1f] %vm914, %v909
          %927 = vst.msk [vmem:[#allocation2 + $0x120] sm:$0x1f] %vm914, %v910
          %928 = vst.msk [vmem:[#allocation2 + $0x128] sm:$0x1f] %vm914, %v911
          %929 = vst.msk [vmem:[#allocation2 + $0x130] sm:$0x1f] %vm914, %v912
          %930 = vst.msk [vmem:[#allocation2 + $0x138] sm:$0x1f] %vm914, %v913
        $region93: #{variable_down_step_3d.3} parent=80 // pred_fallthru
          _
        %963 = vrot.lane.b32.xlu0 %v808, 1
        %v964 = vpop.permute.xlu0 %963
        %965 = vrot.lane.b32.xlu0 %v809, 1
        %v966 = vpop.permute.xlu0 %965
        %967 = vrot.lane.b32.xlu0 %v810, 1
        %v968 = vpop.permute.xlu0 %967
        %969 = vrot.lane.b32.xlu0 %v811, 1
        %v970 = vpop.permute.xlu0 %969
        %971 = vrot.lane.b32.xlu0 %v812, 1
        %v972 = vpop.permute.xlu0 %971
        %973 = vrot.lane.b32.xlu0 %v813, 1
        %v974 = vpop.permute.xlu0 %973
        %975 = vrot.lane.b32.xlu0 %v814, 1
        %v976 = vpop.permute.xlu0 %975
        %977 = vrot.lane.b32.xlu0 %v815, 1
        %v978 = vpop.permute.xlu0 %977
        %979 = vrot.lane.b32.xlu0 %v816, 1
        %v980 = vpop.permute.xlu0 %979
        %981 = vrot.lane.b32.xlu0 %v817, 1
        %v982 = vpop.permute.xlu0 %981
        %983 = vrot.lane.b32.xlu0 %v818, 1
        %v984 = vpop.permute.xlu0 %983
        %985 = vrot.lane.b32.xlu0 %v819, 1
        %v986 = vpop.permute.xlu0 %985
        %987 = vrot.lane.b32.xlu0 %v820, 1
        %v988 = vpop.permute.xlu0 %987
        %989 = vrot.lane.b32.xlu0 %v821, 1
        %v990 = vpop.permute.xlu0 %989
        %991 = vrot.lane.b32.xlu0 %v822, 1
        %v992 = vpop.permute.xlu0 %991
        %993 = vrot.lane.b32.xlu0 %v823, 1
        %v994 = vpop.permute.xlu0 %993
        %995 = vrot.lane.b32.xlu0 %v824, 1
        %v996 = vpop.permute.xlu0 %995
        %997 = vrot.lane.b32.xlu0 %v825, 1
        %v998 = vpop.permute.xlu0 %997
        %999 = vrot.lane.b32.xlu0 %v826, 1
        %v1000 = vpop.permute.xlu0 %999
        %1001 = vrot.lane.b32.xlu0 %v827, 1
        %v1002 = vpop.permute.xlu0 %1001
        %1003 = vrot.lane.b32.xlu0 %v828, 1
        %v1004 = vpop.permute.xlu0 %1003
        %1005 = vrot.lane.b32.xlu0 %v829, 1
        %v1006 = vpop.permute.xlu0 %1005
        %1007 = vrot.lane.b32.xlu0 %v830, 1
        %v1008 = vpop.permute.xlu0 %1007
        %1009 = vrot.lane.b32.xlu0 %v831, 1
        %v1010 = vpop.permute.xlu0 %1009
        %1011 = vrot.lane.b32.xlu0 %v832, 1
        %v1012 = vpop.permute.xlu0 %1011
        %1013 = vrot.lane.b32.xlu0 %v833, 1
        %v1014 = vpop.permute.xlu0 %1013
        %1015 = vrot.lane.b32.xlu0 %v834, 1
        %v1016 = vpop.permute.xlu0 %1015
        %1017 = vrot.lane.b32.xlu0 %v835, 1
        %v1018 = vpop.permute.xlu0 %1017
        %1019 = vrot.lane.b32.xlu0 %v836, 1
        %v1020 = vpop.permute.xlu0 %1019
        %1021 = vrot.lane.b32.xlu0 %v837, 1
        %v1022 = vpop.permute.xlu0 %1021
        %1023 = vrot.lane.b32.xlu0 %v838, 1
        %v1024 = vpop.permute.xlu0 %1023
        %1025 = vrot.lane.b32.xlu0 %v839, 1
        %v1026 = vpop.permute.xlu0 %1025
        %s1059 = scalar_lea.vmem [#allocation2], 32
        %vm1060 = vcmask 35848
        %1061 = vst.msk [vmem:[%s1059 + $0x1] sm:$0xf] %vm1060, %v964
        %1062 = vst.msk [vmem:[%s1059 + $0x9] sm:$0xf] %vm1060, %v966
        %1063 = vst.msk [vmem:[%s1059 + $0x11] sm:$0xf] %vm1060, %v968
        %1064 = vst.msk [vmem:[%s1059 + $0x19] sm:$0xf] %vm1060, %v970
        %1065 = vst.msk [vmem:[%s1059 + $0x21] sm:$0xf] %vm1060, %v972
        %1066 = vst.msk [vmem:[%s1059 + $0x29] sm:$0xf] %vm1060, %v974
        %1067 = vst.msk [vmem:[%s1059 + $0x31] sm:$0xf] %vm1060, %v976
        %1068 = vst.msk [vmem:[%s1059 + $0x39] sm:$0xf] %vm1060, %v978
        %1069 = vst.msk [vmem:[%s1059 + $0x61] sm:$0xf] %vm1060, %v980
        %1070 = vst.msk [vmem:[%s1059 + $0x69] sm:$0xf] %vm1060, %v982
        %1071 = vst.msk [vmem:[%s1059 + $0x71] sm:$0xf] %vm1060, %v984
        %1072 = vst.msk [vmem:[%s1059 + $0x79] sm:$0xf] %vm1060, %v986
        %1073 = vst.msk [vmem:[%s1059 + $0x81] sm:$0xf] %vm1060, %v988
        %1074 = vst.msk [vmem:[%s1059 + $0x89] sm:$0xf] %vm1060, %v990
        %1075 = vst.msk [vmem:[%s1059 + $0x91] sm:$0xf] %vm1060, %v992
        %1076 = vst.msk [vmem:[%s1059 + $0x99] sm:$0xf] %vm1060, %v994
        %1077 = vst.msk [vmem:[%s1059 + $0xc1] sm:$0xf] %vm1060, %v996
        %1078 = vst.msk [vmem:[%s1059 + $0xc9] sm:$0xf] %vm1060, %v998
        %1079 = vst.msk [vmem:[%s1059 + $0xd1] sm:$0xf] %vm1060, %v1000
        %1080 = vst.msk [vmem:[%s1059 + $0xd9] sm:$0xf] %vm1060, %v1002
        %1081 = vst.msk [vmem:[%s1059 + $0xe1] sm:$0xf] %vm1060, %v1004
        %1082 = vst.msk [vmem:[%s1059 + $0xe9] sm:$0xf] %vm1060, %v1006
        %1083 = vst.msk [vmem:[%s1059 + $0xf1] sm:$0xf] %vm1060, %v1008
        %1084 = vst.msk [vmem:[%s1059 + $0xf9] sm:$0xf] %vm1060, %v1010
        %1085 = vst.msk [vmem:[%s1059 + $0x121] sm:$0xf] %vm1060, %v1012
        %1086 = vst.msk [vmem:[%s1059 + $0x129] sm:$0xf] %vm1060, %v1014
        %1087 = vst.msk [vmem:[%s1059 + $0x131] sm:$0xf] %vm1060, %v1016
        %1088 = vst.msk [vmem:[%s1059 + $0x139] sm:$0xf] %vm1060, %v1018
        %1089 = vst.msk [vmem:[%s1059 + $0x141] sm:$0xf] %vm1060, %v1020
        %1090 = vst.msk [vmem:[%s1059 + $0x149] sm:$0xf] %vm1060, %v1022
        %1091 = vst.msk [vmem:[%s1059 + $0x151] sm:$0xf] %vm1060, %v1024
        %1092 = vst.msk [vmem:[%s1059 + $0x159] sm:$0xf] %vm1060, %v1026
        %v1093 = vld [vmem:[%s4] sm:$0xf]
        %s1094 = scalar_lea.vmem [#allocation2], 24
        %v1095 = vld [vmem:[%s1094] sm:$0xf]
        %v1096 = vld [vmem:[%s1094 + $0x60] sm:$0xf]
        %v1097 = vld [vmem:[%s1094 + $0xc0] sm:$0xf]
        %v1098 = vld [vmem:[%s1094 + $0x120] sm:$0xf]
        %v1099 = vcombine.low %v1095, %v1097
        %v1101 = vunpack.c.l.s4 1983009808
        %v1102 = vunpack.c.0.s8 %v1101
        %v1103 = vlaneseq
        %v1104 = vshrl.u32 %v1103, 7
        %v1105 = vsub.s32 %v1102, %v1104
        %v1106 = vrot.slane %v1099, %v1105
        %v1107 = vcombine.low %v1096, %v1098
        %v1109 = vunpack.c.l.s4 1983009808
        %v1110 = vunpack.c.0.s8 %v1109
        %v1111 = vlaneseq
        %v1112 = vshrl.u32 %v1111, 7
        %v1113 = vsub.s32 %v1110, %v1112
        %v1114 = vrot.slane %v1107, %v1113
        %v1115 = vcombine.low %v1106, %v1114
        %v1116 = vcombine.high %v1106, %v1114
        %v1118 = vunpack.c.l.s4 1934713408
        %v1119 = vunpack.c.0.s8 %v1118
        %v1120 = vlaneseq
        %v1121 = vshrl.u32 %v1120, 7
        %v1122 = vsub.s32 %v1119, %v1121
        %v1123 = vrot.slane %v1115, %v1122
        %v1125 = vunpack.c.l.s4 1934713408
        %v1126 = vunpack.c.0.s8 %v1125
        %v1127 = vlaneseq
        %v1128 = vshrl.u32 %v1127, 7
        %v1129 = vsub.s32 %v1126, %v1128
        %v1130 = vrot.slane %v1116, %v1129
        %v1131 = vcombine.high %v1123, 0.0
        %v1132 = vcombine.high %v1130, 0.0
        %1134 = vrot.lane.b32.xlu0 %v1131, 4
        %v1135 = vpop.permute.xlu0 %1134
        %1138 = vrot.lane.b32.xlu0 %v1130, 8
        %v1139 = vpop.permute.xlu0 %1138
        %1142 = vrot.lane.b32.xlu0 %v1132, 12
        %v1143 = vpop.permute.xlu0 %1142
        %vm1145 = vcmask 31744
        %v1146 = vsel %vm1145, %v1123, %v1135
        %vm1147 = vcmask 64512
        %v1148 = vsel %vm1147, %v1146, %v1139
        %vm1149 = vcmask 97280
        %v1150 = vsel %vm1149, %v1148, %v1143
        %s1151 = scalar_lea.vmem [#allocation2], 16
        %v1152 = vld [vmem:[%s1151] sm:$0xf]
        %v1153 = vld [vmem:[%s1151 + $0x60] sm:$0xf]
        %v1154 = vld [vmem:[%s1151 + $0xc0] sm:$0xf]
        %v1155 = vld [vmem:[%s1151 + $0x120] sm:$0xf]
        %1160 = vrot.lane.b32.xlu0 %v1152, 127
        %v1161 = vpop.permute.xlu0 %1160
        %1162 = vrot.lane.b32.xlu0 %v1153, 127
        %v1163 = vpop.permute.xlu0 %1162
        %1164 = vrot.lane.b32.xlu0 %v1154, 127
        %v1165 = vpop.permute.xlu0 %1164
        %1166 = vrot.lane.b32.xlu0 %v1155, 127
        %v1167 = vpop.permute.xlu0 %1166
        %v1172 = vcombine.low %v1161, %v1165
        %v1174 = vunpack.c.l.s4 1983009808
        %v1175 = vunpack.c.0.s8 %v1174
        %v1176 = vlaneseq
        %v1177 = vshrl.u32 %v1176, 7
        %v1178 = vsub.s32 %v1175, %v1177
        %v1179 = vrot.slane %v1172, %v1178
        %v1180 = vcombine.low %v1163, %v1167
        %v1182 = vunpack.c.l.s4 1983009808
        %v1183 = vunpack.c.0.s8 %v1182
        %v1184 = vlaneseq
        %v1185 = vshrl.u32 %v1184, 7
        %v1186 = vsub.s32 %v1183, %v1185
        %v1187 = vrot.slane %v1180, %v1186
        %v1188 = vcombine.low %v1179, %v1187
        %v1189 = vcombine.high %v1179, %v1187
        %v1191 = vunpack.c.l.s4 1934713408
        %v1192 = vunpack.c.0.s8 %v1191
        %v1193 = vlaneseq
        %v1194 = vshrl.u32 %v1193, 7
        %v1195 = vsub.s32 %v1192, %v1194
        %v1196 = vrot.slane %v1188, %v1195
        %v1198 = vunpack.c.l.s4 1934713408
        %v1199 = vunpack.c.0.s8 %v1198
        %v1200 = vlaneseq
        %v1201 = vshrl.u32 %v1200, 7
        %v1202 = vsub.s32 %v1199, %v1201
        %v1203 = vrot.slane %v1189, %v1202
        %v1204 = vcombine.high %v1196, 0.0
        %v1205 = vcombine.high %v1203, 0.0
        %1207 = vrot.lane.b32.xlu0 %v1204, 4
        %v1208 = vpop.permute.xlu0 %1207
        %1211 = vrot.lane.b32.xlu0 %v1203, 8
        %v1212 = vpop.permute.xlu0 %1211
        %1215 = vrot.lane.b32.xlu0 %v1205, 12
        %v1216 = vpop.permute.xlu0 %1215
        %v1218 = vsel %vm1145, %v1196, %v1208
        %v1219 = vsel %vm1147, %v1218, %v1212
        %v1220 = vsel %vm1149, %v1219, %v1216
        %1225 = vrot.lane.b32.xlu0 %v1095, 127
        %v1226 = vpop.permute.xlu0 %1225
        %1227 = vrot.lane.b32.xlu0 %v1096, 127
        %v1228 = vpop.permute.xlu0 %1227
        %1229 = vrot.lane.b32.xlu0 %v1097, 127
        %v1230 = vpop.permute.xlu0 %1229
        %1231 = vrot.lane.b32.xlu0 %v1098, 127
        %v1232 = vpop.permute.xlu0 %1231
        %v1237 = vcombine.low %v1226, %v1230
        %v1239 = vunpack.c.l.s4 1983009808
        %v1240 = vunpack.c.0.s8 %v1239
        %v1241 = vlaneseq
        %v1242 = vshrl.u32 %v1241, 7
        %v1243 = vsub.s32 %v1240, %v1242
        %v1244 = vrot.slane %v1237, %v1243
        %v1245 = vcombine.low %v1228, %v1232
        %v1247 = vunpack.c.l.s4 1983009808
        %v1248 = vunpack.c.0.s8 %v1247
        %v1249 = vlaneseq
        %v1250 = vshrl.u32 %v1249, 7
        %v1251 = vsub.s32 %v1248, %v1250
        %v1252 = vrot.slane %v1245, %v1251
        %v1253 = vcombine.low %v1244, %v1252
        %v1254 = vcombine.high %v1244, %v1252
        %v1256 = vunpack.c.l.s4 1934713408
        %v1257 = vunpack.c.0.s8 %v1256
        %v1258 = vlaneseq
        %v1259 = vshrl.u32 %v1258, 7
        %v1260 = vsub.s32 %v1257, %v1259
        %v1261 = vrot.slane %v1253, %v1260
        %v1263 = vunpack.c.l.s4 1934713408
        %v1264 = vunpack.c.0.s8 %v1263
        %v1265 = vlaneseq
        %v1266 = vshrl.u32 %v1265, 7
        %v1267 = vsub.s32 %v1264, %v1266
        %v1268 = vrot.slane %v1254, %v1267
        %v1269 = vcombine.high %v1261, 0.0
        %v1270 = vcombine.high %v1268, 0.0
        %1272 = vrot.lane.b32.xlu0 %v1269, 4
        %v1273 = vpop.permute.xlu0 %1272
        %1276 = vrot.lane.b32.xlu0 %v1268, 8
        %v1277 = vpop.permute.xlu0 %1276
        %1280 = vrot.lane.b32.xlu0 %v1270, 12
        %v1281 = vpop.permute.xlu0 %1280
        %v1283 = vsel %vm1145, %v1261, %v1273
        %v1284 = vsel %vm1147, %v1283, %v1277
        %v1285 = vsel %vm1149, %v1284, %v1281
        %s1286 = scalar_lea.vmem [#allocation2], 8
        %v1287 = vld [vmem:[%s1286 + $0x1] sm:$0xf]
        %v1288 = vld [vmem:[%s1286 + $0x61] sm:$0xf]
        %v1289 = vld [vmem:[%s1286 + $0xc1] sm:$0xf]
        %v1290 = vld [vmem:[%s1286 + $0x121] sm:$0xf]
        %v1291 = vcombine.low %v1287, %v1289
        %v1293 = vunpack.c.l.s4 1983009808
        %v1294 = vunpack.c.0.s8 %v1293
        %v1295 = vlaneseq
        %v1296 = vshrl.u32 %v1295, 7
        %v1297 = vsub.s32 %v1294, %v1296
        %v1298 = vrot.slane %v1291, %v1297
        %v1299 = vcombine.low %v1288, %v1290
        %v1301 = vunpack.c.l.s4 1983009808
        %v1302 = vunpack.c.0.s8 %v1301
        %v1303 = vlaneseq
        %v1304 = vshrl.u32 %v1303, 7
        %v1305 = vsub.s32 %v1302, %v1304
        %v1306 = vrot.slane %v1299, %v1305
        %v1307 = vcombine.low %v1298, %v1306
        %v1308 = vcombine.high %v1298, %v1306
        %v1310 = vunpack.c.l.s4 1934713408
        %v1311 = vunpack.c.0.s8 %v1310
        %v1312 = vlaneseq
        %v1313 = vshrl.u32 %v1312, 7
        %v1314 = vsub.s32 %v1311, %v1313
        %v1315 = vrot.slane %v1307, %v1314
        %v1317 = vunpack.c.l.s4 1934713408
        %v1318 = vunpack.c.0.s8 %v1317
        %v1319 = vlaneseq
        %v1320 = vshrl.u32 %v1319, 7
        %v1321 = vsub.s32 %v1318, %v1320
        %v1322 = vrot.slane %v1308, %v1321
        %v1323 = vcombine.high %v1315, 0.0
        %v1324 = vcombine.high %v1322, 0.0
        %1326 = vrot.lane.b32.xlu0 %v1323, 4
        %v1327 = vpop.permute.xlu0 %1326
        %1330 = vrot.lane.b32.xlu0 %v1322, 8
        %v1331 = vpop.permute.xlu0 %1330
        %1334 = vrot.lane.b32.xlu0 %v1324, 12
        %v1335 = vpop.permute.xlu0 %1334
        %v1337 = vsel %vm1145, %v1315, %v1327
        %v1338 = vsel %vm1147, %v1337, %v1331
        %v1339 = vsel %vm1149, %v1338, %v1335
        %v1340 = vld [vmem:[#allocation2 + $0x1] sm:$0xf]
        %v1341 = vld [vmem:[#allocation2 + $0x61] sm:$0xf]
        %v1342 = vld [vmem:[#allocation2 + $0xc1] sm:$0xf]
        %v1343 = vld [vmem:[#allocation2 + $0x121] sm:$0xf]
        %1348 = vrot.lane.b32.xlu0 %v1340, 127
        %v1349 = vpop.permute.xlu0 %1348
        %1350 = vrot.lane.b32.xlu0 %v1341, 127
        %v1351 = vpop.permute.xlu0 %1350
        %1352 = vrot.lane.b32.xlu0 %v1342, 127
        %v1353 = vpop.permute.xlu0 %1352
        %1354 = vrot.lane.b32.xlu0 %v1343, 127
        %v1355 = vpop.permute.xlu0 %1354
        %v1360 = vcombine.low %v1349, %v1353
        %v1362 = vunpack.c.l.s4 1983009808
        %v1363 = vunpack.c.0.s8 %v1362
        %v1364 = vlaneseq
        %v1365 = vshrl.u32 %v1364, 7
        %v1366 = vsub.s32 %v1363, %v1365
        %v1367 = vrot.slane %v1360, %v1366
        %v1368 = vcombine.low %v1351, %v1355
        %v1370 = vunpack.c.l.s4 1983009808
        %v1371 = vunpack.c.0.s8 %v1370
        %v1372 = vlaneseq
        %v1373 = vshrl.u32 %v1372, 7
        %v1374 = vsub.s32 %v1371, %v1373
        %v1375 = vrot.slane %v1368, %v1374
        %v1376 = vcombine.low %v1367, %v1375
        %v1377 = vcombine.high %v1367, %v1375
        %v1379 = vunpack.c.l.s4 1934713408
        %v1380 = vunpack.c.0.s8 %v1379
        %v1381 = vlaneseq
        %v1382 = vshrl.u32 %v1381, 7
        %v1383 = vsub.s32 %v1380, %v1382
        %v1384 = vrot.slane %v1376, %v1383
        %v1386 = vunpack.c.l.s4 1934713408
        %v1387 = vunpack.c.0.s8 %v1386
        %v1388 = vlaneseq
        %v1389 = vshrl.u32 %v1388, 7
        %v1390 = vsub.s32 %v1387, %v1389
        %v1391 = vrot.slane %v1377, %v1390
        %v1392 = vcombine.high %v1384, 0.0
        %v1393 = vcombine.high %v1391, 0.0
        %1395 = vrot.lane.b32.xlu0 %v1392, 4
        %v1396 = vpop.permute.xlu0 %1395
        %1399 = vrot.lane.b32.xlu0 %v1391, 8
        %v1400 = vpop.permute.xlu0 %1399
        %1403 = vrot.lane.b32.xlu0 %v1393, 12
        %v1404 = vpop.permute.xlu0 %1403
        %v1406 = vsel %vm1145, %v1384, %v1396
        %v1407 = vsel %vm1147, %v1406, %v1400
        %v1408 = vsel %vm1149, %v1407, %v1404
        %1413 = vrot.lane.b32.xlu0 %v1287, 127
        %v1414 = vpop.permute.xlu0 %1413
        %1415 = vrot.lane.b32.xlu0 %v1288, 127
        %v1416 = vpop.permute.xlu0 %1415
        %1417 = vrot.lane.b32.xlu0 %v1289, 127
        %v1418 = vpop.permute.xlu0 %1417
        %1419 = vrot.lane.b32.xlu0 %v1290, 127
        %v1420 = vpop.permute.xlu0 %1419
        %v1425 = vcombine.low %v1414, %v1418
        %v1427 = vunpack.c.l.s4 1983009808
        %v1428 = vunpack.c.0.s8 %v1427
        %v1429 = vlaneseq
        %v1430 = vshrl.u32 %v1429, 7
        %v1431 = vsub.s32 %v1428, %v1430
        %v1432 = vrot.slane %v1425, %v1431
        %v1433 = vcombine.low %v1416, %v1420
        %v1435 = vunpack.c.l.s4 1983009808
        %v1436 = vunpack.c.0.s8 %v1435
        %v1437 = vlaneseq
        %v1438 = vshrl.u32 %v1437, 7
        %v1439 = vsub.s32 %v1436, %v1438
        %v1440 = vrot.slane %v1433, %v1439
        %v1441 = vcombine.low %v1432, %v1440
        %v1442 = vcombine.high %v1432, %v1440
        %v1444 = vunpack.c.l.s4 1934713408
        %v1445 = vunpack.c.0.s8 %v1444
        %v1446 = vlaneseq
        %v1447 = vshrl.u32 %v1446, 7
        %v1448 = vsub.s32 %v1445, %v1447
        %v1449 = vrot.slane %v1441, %v1448
        %v1451 = vunpack.c.l.s4 1934713408
        %v1452 = vunpack.c.0.s8 %v1451
        %v1453 = vlaneseq
        %v1454 = vshrl.u32 %v1453, 7
        %v1455 = vsub.s32 %v1452, %v1454
        %v1456 = vrot.slane %v1442, %v1455
        %v1457 = vcombine.high %v1449, 0.0
        %v1458 = vcombine.high %v1456, 0.0
        %1460 = vrot.lane.b32.xlu0 %v1457, 4
        %v1461 = vpop.permute.xlu0 %1460
        %1464 = vrot.lane.b32.xlu0 %v1456, 8
        %v1465 = vpop.permute.xlu0 %1464
        %1468 = vrot.lane.b32.xlu0 %v1458, 12
        %v1469 = vpop.permute.xlu0 %1468
        %v1471 = vsel %vm1145, %v1449, %v1461
        %v1472 = vsel %vm1147, %v1471, %v1465
        %v1473 = vsel %vm1149, %v1472, %v1469
        %v1474 = vld [vmem:[%s1094 + $0x1] sm:$0xf]
        %v1475 = vld [vmem:[%s1094 + $0x61] sm:$0xf]
        %v1476 = vld [vmem:[%s1094 + $0xc1] sm:$0xf]
        %v1477 = vld [vmem:[%s1094 + $0x121] sm:$0xf]
        %v1478 = vcombine.low %v1474, %v1476
        %v1480 = vunpack.c.l.s4 1983009808
        %v1481 = vunpack.c.0.s8 %v1480
        %v1482 = vlaneseq
        %v1483 = vshrl.u32 %v1482, 7
        %v1484 = vsub.s32 %v1481, %v1483
        %v1485 = vrot.slane %v1478, %v1484
        %v1486 = vcombine.low %v1475, %v1477
        %v1488 = vunpack.c.l.s4 1983009808
        %v1489 = vunpack.c.0.s8 %v1488
        %v1490 = vlaneseq
        %v1491 = vshrl.u32 %v1490, 7
        %v1492 = vsub.s32 %v1489, %v1491
        %v1493 = vrot.slane %v1486, %v1492
        %v1494 = vcombine.low %v1485, %v1493
        %v1495 = vcombine.high %v1485, %v1493
        %v1497 = vunpack.c.l.s4 1934713408
        %v1498 = vunpack.c.0.s8 %v1497
        %v1499 = vlaneseq
        %v1500 = vshrl.u32 %v1499, 7
        %v1501 = vsub.s32 %v1498, %v1500
        %v1502 = vrot.slane %v1494, %v1501
        %v1504 = vunpack.c.l.s4 1934713408
        %v1505 = vunpack.c.0.s8 %v1504
        %v1506 = vlaneseq
        %v1507 = vshrl.u32 %v1506, 7
        %v1508 = vsub.s32 %v1505, %v1507
        %v1509 = vrot.slane %v1495, %v1508
        %v1510 = vcombine.high %v1502, 0.0
        %v1511 = vcombine.high %v1509, 0.0
        %1513 = vrot.lane.b32.xlu0 %v1510, 4
        %v1514 = vpop.permute.xlu0 %1513
        %1517 = vrot.lane.b32.xlu0 %v1509, 8
        %v1518 = vpop.permute.xlu0 %1517
        %1521 = vrot.lane.b32.xlu0 %v1511, 12
        %v1522 = vpop.permute.xlu0 %1521
        %v1524 = vsel %vm1145, %v1502, %v1514
        %v1525 = vsel %vm1147, %v1524, %v1518
        %v1526 = vsel %vm1149, %v1525, %v1522
        %v1527 = vld [vmem:[%s1151 + $0x1] sm:$0xf]
        %v1528 = vld [vmem:[%s1151 + $0x61] sm:$0xf]
        %v1529 = vld [vmem:[%s1151 + $0xc1] sm:$0xf]
        %v1530 = vld [vmem:[%s1151 + $0x121] sm:$0xf]
        %1535 = vrot.lane.b32.xlu0 %v1527, 127
        %v1536 = vpop.permute.xlu0 %1535
        %1537 = vrot.lane.b32.xlu0 %v1528, 127
        %v1538 = vpop.permute.xlu0 %1537
        %1539 = vrot.lane.b32.xlu0 %v1529, 127
        %v1540 = vpop.permute.xlu0 %1539
        %1541 = vrot.lane.b32.xlu0 %v1530, 127
        %v1542 = vpop.permute.xlu0 %1541
        %v1547 = vcombine.low %v1536, %v1540
        %v1549 = vunpack.c.l.s4 1983009808
        %v1550 = vunpack.c.0.s8 %v1549
        %v1551 = vlaneseq
        %v1552 = vshrl.u32 %v1551, 7
        %v1553 = vsub.s32 %v1550, %v1552
        %v1554 = vrot.slane %v1547, %v1553
        %v1555 = vcombine.low %v1538, %v1542
        %v1557 = vunpack.c.l.s4 1983009808
        %v1558 = vunpack.c.0.s8 %v1557
        %v1559 = vlaneseq
        %v1560 = vshrl.u32 %v1559, 7
        %v1561 = vsub.s32 %v1558, %v1560
        %v1562 = vrot.slane %v1555, %v1561
        %v1563 = vcombine.low %v1554, %v1562
        %v1564 = vcombine.high %v1554, %v1562
        %v1566 = vunpack.c.l.s4 1934713408
        %v1567 = vunpack.c.0.s8 %v1566
        %v1568 = vlaneseq
        %v1569 = vshrl.u32 %v1568, 7
        %v1570 = vsub.s32 %v1567, %v1569
        %v1571 = vrot.slane %v1563, %v1570
        %v1573 = vunpack.c.l.s4 1934713408
        %v1574 = vunpack.c.0.s8 %v1573
        %v1575 = vlaneseq
        %v1576 = vshrl.u32 %v1575, 7
        %v1577 = vsub.s32 %v1574, %v1576
        %v1578 = vrot.slane %v1564, %v1577
        %v1579 = vcombine.high %v1571, 0.0
        %v1580 = vcombine.high %v1578, 0.0
        %1582 = vrot.lane.b32.xlu0 %v1579, 4
        %v1583 = vpop.permute.xlu0 %1582
        %1586 = vrot.lane.b32.xlu0 %v1578, 8
        %v1587 = vpop.permute.xlu0 %1586
        %1590 = vrot.lane.b32.xlu0 %v1580, 12
        %v1591 = vpop.permute.xlu0 %1590
        %v1593 = vsel %vm1145, %v1571, %v1583
        %v1594 = vsel %vm1147, %v1593, %v1587
        %v1595 = vsel %vm1149, %v1594, %v1591
        %1600 = vrot.lane.b32.xlu0 %v1474, 127
        %v1601 = vpop.permute.xlu0 %1600
        %1602 = vrot.lane.b32.xlu0 %v1475, 127
        %v1603 = vpop.permute.xlu0 %1602
        %1604 = vrot.lane.b32.xlu0 %v1476, 127
        %v1605 = vpop.permute.xlu0 %1604
        %1606 = vrot.lane.b32.xlu0 %v1477, 127
        %v1607 = vpop.permute.xlu0 %1606
        %v1612 = vcombine.low %v1601, %v1605
        %v1614 = vunpack.c.l.s4 1983009808
        %v1615 = vunpack.c.0.s8 %v1614
        %v1616 = vlaneseq
        %v1617 = vshrl.u32 %v1616, 7
        %v1618 = vsub.s32 %v1615, %v1617
        %v1619 = vrot.slane %v1612, %v1618
        %v1620 = vcombine.low %v1603, %v1607
        %v1622 = vunpack.c.l.s4 1983009808
        %v1623 = vunpack.c.0.s8 %v1622
        %v1624 = vlaneseq
        %v1625 = vshrl.u32 %v1624, 7
        %v1626 = vsub.s32 %v1623, %v1625
        %v1627 = vrot.slane %v1620, %v1626
        %v1628 = vcombine.low %v1619, %v1627
        %v1629 = vcombine.high %v1619, %v1627
        %v1631 = vunpack.c.l.s4 1934713408
        %v1632 = vunpack.c.0.s8 %v1631
        %v1633 = vlaneseq
        %v1634 = vshrl.u32 %v1633, 7
        %v1635 = vsub.s32 %v1632, %v1634
        %v1636 = vrot.slane %v1628, %v1635
        %v1638 = vunpack.c.l.s4 1934713408
        %v1639 = vunpack.c.0.s8 %v1638
        %v1640 = vlaneseq
        %v1641 = vshrl.u32 %v1640, 7
        %v1642 = vsub.s32 %v1639, %v1641
        %v1643 = vrot.slane %v1629, %v1642
        %v1644 = vcombine.high %v1636, 0.0
        %v1645 = vcombine.high %v1643, 0.0
        %1647 = vrot.lane.b32.xlu0 %v1644, 4
        %v1648 = vpop.permute.xlu0 %1647
        %1651 = vrot.lane.b32.xlu0 %v1643, 8
        %v1652 = vpop.permute.xlu0 %1651
        %1655 = vrot.lane.b32.xlu0 %v1645, 12
        %v1656 = vpop.permute.xlu0 %1655
        %v1658 = vsel %vm1145, %v1636, %v1648
        %v1659 = vsel %vm1147, %v1658, %v1652
        %v1660 = vsel %vm1149, %v1659, %v1656
        %s1661 = scalar_lea.vmem [#allocation2], 56
        %v1662 = vld [vmem:[%s1661] sm:$0xf]
        %v1663 = vld [vmem:[%s1661 + $0x60] sm:$0xf]
        %v1664 = vld [vmem:[%s1661 + $0xc0] sm:$0xf]
        %v1665 = vld [vmem:[%s1661 + $0x120] sm:$0xf]
        %v1666 = vcombine.low %v1662, %v1664
        %v1668 = vunpack.c.l.s4 1983009808
        %v1669 = vunpack.c.0.s8 %v1668
        %v1670 = vlaneseq
        %v1671 = vshrl.u32 %v1670, 7
        %v1672 = vsub.s32 %v1669, %v1671
        %v1673 = vrot.slane %v1666, %v1672
        %v1674 = vcombine.low %v1663, %v1665
        %v1676 = vunpack.c.l.s4 1983009808
        %v1677 = vunpack.c.0.s8 %v1676
        %v1678 = vlaneseq
        %v1679 = vshrl.u32 %v1678, 7
        %v1680 = vsub.s32 %v1677, %v1679
        %v1681 = vrot.slane %v1674, %v1680
        %v1682 = vcombine.low %v1673, %v1681
        %v1683 = vcombine.high %v1673, %v1681
        %v1685 = vunpack.c.l.s4 1934713408
        %v1686 = vunpack.c.0.s8 %v1685
        %v1687 = vlaneseq
        %v1688 = vshrl.u32 %v1687, 7
        %v1689 = vsub.s32 %v1686, %v1688
        %v1690 = vrot.slane %v1682, %v1689
        %v1692 = vunpack.c.l.s4 1934713408
        %v1693 = vunpack.c.0.s8 %v1692
        %v1694 = vlaneseq
        %v1695 = vshrl.u32 %v1694, 7
        %v1696 = vsub.s32 %v1693, %v1695
        %v1697 = vrot.slane %v1683, %v1696
        %v1698 = vcombine.high %v1690, 0.0
        %v1699 = vcombine.high %v1697, 0.0
        %1701 = vrot.lane.b32.xlu0 %v1698, 4
        %v1702 = vpop.permute.xlu0 %1701
        %1705 = vrot.lane.b32.xlu0 %v1697, 8
        %v1706 = vpop.permute.xlu0 %1705
        %1709 = vrot.lane.b32.xlu0 %v1699, 12
        %v1710 = vpop.permute.xlu0 %1709
        %v1712 = vsel %vm1145, %v1690, %v1702
        %v1713 = vsel %vm1147, %v1712, %v1706
        %v1714 = vsel %vm1149, %v1713, %v1710
        %s1715 = scalar_lea.vmem [#allocation2], 48
        %v1716 = vld [vmem:[%s1715] sm:$0xf]
        %v1717 = vld [vmem:[%s1715 + $0x60] sm:$0xf]
        %v1718 = vld [vmem:[%s1715 + $0xc0] sm:$0xf]
        %v1719 = vld [vmem:[%s1715 + $0x120] sm:$0xf]
        %1724 = vrot.lane.b32.xlu0 %v1716, 127
        %v1725 = vpop.permute.xlu0 %1724
        %1726 = vrot.lane.b32.xlu0 %v1717, 127
        %v1727 = vpop.permute.xlu0 %1726
        %1728 = vrot.lane.b32.xlu0 %v1718, 127
        %v1729 = vpop.permute.xlu0 %1728
        %1730 = vrot.lane.b32.xlu0 %v1719, 127
        %v1731 = vpop.permute.xlu0 %1730
        %v1736 = vcombine.low %v1725, %v1729
        %v1738 = vunpack.c.l.s4 1983009808
        %v1739 = vunpack.c.0.s8 %v1738
        %v1740 = vlaneseq
        %v1741 = vshrl.u32 %v1740, 7
        %v1742 = vsub.s32 %v1739, %v1741
        %v1743 = vrot.slane %v1736, %v1742
        %v1744 = vcombine.low %v1727, %v1731
        %v1746 = vunpack.c.l.s4 1983009808
        %v1747 = vunpack.c.0.s8 %v1746
        %v1748 = vlaneseq
        %v1749 = vshrl.u32 %v1748, 7
        %v1750 = vsub.s32 %v1747, %v1749
        %v1751 = vrot.slane %v1744, %v1750
        %v1752 = vcombine.low %v1743, %v1751
        %v1753 = vcombine.high %v1743, %v1751
        %v1755 = vunpack.c.l.s4 1934713408
        %v1756 = vunpack.c.0.s8 %v1755
        %v1757 = vlaneseq
        %v1758 = vshrl.u32 %v1757, 7
        %v1759 = vsub.s32 %v1756, %v1758
        %v1760 = vrot.slane %v1752, %v1759
        %v1762 = vunpack.c.l.s4 1934713408
        %v1763 = vunpack.c.0.s8 %v1762
        %v1764 = vlaneseq
        %v1765 = vshrl.u32 %v1764, 7
        %v1766 = vsub.s32 %v1763, %v1765
        %v1767 = vrot.slane %v1753, %v1766
        %v1768 = vcombine.high %v1760, 0.0
        %v1769 = vcombine.high %v1767, 0.0
        %1771 = vrot.lane.b32.xlu0 %v1768, 4
        %v1772 = vpop.permute.xlu0 %1771
        %1775 = vrot.lane.b32.xlu0 %v1767, 8
        %v1776 = vpop.permute.xlu0 %1775
        %1779 = vrot.lane.b32.xlu0 %v1769, 12
        %v1780 = vpop.permute.xlu0 %1779
        %v1782 = vsel %vm1145, %v1760, %v1772
        %v1783 = vsel %vm1147, %v1782, %v1776
        %v1784 = vsel %vm1149, %v1783, %v1780
        %1789 = vrot.lane.b32.xlu0 %v1662, 127
        %v1790 = vpop.permute.xlu0 %1789
        %1791 = vrot.lane.b32.xlu0 %v1663, 127
        %v1792 = vpop.permute.xlu0 %1791
        %1793 = vrot.lane.b32.xlu0 %v1664, 127
        %v1794 = vpop.permute.xlu0 %1793
        %1795 = vrot.lane.b32.xlu0 %v1665, 127
        %v1796 = vpop.permute.xlu0 %1795
        %v1801 = vcombine.low %v1790, %v1794
        %v1803 = vunpack.c.l.s4 1983009808
        %v1804 = vunpack.c.0.s8 %v1803
        %v1805 = vlaneseq
        %v1806 = vshrl.u32 %v1805, 7
        %v1807 = vsub.s32 %v1804, %v1806
        %v1808 = vrot.slane %v1801, %v1807
        %v1809 = vcombine.low %v1792, %v1796
        %v1811 = vunpack.c.l.s4 1983009808
        %v1812 = vunpack.c.0.s8 %v1811
        %v1813 = vlaneseq
        %v1814 = vshrl.u32 %v1813, 7
        %v1815 = vsub.s32 %v1812, %v1814
        %v1816 = vrot.slane %v1809, %v1815
        %v1817 = vcombine.low %v1808, %v1816
        %v1818 = vcombine.high %v1808, %v1816
        %v1820 = vunpack.c.l.s4 1934713408
        %v1821 = vunpack.c.0.s8 %v1820
        %v1822 = vlaneseq
        %v1823 = vshrl.u32 %v1822, 7
        %v1824 = vsub.s32 %v1821, %v1823
        %v1825 = vrot.slane %v1817, %v1824
        %v1827 = vunpack.c.l.s4 1934713408
        %v1828 = vunpack.c.0.s8 %v1827
        %v1829 = vlaneseq
        %v1830 = vshrl.u32 %v1829, 7
        %v1831 = vsub.s32 %v1828, %v1830
        %v1832 = vrot.slane %v1818, %v1831
        %v1833 = vcombine.high %v1825, 0.0
        %v1834 = vcombine.high %v1832, 0.0
        %1836 = vrot.lane.b32.xlu0 %v1833, 4
        %v1837 = vpop.permute.xlu0 %1836
        %1840 = vrot.lane.b32.xlu0 %v1832, 8
        %v1841 = vpop.permute.xlu0 %1840
        %1844 = vrot.lane.b32.xlu0 %v1834, 12
        %v1845 = vpop.permute.xlu0 %1844
        %v1847 = vsel %vm1145, %v1825, %v1837
        %v1848 = vsel %vm1147, %v1847, %v1841
        %v1849 = vsel %vm1149, %v1848, %v1845
        %s1850 = scalar_lea.vmem [#allocation2], 40
        %v1851 = vld [vmem:[%s1850 + $0x1] sm:$0xf]
        %v1852 = vld [vmem:[%s1850 + $0x61] sm:$0xf]
        %v1853 = vld [vmem:[%s1850 + $0xc1] sm:$0xf]
        %v1854 = vld [vmem:[%s1850 + $0x121] sm:$0xf]
        %v1855 = vcombine.low %v1851, %v1853
        %v1857 = vunpack.c.l.s4 1983009808
        %v1858 = vunpack.c.0.s8 %v1857
        %v1859 = vlaneseq
        %v1860 = vshrl.u32 %v1859, 7
        %v1861 = vsub.s32 %v1858, %v1860
        %v1862 = vrot.slane %v1855, %v1861
        %v1863 = vcombine.low %v1852, %v1854
        %v1865 = vunpack.c.l.s4 1983009808
        %v1866 = vunpack.c.0.s8 %v1865
        %v1867 = vlaneseq
        %v1868 = vshrl.u32 %v1867, 7
        %v1869 = vsub.s32 %v1866, %v1868
        %v1870 = vrot.slane %v1863, %v1869
        %v1871 = vcombine.low %v1862, %v1870
        %v1872 = vcombine.high %v1862, %v1870
        %v1874 = vunpack.c.l.s4 1934713408
        %v1875 = vunpack.c.0.s8 %v1874
        %v1876 = vlaneseq
        %v1877 = vshrl.u32 %v1876, 7
        %v1878 = vsub.s32 %v1875, %v1877
        %v1879 = vrot.slane %v1871, %v1878
        %v1881 = vunpack.c.l.s4 1934713408
        %v1882 = vunpack.c.0.s8 %v1881
        %v1883 = vlaneseq
        %v1884 = vshrl.u32 %v1883, 7
        %v1885 = vsub.s32 %v1882, %v1884
        %v1886 = vrot.slane %v1872, %v1885
        %v1887 = vcombine.high %v1879, 0.0
        %v1888 = vcombine.high %v1886, 0.0
        %1890 = vrot.lane.b32.xlu0 %v1887, 4
        %v1891 = vpop.permute.xlu0 %1890
        %1894 = vrot.lane.b32.xlu0 %v1886, 8
        %v1895 = vpop.permute.xlu0 %1894
        %1898 = vrot.lane.b32.xlu0 %v1888, 12
        %v1899 = vpop.permute.xlu0 %1898
        %v1901 = vsel %vm1145, %v1879, %v1891
        %v1902 = vsel %vm1147, %v1901, %v1895
        %v1903 = vsel %vm1149, %v1902, %v1899
        %v1904 = vld [vmem:[%s1059 + $0x1] sm:$0xf]
        %v1905 = vld [vmem:[%s1059 + $0x61] sm:$0xf]
        %v1906 = vld [vmem:[%s1059 + $0xc1] sm:$0xf]
        %v1907 = vld [vmem:[%s1059 + $0x121] sm:$0xf]
        %1912 = vrot.lane.b32.xlu0 %v1904, 127
        %v1913 = vpop.permute.xlu0 %1912
        %1914 = vrot.lane.b32.xlu0 %v1905, 127
        %v1915 = vpop.permute.xlu0 %1914
        %1916 = vrot.lane.b32.xlu0 %v1906, 127
        %v1917 = vpop.permute.xlu0 %1916
        %1918 = vrot.lane.b32.xlu0 %v1907, 127
        %v1919 = vpop.permute.xlu0 %1918
        %v1924 = vcombine.low %v1913, %v1917
        %v1926 = vunpack.c.l.s4 1983009808
        %v1927 = vunpack.c.0.s8 %v1926
        %v1928 = vlaneseq
        %v1929 = vshrl.u32 %v1928, 7
        %v1930 = vsub.s32 %v1927, %v1929
        %v1931 = vrot.slane %v1924, %v1930
        %v1932 = vcombine.low %v1915, %v1919
        %v1934 = vunpack.c.l.s4 1983009808
        %v1935 = vunpack.c.0.s8 %v1934
        %v1936 = vlaneseq
        %v1937 = vshrl.u32 %v1936, 7
        %v1938 = vsub.s32 %v1935, %v1937
        %v1939 = vrot.slane %v1932, %v1938
        %v1940 = vcombine.low %v1931, %v1939
        %v1941 = vcombine.high %v1931, %v1939
        %v1943 = vunpack.c.l.s4 1934713408
        %v1944 = vunpack.c.0.s8 %v1943
        %v1945 = vlaneseq
        %v1946 = vshrl.u32 %v1945, 7
        %v1947 = vsub.s32 %v1944, %v1946
        %v1948 = vrot.slane %v1940, %v1947
        %v1950 = vunpack.c.l.s4 1934713408
        %v1951 = vunpack.c.0.s8 %v1950
        %v1952 = vlaneseq
        %v1953 = vshrl.u32 %v1952, 7
        %v1954 = vsub.s32 %v1951, %v1953
        %v1955 = vrot.slane %v1941, %v1954
        %v1956 = vcombine.high %v1948, 0.0
        %v1957 = vcombine.high %v1955, 0.0
        %1959 = vrot.lane.b32.xlu0 %v1956, 4
        %v1960 = vpop.permute.xlu0 %1959
        %1963 = vrot.lane.b32.xlu0 %v1955, 8
        %v1964 = vpop.permute.xlu0 %1963
        %1967 = vrot.lane.b32.xlu0 %v1957, 12
        %v1968 = vpop.permute.xlu0 %1967
        %v1970 = vsel %vm1145, %v1948, %v1960
        %v1971 = vsel %vm1147, %v1970, %v1964
        %v1972 = vsel %vm1149, %v1971, %v1968
        %1977 = vrot.lane.b32.xlu0 %v1851, 127
        %v1978 = vpop.permute.xlu0 %1977
        %1979 = vrot.lane.b32.xlu0 %v1852, 127
        %v1980 = vpop.permute.xlu0 %1979
        %1981 = vrot.lane.b32.xlu0 %v1853, 127
        %v1982 = vpop.permute.xlu0 %1981
        %1983 = vrot.lane.b32.xlu0 %v1854, 127
        %v1984 = vpop.permute.xlu0 %1983
        %v1989 = vcombine.low %v1978, %v1982
        %v1991 = vunpack.c.l.s4 1983009808
        %v1992 = vunpack.c.0.s8 %v1991
        %v1993 = vlaneseq
        %v1994 = vshrl.u32 %v1993, 7
        %v1995 = vsub.s32 %v1992, %v1994
        %v1996 = vrot.slane %v1989, %v1995
        %v1997 = vcombine.low %v1980, %v1984
        %v1999 = vunpack.c.l.s4 1983009808
        %v2000 = vunpack.c.0.s8 %v1999
        %v2001 = vlaneseq
        %v2002 = vshrl.u32 %v2001, 7
        %v2003 = vsub.s32 %v2000, %v2002
        %v2004 = vrot.slane %v1997, %v2003
        %v2005 = vcombine.low %v1996, %v2004
        %v2006 = vcombine.high %v1996, %v2004
        %v2008 = vunpack.c.l.s4 1934713408
        %v2009 = vunpack.c.0.s8 %v2008
        %v2010 = vlaneseq
        %v2011 = vshrl.u32 %v2010, 7
        %v2012 = vsub.s32 %v2009, %v2011
        %v2013 = vrot.slane %v2005, %v2012
        %v2015 = vunpack.c.l.s4 1934713408
        %v2016 = vunpack.c.0.s8 %v2015
        %v2017 = vlaneseq
        %v2018 = vshrl.u32 %v2017, 7
        %v2019 = vsub.s32 %v2016, %v2018
        %v2020 = vrot.slane %v2006, %v2019
        %v2021 = vcombine.high %v2013, 0.0
        %v2022 = vcombine.high %v2020, 0.0
        %2024 = vrot.lane.b32.xlu0 %v2021, 4
        %v2025 = vpop.permute.xlu0 %2024
        %2028 = vrot.lane.b32.xlu0 %v2020, 8
        %v2029 = vpop.permute.xlu0 %2028
        %2032 = vrot.lane.b32.xlu0 %v2022, 12
        %v2033 = vpop.permute.xlu0 %2032
        %v2035 = vsel %vm1145, %v2013, %v2025
        %v2036 = vsel %vm1147, %v2035, %v2029
        %v2037 = vsel %vm1149, %v2036, %v2033
        %v2038 = vld [vmem:[%s1661 + $0x1] sm:$0xf]
        %v2039 = vld [vmem:[%s1661 + $0x61] sm:$0xf]
        %v2040 = vld [vmem:[%s1661 + $0xc1] sm:$0xf]
        %v2041 = vld [vmem:[%s1661 + $0x121] sm:$0xf]
        %v2042 = vcombine.low %v2038, %v2040
        %v2044 = vunpack.c.l.s4 1983009808
        %v2045 = vunpack.c.0.s8 %v2044
        %v2046 = vlaneseq
        %v2047 = vshrl.u32 %v2046, 7
        %v2048 = vsub.s32 %v2045, %v2047
        %v2049 = vrot.slane %v2042, %v2048
        %v2050 = vcombine.low %v2039, %v2041
        %v2052 = vunpack.c.l.s4 1983009808
        %v2053 = vunpack.c.0.s8 %v2052
        %v2054 = vlaneseq
        %v2055 = vshrl.u32 %v2054, 7
        %v2056 = vsub.s32 %v2053, %v2055
        %v2057 = vrot.slane %v2050, %v2056
        %v2058 = vcombine.low %v2049, %v2057
        %v2059 = vcombine.high %v2049, %v2057
        %v2061 = vunpack.c.l.s4 1934713408
        %v2062 = vunpack.c.0.s8 %v2061
        %v2063 = vlaneseq
        %v2064 = vshrl.u32 %v2063, 7
        %v2065 = vsub.s32 %v2062, %v2064
        %v2066 = vrot.slane %v2058, %v2065
        %v2068 = vunpack.c.l.s4 1934713408
        %v2069 = vunpack.c.0.s8 %v2068
        %v2070 = vlaneseq
        %v2071 = vshrl.u32 %v2070, 7
        %v2072 = vsub.s32 %v2069, %v2071
        %v2073 = vrot.slane %v2059, %v2072
        %v2074 = vcombine.high %v2066, 0.0
        %v2075 = vcombine.high %v2073, 0.0
        %2077 = vrot.lane.b32.xlu0 %v2074, 4
        %v2078 = vpop.permute.xlu0 %2077
        %2081 = vrot.lane.b32.xlu0 %v2073, 8
        %v2082 = vpop.permute.xlu0 %2081
        %2085 = vrot.lane.b32.xlu0 %v2075, 12
        %v2086 = vpop.permute.xlu0 %2085
        %v2088 = vsel %vm1145, %v2066, %v2078
        %v2089 = vsel %vm1147, %v2088, %v2082
        %v2090 = vsel %vm1149, %v2089, %v2086
        %v2091 = vld [vmem:[%s1715 + $0x1] sm:$0xf]
        %v2092 = vld [vmem:[%s1715 + $0x61] sm:$0xf]
        %v2093 = vld [vmem:[%s1715 + $0xc1] sm:$0xf]
        %v2094 = vld [vmem:[%s1715 + $0x121] sm:$0xf]
        %2099 = vrot.lane.b32.xlu0 %v2091, 127
        %v2100 = vpop.permute.xlu0 %2099
        %2101 = vrot.lane.b32.xlu0 %v2092, 127
        %v2102 = vpop.permute.xlu0 %2101
        %2103 = vrot.lane.b32.xlu0 %v2093, 127
        %v2104 = vpop.permute.xlu0 %2103
        %2105 = vrot.lane.b32.xlu0 %v2094, 127
        %v2106 = vpop.permute.xlu0 %2105
        %v2111 = vcombine.low %v2100, %v2104
        %v2113 = vunpack.c.l.s4 1983009808
        %v2114 = vunpack.c.0.s8 %v2113
        %v2115 = vlaneseq
        %v2116 = vshrl.u32 %v2115, 7
        %v2117 = vsub.s32 %v2114, %v2116
        %v2118 = vrot.slane %v2111, %v2117
        %v2119 = vcombine.low %v2102, %v2106
        %v2121 = vunpack.c.l.s4 1983009808
        %v2122 = vunpack.c.0.s8 %v2121
        %v2123 = vlaneseq
        %v2124 = vshrl.u32 %v2123, 7
        %v2125 = vsub.s32 %v2122, %v2124
        %v2126 = vrot.slane %v2119, %v2125
        %v2127 = vcombine.low %v2118, %v2126
        %v2128 = vcombine.high %v2118, %v2126
        %v2130 = vunpack.c.l.s4 1934713408
        %v2131 = vunpack.c.0.s8 %v2130
        %v2132 = vlaneseq
        %v2133 = vshrl.u32 %v2132, 7
        %v2134 = vsub.s32 %v2131, %v2133
        %v2135 = vrot.slane %v2127, %v2134
        %v2137 = vunpack.c.l.s4 1934713408
        %v2138 = vunpack.c.0.s8 %v2137
        %v2139 = vlaneseq
        %v2140 = vshrl.u32 %v2139, 7
        %v2141 = vsub.s32 %v2138, %v2140
        %v2142 = vrot.slane %v2128, %v2141
        %v2143 = vcombine.high %v2135, 0.0
        %v2144 = vcombine.high %v2142, 0.0
        %2146 = vrot.lane.b32.xlu0 %v2143, 4
        %v2147 = vpop.permute.xlu0 %2146
        %2150 = vrot.lane.b32.xlu0 %v2142, 8
        %v2151 = vpop.permute.xlu0 %2150
        %2154 = vrot.lane.b32.xlu0 %v2144, 12
        %v2155 = vpop.permute.xlu0 %2154
        %v2157 = vsel %vm1145, %v2135, %v2147
        %v2158 = vsel %vm1147, %v2157, %v2151
        %v2159 = vsel %vm1149, %v2158, %v2155
        %2164 = vrot.lane.b32.xlu0 %v2038, 127
        %v2165 = vpop.permute.xlu0 %2164
        %2166 = vrot.lane.b32.xlu0 %v2039, 127
        %v2167 = vpop.permute.xlu0 %2166
        %2168 = vrot.lane.b32.xlu0 %v2040, 127
        %v2169 = vpop.permute.xlu0 %2168
        %2170 = vrot.lane.b32.xlu0 %v2041, 127
        %v2171 = vpop.permute.xlu0 %2170
        %v2176 = vcombine.low %v2165, %v2169
        %v2178 = vunpack.c.l.s4 1983009808
        %v2179 = vunpack.c.0.s8 %v2178
        %v2180 = vlaneseq
        %v2181 = vshrl.u32 %v2180, 7
        %v2182 = vsub.s32 %v2179, %v2181
        %v2183 = vrot.slane %v2176, %v2182
        %v2184 = vcombine.low %v2167, %v2171
        %v2186 = vunpack.c.l.s4 1983009808
        %v2187 = vunpack.c.0.s8 %v2186
        %v2188 = vlaneseq
        %v2189 = vshrl.u32 %v2188, 7
        %v2190 = vsub.s32 %v2187, %v2189
        %v2191 = vrot.slane %v2184, %v2190
        %v2192 = vcombine.low %v2183, %v2191
        %v2193 = vcombine.high %v2183, %v2191
        %v2195 = vunpack.c.l.s4 1934713408
        %v2196 = vunpack.c.0.s8 %v2195
        %v2197 = vlaneseq
        %v2198 = vshrl.u32 %v2197, 7
        %v2199 = vsub.s32 %v2196, %v2198
        %v2200 = vrot.slane %v2192, %v2199
        %v2202 = vunpack.c.l.s4 1934713408
        %v2203 = vunpack.c.0.s8 %v2202
        %v2204 = vlaneseq
        %v2205 = vshrl.u32 %v2204, 7
        %v2206 = vsub.s32 %v2203, %v2205
        %v2207 = vrot.slane %v2193, %v2206
        %v2208 = vcombine.high %v2200, 0.0
        %v2209 = vcombine.high %v2207, 0.0
        %2211 = vrot.lane.b32.xlu0 %v2208, 4
        %v2212 = vpop.permute.xlu0 %2211
        %2215 = vrot.lane.b32.xlu0 %v2207, 8
        %v2216 = vpop.permute.xlu0 %2215
        %2219 = vrot.lane.b32.xlu0 %v2209, 12
        %v2220 = vpop.permute.xlu0 %2219
        %v2222 = vsel %vm1145, %v2200, %v2212
        %v2223 = vsel %vm1147, %v2222, %v2216
        %v2224 = vsel %vm1149, %v2223, %v2220
        %s2225 = scalar_lea.vmem [#allocation2], 88
        %v2226 = vld [vmem:[%s2225] sm:$0xf]
        %v2227 = vld [vmem:[%s2225 + $0x60] sm:$0xf]
        %v2228 = vld [vmem:[%s2225 + $0xc0] sm:$0xf]
        %v2229 = vld [vmem:[%s2225 + $0x120] sm:$0xf]
        %v2230 = vcombine.low %v2226, %v2228
        %v2232 = vunpack.c.l.s4 1983009808
        %v2233 = vunpack.c.0.s8 %v2232
        %v2234 = vlaneseq
        %v2235 = vshrl.u32 %v2234, 7
        %v2236 = vsub.s32 %v2233, %v2235
        %v2237 = vrot.slane %v2230, %v2236
        %v2238 = vcombine.low %v2227, %v2229
        %v2240 = vunpack.c.l.s4 1983009808
        %v2241 = vunpack.c.0.s8 %v2240
        %v2242 = vlaneseq
        %v2243 = vshrl.u32 %v2242, 7
        %v2244 = vsub.s32 %v2241, %v2243
        %v2245 = vrot.slane %v2238, %v2244
        %v2246 = vcombine.low %v2237, %v2245
        %v2247 = vcombine.high %v2237, %v2245
        %v2249 = vunpack.c.l.s4 1934713408
        %v2250 = vunpack.c.0.s8 %v2249
        %v2251 = vlaneseq
        %v2252 = vshrl.u32 %v2251, 7
        %v2253 = vsub.s32 %v2250, %v2252
        %v2254 = vrot.slane %v2246, %v2253
        %v2256 = vunpack.c.l.s4 1934713408
        %v2257 = vunpack.c.0.s8 %v2256
        %v2258 = vlaneseq
        %v2259 = vshrl.u32 %v2258, 7
        %v2260 = vsub.s32 %v2257, %v2259
        %v2261 = vrot.slane %v2247, %v2260
        %v2262 = vcombine.high %v2254, 0.0
        %v2263 = vcombine.high %v2261, 0.0
        %2265 = vrot.lane.b32.xlu0 %v2262, 4
        %v2266 = vpop.permute.xlu0 %2265
        %2269 = vrot.lane.b32.xlu0 %v2261, 8
        %v2270 = vpop.permute.xlu0 %2269
        %2273 = vrot.lane.b32.xlu0 %v2263, 12
        %v2274 = vpop.permute.xlu0 %2273
        %v2276 = vsel %vm1145, %v2254, %v2266
        %v2277 = vsel %vm1147, %v2276, %v2270
        %v2278 = vsel %vm1149, %v2277, %v2274
        %s2279 = scalar_lea.vmem [#allocation2], 80
        %v2280 = vld [vmem:[%s2279] sm:$0xf]
        %v2281 = vld [vmem:[%s2279 + $0x60] sm:$0xf]
        %v2282 = vld [vmem:[%s2279 + $0xc0] sm:$0xf]
        %v2283 = vld [vmem:[%s2279 + $0x120] sm:$0xf]
        %2288 = vrot.lane.b32.xlu0 %v2280, 127
        %v2289 = vpop.permute.xlu0 %2288
        %2290 = vrot.lane.b32.xlu0 %v2281, 127
        %v2291 = vpop.permute.xlu0 %2290
        %2292 = vrot.lane.b32.xlu0 %v2282, 127
        %v2293 = vpop.permute.xlu0 %2292
        %2294 = vrot.lane.b32.xlu0 %v2283, 127
        %v2295 = vpop.permute.xlu0 %2294
        %v2300 = vcombine.low %v2289, %v2293
        %v2302 = vunpack.c.l.s4 1983009808
        %v2303 = vunpack.c.0.s8 %v2302
        %v2304 = vlaneseq
        %v2305 = vshrl.u32 %v2304, 7
        %v2306 = vsub.s32 %v2303, %v2305
        %v2307 = vrot.slane %v2300, %v2306
        %v2308 = vcombine.low %v2291, %v2295
        %v2310 = vunpack.c.l.s4 1983009808
        %v2311 = vunpack.c.0.s8 %v2310
        %v2312 = vlaneseq
        %v2313 = vshrl.u32 %v2312, 7
        %v2314 = vsub.s32 %v2311, %v2313
        %v2315 = vrot.slane %v2308, %v2314
        %v2316 = vcombine.low %v2307, %v2315
        %v2317 = vcombine.high %v2307, %v2315
        %v2319 = vunpack.c.l.s4 1934713408
        %v2320 = vunpack.c.0.s8 %v2319
        %v2321 = vlaneseq
        %v2322 = vshrl.u32 %v2321, 7
        %v2323 = vsub.s32 %v2320, %v2322
        %v2324 = vrot.slane %v2316, %v2323
        %v2326 = vunpack.c.l.s4 1934713408
        %v2327 = vunpack.c.0.s8 %v2326
        %v2328 = vlaneseq
        %v2329 = vshrl.u32 %v2328, 7
        %v2330 = vsub.s32 %v2327, %v2329
        %v2331 = vrot.slane %v2317, %v2330
        %v2332 = vcombine.high %v2324, 0.0
        %v2333 = vcombine.high %v2331, 0.0
        %2335 = vrot.lane.b32.xlu0 %v2332, 4
        %v2336 = vpop.permute.xlu0 %2335
        %2339 = vrot.lane.b32.xlu0 %v2331, 8
        %v2340 = vpop.permute.xlu0 %2339
        %2343 = vrot.lane.b32.xlu0 %v2333, 12
        %v2344 = vpop.permute.xlu0 %2343
        %v2346 = vsel %vm1145, %v2324, %v2336
        %v2347 = vsel %vm1147, %v2346, %v2340
        %v2348 = vsel %vm1149, %v2347, %v2344
        %2353 = vrot.lane.b32.xlu0 %v2226, 127
        %v2354 = vpop.permute.xlu0 %2353
        %2355 = vrot.lane.b32.xlu0 %v2227, 127
        %v2356 = vpop.permute.xlu0 %2355
        %2357 = vrot.lane.b32.xlu0 %v2228, 127
        %v2358 = vpop.permute.xlu0 %2357
        %2359 = vrot.lane.b32.xlu0 %v2229, 127
        %v2360 = vpop.permute.xlu0 %2359
        %v2365 = vcombine.low %v2354, %v2358
        %v2367 = vunpack.c.l.s4 1983009808
        %v2368 = vunpack.c.0.s8 %v2367
        %v2369 = vlaneseq
        %v2370 = vshrl.u32 %v2369, 7
        %v2371 = vsub.s32 %v2368, %v2370
        %v2372 = vrot.slane %v2365, %v2371
        %v2373 = vcombine.low %v2356, %v2360
        %v2375 = vunpack.c.l.s4 1983009808
        %v2376 = vunpack.c.0.s8 %v2375
        %v2377 = vlaneseq
        %v2378 = vshrl.u32 %v2377, 7
        %v2379 = vsub.s32 %v2376, %v2378
        %v2380 = vrot.slane %v2373, %v2379
        %v2381 = vcombine.low %v2372, %v2380
        %v2382 = vcombine.high %v2372, %v2380
        %v2384 = vunpack.c.l.s4 1934713408
        %v2385 = vunpack.c.0.s8 %v2384
        %v2386 = vlaneseq
        %v2387 = vshrl.u32 %v2386, 7
        %v2388 = vsub.s32 %v2385, %v2387
        %v2389 = vrot.slane %v2381, %v2388
        %v2391 = vunpack.c.l.s4 1934713408
        %v2392 = vunpack.c.0.s8 %v2391
        %v2393 = vlaneseq
        %v2394 = vshrl.u32 %v2393, 7
        %v2395 = vsub.s32 %v2392, %v2394
        %v2396 = vrot.slane %v2382, %v2395
        %v2397 = vcombine.high %v2389, 0.0
        %v2398 = vcombine.high %v2396, 0.0
        %2400 = vrot.lane.b32.xlu0 %v2397, 4
        %v2401 = vpop.permute.xlu0 %2400
        %2404 = vrot.lane.b32.xlu0 %v2396, 8
        %v2405 = vpop.permute.xlu0 %2404
        %2408 = vrot.lane.b32.xlu0 %v2398, 12
        %v2409 = vpop.permute.xlu0 %2408
        %v2411 = vsel %vm1145, %v2389, %v2401
        %v2412 = vsel %vm1147, %v2411, %v2405
        %v2413 = vsel %vm1149, %v2412, %v2409
        %s2414 = scalar_lea.vmem [#allocation2], 72
        %v2415 = vld [vmem:[%s2414 + $0x1] sm:$0xf]
        %v2416 = vld [vmem:[%s2414 + $0x61] sm:$0xf]
        %v2417 = vld [vmem:[%s2414 + $0xc1] sm:$0xf]
        %v2418 = vld [vmem:[%s2414 + $0x121] sm:$0xf]
        %v2419 = vcombine.low %v2415, %v2417
        %v2421 = vunpack.c.l.s4 1983009808
        %v2422 = vunpack.c.0.s8 %v2421
        %v2423 = vlaneseq
        %v2424 = vshrl.u32 %v2423, 7
        %v2425 = vsub.s32 %v2422, %v2424
        %v2426 = vrot.slane %v2419, %v2425
        %v2427 = vcombine.low %v2416, %v2418
        %v2429 = vunpack.c.l.s4 1983009808
        %v2430 = vunpack.c.0.s8 %v2429
        %v2431 = vlaneseq
        %v2432 = vshrl.u32 %v2431, 7
        %v2433 = vsub.s32 %v2430, %v2432
        %v2434 = vrot.slane %v2427, %v2433
        %v2435 = vcombine.low %v2426, %v2434
        %v2436 = vcombine.high %v2426, %v2434
        %v2438 = vunpack.c.l.s4 1934713408
        %v2439 = vunpack.c.0.s8 %v2438
        %v2440 = vlaneseq
        %v2441 = vshrl.u32 %v2440, 7
        %v2442 = vsub.s32 %v2439, %v2441
        %v2443 = vrot.slane %v2435, %v2442
        %v2445 = vunpack.c.l.s4 1934713408
        %v2446 = vunpack.c.0.s8 %v2445
        %v2447 = vlaneseq
        %v2448 = vshrl.u32 %v2447, 7
        %v2449 = vsub.s32 %v2446, %v2448
        %v2450 = vrot.slane %v2436, %v2449
        %v2451 = vcombine.high %v2443, 0.0
        %v2452 = vcombine.high %v2450, 0.0
        %2454 = vrot.lane.b32.xlu0 %v2451, 4
        %v2455 = vpop.permute.xlu0 %2454
        %2458 = vrot.lane.b32.xlu0 %v2450, 8
        %v2459 = vpop.permute.xlu0 %2458
        %2462 = vrot.lane.b32.xlu0 %v2452, 12
        %v2463 = vpop.permute.xlu0 %2462
        %v2465 = vsel %vm1145, %v2443, %v2455
        %v2466 = vsel %vm1147, %v2465, %v2459
        %v2467 = vsel %vm1149, %v2466, %v2463
        %s2468 = scalar_lea.vmem [#allocation2], 64
        %v2469 = vld [vmem:[%s2468 + $0x1] sm:$0xf]
        %v2470 = vld [vmem:[%s2468 + $0x61] sm:$0xf]
        %v2471 = vld [vmem:[%s2468 + $0xc1] sm:$0xf]
        %v2472 = vld [vmem:[%s2468 + $0x121] sm:$0xf]
        %2477 = vrot.lane.b32.xlu0 %v2469, 127
        %v2478 = vpop.permute.xlu0 %2477
        %2479 = vrot.lane.b32.xlu0 %v2470, 127
        %v2480 = vpop.permute.xlu0 %2479
        %2481 = vrot.lane.b32.xlu0 %v2471, 127
        %v2482 = vpop.permute.xlu0 %2481
        %2483 = vrot.lane.b32.xlu0 %v2472, 127
        %v2484 = vpop.permute.xlu0 %2483
        %v2489 = vcombine.low %v2478, %v2482
        %v2491 = vunpack.c.l.s4 1983009808
        %v2492 = vunpack.c.0.s8 %v2491
        %v2493 = vlaneseq
        %v2494 = vshrl.u32 %v2493, 7
        %v2495 = vsub.s32 %v2492, %v2494
        %v2496 = vrot.slane %v2489, %v2495
        %v2497 = vcombine.low %v2480, %v2484
        %v2499 = vunpack.c.l.s4 1983009808
        %v2500 = vunpack.c.0.s8 %v2499
        %v2501 = vlaneseq
        %v2502 = vshrl.u32 %v2501, 7
        %v2503 = vsub.s32 %v2500, %v2502
        %v2504 = vrot.slane %v2497, %v2503
        %v2505 = vcombine.low %v2496, %v2504
        %v2506 = vcombine.high %v2496, %v2504
        %v2508 = vunpack.c.l.s4 1934713408
        %v2509 = vunpack.c.0.s8 %v2508
        %v2510 = vlaneseq
        %v2511 = vshrl.u32 %v2510, 7
        %v2512 = vsub.s32 %v2509, %v2511
        %v2513 = vrot.slane %v2505, %v2512
        %v2515 = vunpack.c.l.s4 1934713408
        %v2516 = vunpack.c.0.s8 %v2515
        %v2517 = vlaneseq
        %v2518 = vshrl.u32 %v2517, 7
        %v2519 = vsub.s32 %v2516, %v2518
        %v2520 = vrot.slane %v2506, %v2519
        %v2521 = vcombine.high %v2513, 0.0
        %v2522 = vcombine.high %v2520, 0.0
        %2524 = vrot.lane.b32.xlu0 %v2521, 4
        %v2525 = vpop.permute.xlu0 %2524
        %2528 = vrot.lane.b32.xlu0 %v2520, 8
        %v2529 = vpop.permute.xlu0 %2528
        %2532 = vrot.lane.b32.xlu0 %v2522, 12
        %v2533 = vpop.permute.xlu0 %2532
        %v2535 = vsel %vm1145, %v2513, %v2525
        %v2536 = vsel %vm1147, %v2535, %v2529
        %v2537 = vsel %vm1149, %v2536, %v2533
        %2542 = vrot.lane.b32.xlu0 %v2415, 127
        %v2543 = vpop.permute.xlu0 %2542
        %2544 = vrot.lane.b32.xlu0 %v2416, 127
        %v2545 = vpop.permute.xlu0 %2544
        %2546 = vrot.lane.b32.xlu0 %v2417, 127
        %v2547 = vpop.permute.xlu0 %2546
        %2548 = vrot.lane.b32.xlu0 %v2418, 127
        %v2549 = vpop.permute.xlu0 %2548
        %v2554 = vcombine.low %v2543, %v2547
        %v2556 = vunpack.c.l.s4 1983009808
        %v2557 = vunpack.c.0.s8 %v2556
        %v2558 = vlaneseq
        %v2559 = vshrl.u32 %v2558, 7
        %v2560 = vsub.s32 %v2557, %v2559
        %v2561 = vrot.slane %v2554, %v2560
        %v2562 = vcombine.low %v2545, %v2549
        %v2564 = vunpack.c.l.s4 1983009808
        %v2565 = vunpack.c.0.s8 %v2564
        %v2566 = vlaneseq
        %v2567 = vshrl.u32 %v2566, 7
        %v2568 = vsub.s32 %v2565, %v2567
        %v2569 = vrot.slane %v2562, %v2568
        %v2570 = vcombine.low %v2561, %v2569
        %v2571 = vcombine.high %v2561, %v2569
        %v2573 = vunpack.c.l.s4 1934713408
        %v2574 = vunpack.c.0.s8 %v2573
        %v2575 = vlaneseq
        %v2576 = vshrl.u32 %v2575, 7
        %v2577 = vsub.s32 %v2574, %v2576
        %v2578 = vrot.slane %v2570, %v2577
        %v2580 = vunpack.c.l.s4 1934713408
        %v2581 = vunpack.c.0.s8 %v2580
        %v2582 = vlaneseq
        %v2583 = vshrl.u32 %v2582, 7
        %v2584 = vsub.s32 %v2581, %v2583
        %v2585 = vrot.slane %v2571, %v2584
        %v2586 = vcombine.high %v2578, 0.0
        %v2587 = vcombine.high %v2585, 0.0
        %2589 = vrot.lane.b32.xlu0 %v2586, 4
        %v2590 = vpop.permute.xlu0 %2589
        %2593 = vrot.lane.b32.xlu0 %v2585, 8
        %v2594 = vpop.permute.xlu0 %2593
        %2597 = vrot.lane.b32.xlu0 %v2587, 12
        %v2598 = vpop.permute.xlu0 %2597
        %v2600 = vsel %vm1145, %v2578, %v2590
        %v2601 = vsel %vm1147, %v2600, %v2594
        %v2602 = vsel %vm1149, %v2601, %v2598
        %v2603 = vld [vmem:[%s2225 + $0x1] sm:$0xf]
        %v2604 = vld [vmem:[%s2225 + $0x61] sm:$0xf]
        %v2605 = vld [vmem:[%s2225 + $0xc1] sm:$0xf]
        %v2606 = vld [vmem:[%s2225 + $0x121] sm:$0xf]
        %v2607 = vcombine.low %v2603, %v2605
        %v2609 = vunpack.c.l.s4 1983009808
        %v2610 = vunpack.c.0.s8 %v2609
        %v2611 = vlaneseq
        %v2612 = vshrl.u32 %v2611, 7
        %v2613 = vsub.s32 %v2610, %v2612
        %v2614 = vrot.slane %v2607, %v2613
        %v2615 = vcombine.low %v2604, %v2606
        %v2617 = vunpack.c.l.s4 1983009808
        %v2618 = vunpack.c.0.s8 %v2617
        %v2619 = vlaneseq
        %v2620 = vshrl.u32 %v2619, 7
        %v2621 = vsub.s32 %v2618, %v2620
        %v2622 = vrot.slane %v2615, %v2621
        %v2623 = vcombine.low %v2614, %v2622
        %v2624 = vcombine.high %v2614, %v2622
        %v2626 = vunpack.c.l.s4 1934713408
        %v2627 = vunpack.c.0.s8 %v2626
        %v2628 = vlaneseq
        %v2629 = vshrl.u32 %v2628, 7
        %v2630 = vsub.s32 %v2627, %v2629
        %v2631 = vrot.slane %v2623, %v2630
        %v2633 = vunpack.c.l.s4 1934713408
        %v2634 = vunpack.c.0.s8 %v2633
        %v2635 = vlaneseq
        %v2636 = vshrl.u32 %v2635, 7
        %v2637 = vsub.s32 %v2634, %v2636
        %v2638 = vrot.slane %v2624, %v2637
        %v2639 = vcombine.high %v2631, 0.0
        %v2640 = vcombine.high %v2638, 0.0
        %2642 = vrot.lane.b32.xlu0 %v2639, 4
        %v2643 = vpop.permute.xlu0 %2642
        %2646 = vrot.lane.b32.xlu0 %v2638, 8
        %v2647 = vpop.permute.xlu0 %2646
        %2650 = vrot.lane.b32.xlu0 %v2640, 12
        %v2651 = vpop.permute.xlu0 %2650
        %v2653 = vsel %vm1145, %v2631, %v2643
        %v2654 = vsel %vm1147, %v2653, %v2647
        %v2655 = vsel %vm1149, %v2654, %v2651
        %v2656 = vld [vmem:[%s2279 + $0x1] sm:$0xf]
        %v2657 = vld [vmem:[%s2279 + $0x61] sm:$0xf]
        %v2658 = vld [vmem:[%s2279 + $0xc1] sm:$0xf]
        %v2659 = vld [vmem:[%s2279 + $0x121] sm:$0xf]
        %2664 = vrot.lane.b32.xlu0 %v2656, 127
        %v2665 = vpop.permute.xlu0 %2664
        %2666 = vrot.lane.b32.xlu0 %v2657, 127
        %v2667 = vpop.permute.xlu0 %2666
        %2668 = vrot.lane.b32.xlu0 %v2658, 127
        %v2669 = vpop.permute.xlu0 %2668
        %2670 = vrot.lane.b32.xlu0 %v2659, 127
        %v2671 = vpop.permute.xlu0 %2670
        %v2676 = vcombine.low %v2665, %v2669
        %v2678 = vunpack.c.l.s4 1983009808
        %v2679 = vunpack.c.0.s8 %v2678
        %v2680 = vlaneseq
        %v2681 = vshrl.u32 %v2680, 7
        %v2682 = vsub.s32 %v2679, %v2681
        %v2683 = vrot.slane %v2676, %v2682
        %v2684 = vcombine.low %v2667, %v2671
        %v2686 = vunpack.c.l.s4 1983009808
        %v2687 = vunpack.c.0.s8 %v2686
        %v2688 = vlaneseq
        %v2689 = vshrl.u32 %v2688, 7
        %v2690 = vsub.s32 %v2687, %v2689
        %v2691 = vrot.slane %v2684, %v2690
        %v2692 = vcombine.low %v2683, %v2691
        %v2693 = vcombine.high %v2683, %v2691
        %v2695 = vunpack.c.l.s4 1934713408
        %v2696 = vunpack.c.0.s8 %v2695
        %v2697 = vlaneseq
        %v2698 = vshrl.u32 %v2697, 7
        %v2699 = vsub.s32 %v2696, %v2698
        %v2700 = vrot.slane %v2692, %v2699
        %v2702 = vunpack.c.l.s4 1934713408
        %v2703 = vunpack.c.0.s8 %v2702
        %v2704 = vlaneseq
        %v2705 = vshrl.u32 %v2704, 7
        %v2706 = vsub.s32 %v2703, %v2705
        %v2707 = vrot.slane %v2693, %v2706
        %v2708 = vcombine.high %v2700, 0.0
        %v2709 = vcombine.high %v2707, 0.0
        %2711 = vrot.lane.b32.xlu0 %v2708, 4
        %v2712 = vpop.permute.xlu0 %2711
        %2715 = vrot.lane.b32.xlu0 %v2707, 8
        %v2716 = vpop.permute.xlu0 %2715
        %2719 = vrot.lane.b32.xlu0 %v2709, 12
        %v2720 = vpop.permute.xlu0 %2719
        %v2722 = vsel %vm1145, %v2700, %v2712
        %v2723 = vsel %vm1147, %v2722, %v2716
        %v2724 = vsel %vm1149, %v2723, %v2720
        %2729 = vrot.lane.b32.xlu0 %v2603, 127
        %v2730 = vpop.permute.xlu0 %2729
        %2731 = vrot.lane.b32.xlu0 %v2604, 127
        %v2732 = vpop.permute.xlu0 %2731
        %2733 = vrot.lane.b32.xlu0 %v2605, 127
        %v2734 = vpop.permute.xlu0 %2733
        %2735 = vrot.lane.b32.xlu0 %v2606, 127
        %v2736 = vpop.permute.xlu0 %2735
        %v2741 = vcombine.low %v2730, %v2734
        %v2743 = vunpack.c.l.s4 1983009808
        %v2744 = vunpack.c.0.s8 %v2743
        %v2745 = vlaneseq
        %v2746 = vshrl.u32 %v2745, 7
        %v2747 = vsub.s32 %v2744, %v2746
        %v2748 = vrot.slane %v2741, %v2747
        %v2749 = vcombine.low %v2732, %v2736
        %v2751 = vunpack.c.l.s4 1983009808
        %v2752 = vunpack.c.0.s8 %v2751
        %v2753 = vlaneseq
        %v2754 = vshrl.u32 %v2753, 7
        %v2755 = vsub.s32 %v2752, %v2754
        %v2756 = vrot.slane %v2749, %v2755
        %v2757 = vcombine.low %v2748, %v2756
        %v2758 = vcombine.high %v2748, %v2756
        %v2760 = vunpack.c.l.s4 1934713408
        %v2761 = vunpack.c.0.s8 %v2760
        %v2762 = vlaneseq
        %v2763 = vshrl.u32 %v2762, 7
        %v2764 = vsub.s32 %v2761, %v2763
        %v2765 = vrot.slane %v2757, %v2764
        %v2767 = vunpack.c.l.s4 1934713408
        %v2768 = vunpack.c.0.s8 %v2767
        %v2769 = vlaneseq
        %v2770 = vshrl.u32 %v2769, 7
        %v2771 = vsub.s32 %v2768, %v2770
        %v2772 = vrot.slane %v2758, %v2771
        %v2773 = vcombine.high %v2765, 0.0
        %v2774 = vcombine.high %v2772, 0.0
        %2776 = vrot.lane.b32.xlu0 %v2773, 4
        %v2777 = vpop.permute.xlu0 %2776
        %2780 = vrot.lane.b32.xlu0 %v2772, 8
        %v2781 = vpop.permute.xlu0 %2780
        %2784 = vrot.lane.b32.xlu0 %v2774, 12
        %v2785 = vpop.permute.xlu0 %2784
        %v2787 = vsel %vm1145, %v2765, %v2777
        %v2788 = vsel %vm1147, %v2787, %v2781
        %v2789 = vsel %vm1149, %v2788, %v2785
        %v2791 = vrot.slane %v1220, 4
        %v2794 = vrot.slane %v1339, 4
        %v2797 = vrot.slane %v1473, 4
        %v2800 = vrot.slane %v1595, 4
        %v2803 = vrot.slane %v1714, 4
        %v2806 = vrot.slane %v1849, 4
        %v2809 = vrot.slane %v1972, 4
        %v2812 = vrot.slane %v2090, 4
        %vm2814 = vcmask 1043456
        %v2815 = vsel %vm2814, %v1150, %v2791
        %v2816 = vsel %vm2814, %v1285, %v2794
        %v2817 = vsel %vm2814, %v1408, %v2797
        %v2818 = vsel %vm2814, %v1526, %v2800
        %v2819 = vsel %vm2814, %v1660, %v2803
        %v2820 = vsel %vm2814, %v1784, %v2806
        %v2821 = vsel %vm2814, %v1903, %v2809
        %v2822 = vsel %vm2814, %v2037, %v2812
        %v2824 = vrot.slane %v2224, 4
        %v2827 = vrot.slane %v2348, 4
        %v2830 = vrot.slane %v2467, 4
        %v2833 = vrot.slane %v2602, 4
        %v2836 = vrot.slane %v2724, 4
        %v2838 = vsel %vm2814, %v2159, %v2824
        %v2839 = vsel %vm2814, %v2278, %v2827
        %v2840 = vsel %vm2814, %v2413, %v2830
        %v2841 = vsel %vm2814, %v2537, %v2833
        %v2842 = vsel %vm2814, %v2655, %v2836
        %v2843 = vld [vmem:[%s5] sm:$0xf]
        %2845 = vset.pattern.permute.xlu0 0
        %2846 = vperm.xlu0 %2845, %v2843
        %v2847 = vpop.permute.xlu0 %2846
        %vm2849 = vcmask 883712
        %v2851 = vsel %vm2849, %v1093, 0
        %v2854 = vsel %vm2814, %v2789, 0
        %2856 = vmatprep.subr.mxu0 0.0
        %2857 = vmatpush1.msra.mxu0 %v2815
        %2858 = vmatprep.subr.mxu0 0.0
        %2859 = vmatpush1.msra.mxu0 %v2816
        %2860 = vmatprep.subr.mxu0 0.0
        %2861 = vmatpush1.msra.mxu0 %v2817
        %2862 = vmatprep.subr.mxu0 0.0
        %2863 = vmatpush1.msra.mxu0 %v2818
        %2864 = vmatprep.subr.mxu0 0.0
        %2865 = vmatpush1.msra.mxu0 %v2819
        %2866 = vmatprep.subr.mxu0 0.0
        %2867 = vmatpush1.msra.mxu0 %v2820
        %2868 = vmatprep.subr.mxu0 0.0
        %2869 = vmatpush1.msra.mxu0 %v2821
        %2870 = vmatprep.subr.mxu0 0.0
        %2871 = vmatpush1.msra.mxu0 %v2822
        %2872 = vmatprep.subr.mxu0 0.0
        %2873 = vmatpush1.msra.mxu0 %v2838
        %2874 = vmatprep.subr.mxu0 0.0
        %2875 = vmatpush1.msra.mxu0 %v2839
        %2876 = vmatprep.subr.mxu0 0.0
        %2877 = vmatpush1.msra.mxu0 %v2840
        %2878 = vmatprep.subr.mxu0 0.0
        %2879 = vmatpush1.msra.mxu0 %v2841
        %2880 = vmatprep.subr.mxu0 0.0
        %2881 = vmatpush1.msra.mxu0 %v2842
        %2882 = vmatprep.subr.mxu0 0.0
        %2883 = vmatpush1.msra.mxu0 %v2854
        %2884 = vmatprep.subr.mxu0 0.0
        %2885 = vmatpush1.msra.mxu0 0.0
        %2886 = vmatprep.subr.mxu0 0.0
        %2887 = vmatpush1.msra.mxu0 0.0
        %2888 = vmatprep.subr.mxu0 0.0
        %2889 = vmatpush1.msra.mxu0 0.0
        %2890 = vmatprep.subr.mxu0 0.0
        %2891 = vmatpush1.msra.mxu0 0.0
        %2892 = vmatprep.subr.mxu0 0.0
        %2893 = vmatpush1.msra.mxu0 0.0
        %2894 = vmatprep.subr.mxu0 0.0
        %2895 = vmatpush1.msra.mxu0 0.0
        %2896 = vmatprep.subr.mxu0 0.0
        %2897 = vmatpush1.msra.mxu0 0.0
        %2898 = vmatprep.subr.mxu0 0.0
        %2899 = vmatpush1.msra.mxu0 0.0
        %2900 = vmatprep.subr.mxu0 0.0
        %2901 = vmatpush1.msra.mxu0 0.0
        %2902 = vmatprep.subr.mxu0 0.0
        %2903 = vmatpush1.msra.mxu0 0.0
        %2904 = vmatprep.subr.mxu0 0.0
        %2905 = vmatpush1.msra.mxu0 0.0
        %2906 = vmatprep.subr.mxu0 0.0
        %2907 = vmatpush1.msra.mxu0 0.0
        %2908 = vmatprep.subr.mxu0 0.0
        %2909 = vmatpush1.msra.mxu0 0.0
        %2910 = vmatprep.subr.mxu0 0.0
        %2911 = vmatpush1.msra.mxu0 0.0
        %2912 = vmatprep.subr.mxu0 0.0
        %2913 = vmatpush1.msra.mxu0 0.0
        %2914 = vmatprep.subr.mxu0 0.0
        %2915 = vmatpush1.msra.mxu0 0.0
        %2916 = vmatprep.subr.mxu0 0.0
        %2917 = vmatpush1.msra.mxu0 0.0
        %2918 = vmatprep.subr.mxu0 0.0
        %2919 = vmatpush1.msra.mxu0 0.0
        %2920 = vmatprep.mubr.f32.mxu0 0.0
        %2921 = vmatmul.mubr.f32.gmra.mrb[0].mxu0 %v2851
        %v2922 = vpop.f32.mrb[0].mxu0
        %v2923 = vadd.f32 %v2847, %v2922
        %v2924 = vpop.f32.mrb[0].mxu0
        %2925 = vdwg.mxu0
        %vm2926 = vcmask 125952
        %2927 = vst.msk [vmem:[%s445] sm:$0xf] %vm2926, %v2923
        %v2928 = vcombine.low %v502, %v504
        %v2930 = vunpack.c.l.s4 1983009808
        %v2931 = vunpack.c.0.s8 %v2930
        %v2932 = vlaneseq
        %v2933 = vshrl.u32 %v2932, 7
        %v2934 = vsub.s32 %v2931, %v2933
        %v2935 = vrot.slane %v2928, %v2934
        %v2936 = vcombine.low %v503, %v505
        %v2938 = vunpack.c.l.s4 1983009808
        %v2939 = vunpack.c.0.s8 %v2938
        %v2940 = vlaneseq
        %v2941 = vshrl.u32 %v2940, 7
        %v2942 = vsub.s32 %v2939, %v2941
        %v2943 = vrot.slane %v2936, %v2942
        %v2944 = vcombine.low %v2935, %v2943
        %v2945 = vcombine.high %v2935, %v2943
        %v2947 = vunpack.c.l.s4 1934713408
        %v2948 = vunpack.c.0.s8 %v2947
        %v2949 = vlaneseq
        %v2950 = vshrl.u32 %v2949, 7
        %v2951 = vsub.s32 %v2948, %v2950
        %v2952 = vrot.slane %v2944, %v2951
        %v2954 = vunpack.c.l.s4 1934713408
        %v2955 = vunpack.c.0.s8 %v2954
        %v2956 = vlaneseq
        %v2957 = vshrl.u32 %v2956, 7
        %v2958 = vsub.s32 %v2955, %v2957
        %v2959 = vrot.slane %v2945, %v2958
        %v2960 = vcombine.high %v2952, 0.0
        %v2961 = vcombine.high %v2959, 0.0
        %2963 = vrot.lane.b32.xlu0 %v2960, 4
        %v2964 = vpop.permute.xlu0 %2963
        %2967 = vrot.lane.b32.xlu0 %v2959, 8
        %v2968 = vpop.permute.xlu0 %2967
        %2971 = vrot.lane.b32.xlu0 %v2961, 12
        %v2972 = vpop.permute.xlu0 %2971
        %v2974 = vsel %vm1145, %v2952, %v2964
        %v2975 = vsel %vm1147, %v2974, %v2968
        %v2976 = vsel %vm1149, %v2975, %v2972
        %2977 = vst.msk [vmem:[%s445 + $0x4] sm:$0xf] %vm2926, %v2976
        %p2978 = scmp.lt.s32.totalorder %s21, 1
        %s2979 = scalar_select %p2978, %s21, 1
        %p2980 = scmp.lt.s32.totalorder %s22, 3
        %s2981 = scalar_select %p2980, %s22, 3
        %s2982 = smul.addr %s2979, 4
        %s2983 = sadd.s32 %s2981, %s2982
        %s2984 = smul.addr %s2983, 8
        %s2985 = scalar_lea.vmem %s6, %s2984
        // Predicated region
        $region94: #{variable_down_step_3d.3} parent=80 // pred_check
          %p2986 = pneg %p182
        $region95: #{variable_down_step_3d.3} parent=80 // pred_check_branch
          %2988 = sbr.rel (%p2986) target = $region97
        $region96: #{variable_down_step_3d.3} parent=80 // pred_region
          _
        $region97: #{variable_down_step_3d.3} parent=80 // pred_fallthru
          _
      $region81: #{variable_down_step_3d.3} parent=5 // pred_fallthru
        _
      %p2989 = scmp.le.s32.totalorder 2, %s12
      // Predicated region
      $region98: #{variable_down_step_3d.3} parent=5 // pred_check
        %p2990 = pneg %p2989
      $region99: #{variable_down_step_3d.3} parent=5 // pred_check_branch
        %2992 = sbr.rel (%p2990) target = $region101
      $region100: #{variable_down_step_3d.3} parent=5 // pred_region
        %s2993 = ssub.s32 %s12, 2
        // Predicated region
        $region102: #{variable_down_step_3d.3} parent=100 // pred_check
          %p2994 = pneg %p188
        $region103: #{variable_down_step_3d.3} parent=100 // pred_check_branch
          %2996 = sbr.rel (%p2994) target = $region105
        $region104: #{variable_down_step_3d.3} parent=100 // pred_region
          %p2997 = scmp.lt.s32.totalorder %s23, 1
          %s2998 = scalar_select %p2997, %s23, 1
          %p2999 = scmp.lt.s32.totalorder %s24, 3
          %s3000 = scalar_select %p2999, %s24, 3
          %s3001 = smul.addr %s2998, 4
          %s3002 = sadd.s32 %s3000, %s3001
          %s3003 = smul.addr %s3002, 8
          %s3004 = scalar_lea.vmem %s6, %s3003
        $region105: #{variable_down_step_3d.3} parent=100 // pred_fallthru
          _
      $region101: #{variable_down_step_3d.3} parent=5 // pred_fallthru
        _
    $region6: #{variable_down_step_3d.3} parent=1 // loop_footer
      %s16 = sadd.s32 1, %s12
    $region7: #{variable_down_step_3d.3} parent=1 // loop_footer_branch
      %11 = sbr.rel target = $region3
    $region8: #{variable_down_step_3d.3} parent=1 // loop_exit
      _

</llo_original>
